<compile_context>
chip_gen: v7x
topology: tpu7x:2x2x1
jax: 0.10.0
libtpu: 0.0.40
codegen_flags: <defaults>
</compile_context>

<pallas_src>
import jax
import jax.numpy as jnp
from jax import lax
from jax.experimental import pallas as pl
from jax.experimental.pallas import tpu as pltpu

# ----------------------- synthetic "args" / config -----------------------
VOCAB = 50
EMBED_SIZE = 32          # args.embed_size (word_rep.feature_size)
NUM_FILTER_MAPS = 32     # args.num_filter_maps (== feature_size -> residual add valid)
FILTER_SIZES = (3, 5)    # args.filter_size = "3,5"
KERNEL_SIZE = 3          # args.kernel_size (base conv)
DILATION_RATES = (1, 2, 3)
EMB_LABEL = 16           # args.embedding_size (GCN / label feature dim)
E2 = 2 * EMB_LABEL       # projection output dim
Y = 8                    # number of labels
CORNET_DIM = 16
N_CORNET_BLOCKS = 2
B = 2                    # batch
T = 16                   # sequence length
BN_EPS = 1e-5

assert EMBED_SIZE == NUM_FILTER_MAPS

NF2 = len(FILTER_SIZES) * NUM_FILTER_MAPS              # 64: both branches on lanes
MAXK = max(FILTER_SIZES)                                # 5 taps (fs=3 centred inside)
_HALO = max([(KERNEL_SIZE - 1) // 2]
            + [((fs - 1) // 2) * d for fs in FILTER_SIZES for d in DILATION_RATES])
PAD = 8                                                 # per-side halo rows, 8-aligned
assert PAD >= _HALO and PAD % 8 == 0
TPAD = T + 2 * PAD                                      # per-batch padded length (32)
LROWS = B * TPAD                                        # logical rows, batch folded in M (64)

# ----- conv-weight slab layout (bf16): rows = [base | dil0 | dil1 | dil2] ----
W_BASE = 0                                              # (K*E, NF2)   = (96, 64)
W_DIL = KERNEL_SIZE * EMBED_SIZE                        # + j*MAXK*NF2 = (320, 64) each
WSLAB_ROWS = W_DIL + len(DILATION_RATES) * MAXK * NF2   # 1056

# ----- param slab layout (f32, lane width 64) ----
ROW_PROJ_W = 0            # (NF2, E2)        rows   0..63
ROW_G1W = 64              # (EMB, EMB)       rows  64..79
ROW_G2W = 80              # (EMB, EMB)       rows  80..95
ROW_CW1 = 96              # 2 x (Y, CORNET)  rows  96..111
ROW_CW2 = 112             # 2 x (CORNET, Y)  rows 112..143
ROW_PROJ_B = 144
ROW_G1B = 145
ROW_G2B = 146
ROW_CB1 = 147             # + block index
ROW_CB2 = 149             # + block index
ROW_BASE_B = 151
ROW_DSH = 152             # + stage index (BN shift, eval mode)
PSLAB_ROWS = 160


# ------------------------------ fused kernel ------------------------------
def _fused_kernel(ids_ref,                                # (B*T,) int32, SMEM prefetch
                  embed_ref, wslab_ref, pslab_ref,        # packed params (VMEM)
                  adj_ref, gnf_ref, mask_ref, target_ref, # runtime inputs
                  y_ref, loss_ref,                        # outputs (B,Y), (1,1)
                  xemb_ref):                              # VMEM scratch (LROWS, E)
    f32, bf16 = jnp.float32, jnp.bfloat16

    # ---------- WordRep: in-kernel embedding gather (dropout = identity) ----------
    for b in range(B):
        dst0 = b * TPAD + PAD
        for t in range(T):
            idx = ids_ref[b * T + t]
            xemb_ref[dst0 + t:dst0 + t + 1, :] = embed_ref[pl.ds(idx, 1), :]

    # ---------- row validity mask ('same'-padding zero halos between batches) -----
    row = lax.broadcasted_iota(jnp.int32, (LROWS, 1), 0)
    valid = (row >= PAD) & (row < PAD + T)
    for b in range(1, B):
        lo = b * TPAD + PAD
        valid = valid | ((row >= lo) & (row < lo + T))
    row_mask = valid.astype(f32)                           # (LROWS, 1)

    # ---------- LabelNet (GCN): Linear(A@f) -> relu -> Linear(A@h) ----------
    adj, gnf = adj_ref[...], gnf_ref[...]
    g1w = pslab_ref[ROW_G1W:ROW_G1W + EMB_LABEL, :EMB_LABEL]
    g1b = pslab_ref[ROW_G1B:ROW_G1B + 1, :EMB_LABEL]
    g2w = pslab_ref[ROW_G2W:ROW_G2W + EMB_LABEL, :EMB_LABEL]
    g2b = pslab_ref[ROW_G2B:ROW_G2B + 1, :EMB_LABEL]
    h = jnp.dot(adj, gnf, preferred_element_type=f32)
    h = jnp.maximum(jnp.dot(h, g1w, preferred_element_type=f32) + g1b, 0.0)
    h = jnp.dot(adj, h, preferred_element_type=f32)
    label_gcn = jnp.dot(h, g2w, preferred_element_type=f32) + g2b          # (Y, EMB)
    label_feature = jnp.concatenate([label_gcn, gnf], axis=1)              # (Y, 2*EMB)

    # ---------- projection fused into the attention scores ----------
    # s_raw = (h_cnn @ proj_w + proj_b) @ label_feature^T
    #       = h_cnn @ (proj_w @ label_feature^T) + proj_b @ label_feature^T
    proj_w = pslab_ref[ROW_PROJ_W:ROW_PROJ_W + NF2, :E2]
    proj_b = pslab_ref[ROW_PROJ_B:ROW_PROJ_B + 1, :E2]
    dn_t = (((1,), (1,)), ((), ()))                                        # A @ B^T
    w_s = lax.dot_general(proj_w, label_feature, dn_t, preferred_element_type=f32)  # (NF2, Y)
    b_s = lax.dot_general(proj_b, label_feature, dn_t, preferred_element_type=f32)  # (1, Y)

    # ---------- 'same' conv: roll (XLU) + im2col -> one bf16 MXU dot per stage ----
    def conv_stage(src, w_row_lo, ntaps, cin, dil):
        pieces = []
        for k in range(ntaps):
            s = (k - (ntaps - 1) // 2) * dil
            shifted = src if s == 0 else pltpu.roll(src, shift=(-s) % LROWS, axis=0)
            pieces.append(shifted.astype(bf16))
        slab = jnp.concatenate(pieces, axis=1)                  # (LROWS, ntaps*cin) bf16
        w = wslab_ref[w_row_lo:w_row_lo + ntaps * cin, :]       # (ntaps*cin, NF2) bf16
        return jnp.dot(slab, w, preferred_element_type=f32)     # (LROWS, NF2) f32

    # base conv of both branches (stacked on the 64-lane output axis)
    x0 = xemb_ref[...] * row_mask                               # (LROWS, E), halos -> 0
    base = jnp.tanh(conv_stage(x0, W_BASE, KERNEL_SIZE, EMBED_SIZE, 1)
                    + pslab_ref[ROW_BASE_B:ROW_BASE_B + 1, :])
    base = base * row_mask

    # MultiLevelDilatedResidualBlock (branches block-diagonal in the weights)
    src = base
    h_cnn = None
    for j, dil in enumerate(DILATION_RATES):
        acc = (conv_stage(src, W_DIL + j * MAXK * NF2, MAXK, NF2, dil)
               + pslab_ref[ROW_DSH + j:ROW_DSH + j + 1, :])     # conv + BN (eval)
        if j < len(DILATION_RATES) - 1:
            src = jnp.tanh(acc) * row_mask
        else:
            h_cnn = jnp.tanh(acc + base)                        # residual = block input

    # ---------- masked label attention (softmax over T, per batch) ----------
    s_raw = jnp.dot(h_cnn, w_s, preferred_element_type=f32) + b_s          # (LROWS, Y)
    mask = mask_ref[...]
    ys = []
    for b in range(B):
        lo = b * TPAD + PAD                                     # 8 / 40: 8-aligned rows
        sb = s_raw[lo:lo + T, :]                                # (T, Y)
        sm = sb * mask[b:b + 1, :]                              # multiplicative mask (as in ref)
        sm = sm - jnp.max(sm, axis=0, keepdims=True)
        e = jnp.exp(sm)
        alpha = e / jnp.sum(e, axis=0, keepdims=True)           # softmax over T
        ys.append(jnp.sum(alpha * sb, axis=0, keepdims=True))   # y[b,l]=sum_t alpha*s_raw
    yv = jnp.concatenate(ys, axis=0)                            # (B, Y)

    # ---------- CorNet ----------
    for i in range(N_CORNET_BLOCKS):
        ident = yv
        z = 1.0 / (1.0 + jnp.exp(-yv))                                            # sigmoid
        w1 = pslab_ref[ROW_CW1 + Y * i:ROW_CW1 + Y * (i + 1), :CORNET_DIM]
        b1 = pslab_ref[ROW_CB1 + i:ROW_CB1 + i + 1, :CORNET_DIM]
        ctx = jnp.dot(z, w1, preferred_element_type=f32) + b1
        ctx = jnp.where(ctx > 0, ctx, jnp.exp(jnp.minimum(ctx, 0.0)) - 1.0)       # ELU
        w2 = pslab_ref[ROW_CW2 + CORNET_DIM * i:ROW_CW2 + CORNET_DIM * (i + 1), :Y]
        b2 = pslab_ref[ROW_CB2 + i:ROW_CB2 + i + 1, :Y]
        yv = jnp.dot(ctx, w2, preferred_element_type=f32) + b2 + ident
    y_ref[...] = yv.astype(y_ref.dtype)

    # ---------- BCEWithLogitsLoss (mean) ----------
    tgt = target_ref[...]
    per_elem = (jnp.maximum(yv, 0.0) - yv * tgt
                + jnp.log(1.0 + jnp.exp(-jnp.abs(yv))))
    loss_ref[...] = (jnp.sum(per_elem, axis=(0, 1), keepdims=True)
                     / float(B * Y)).astype(loss_ref.dtype)


# ------------------------------ pallas_call wrapper ------------------------------
def _fused_call(x_ids, embed, wslab, pslab, adj, gnf, mask, target):
    def full(a):
        nd = a.ndim
        return pl.BlockSpec(a.shape, lambda i, ids, _n=nd: (0,) * _n)

    grid_spec = pltpu.PrefetchScalarGridSpec(
        num_scalar_prefetch=1,
        grid=(1,),
        in_specs=[full(embed), full(wslab), full(pslab),
                  full(adj), full(gnf), full(mask), full(target)],
        out_specs=(pl.BlockSpec((B, Y), lambda i, ids: (0, 0)),
                   pl.BlockSpec((1, 1), lambda i, ids: (0, 0))),
        scratch_shapes=[pltpu.VMEM((LROWS, EMBED_SIZE), jnp.float32)],
    )
    return pl.pallas_call(
        _fused_kernel,
        grid_spec=grid_spec,
        out_shape=(jax.ShapeDtypeStruct((B, Y), jnp.float32),
                   jax.ShapeDtypeStruct((1, 1), jnp.float32)),
        compiler_params=pltpu.CompilerParams(
            dimension_semantics=("arbitrary",)),
    )(x_ids, embed, wslab, pslab, adj, gnf, mask, target)


# ------------------------------ parameters ------------------------------
def init_params(key):
    keys = iter(jax.random.split(key, 64))

    def nrm(shape, scale=0.1):
        return (scale * jax.random.normal(next(keys), shape)).astype(jnp.float32)

    params = {}
    embed = nrm((VOCAB, EMBED_SIZE))
    params['embed'] = embed.at[0].set(0.0)                 # padding_idx = 0

    convs = []
    for fs in FILTER_SIZES:
        c = {'base_w': nrm((KERNEL_SIZE, EMBED_SIZE, EMBED_SIZE)),
             'base_b': nrm((EMBED_SIZE,))}
        for j in range(len(DILATION_RATES)):               # dilated convs: bias=False
            cin = EMBED_SIZE if j == 0 else NUM_FILTER_MAPS
            c[f'w{j}'] = nrm((fs, cin, NUM_FILTER_MAPS))
            c[f'bn{j}_gamma'] = jnp.ones((NUM_FILTER_MAPS,), jnp.float32)
            c[f'bn{j}_beta'] = jnp.zeros((NUM_FILTER_MAPS,), jnp.float32)
            c[f'bn{j}_mean'] = jnp.zeros((NUM_FILTER_MAPS,), jnp.float32)
            c[f'bn{j}_var'] = jnp.ones((NUM_FILTER_MAPS,), jnp.float32)
        convs.append(c)
    params['convs'] = convs

    params['gcn1_w'] = nrm((EMB_LABEL, EMB_LABEL))
    params['gcn1_b'] = nrm((EMB_LABEL,))
    params['gcn2_w'] = nrm((EMB_LABEL, EMB_LABEL))
    params['gcn2_b'] = nrm((EMB_LABEL,))

    params['proj_w'] = nrm((NF2, E2))
    params['proj_b'] = nrm((E2,))

    cornet = []
    for _ in range(N_CORNET_BLOCKS):
        cornet.append({'w1': nrm((Y, CORNET_DIM)), 'b1': nrm((CORNET_DIM,)),
                       'w2': nrm((CORNET_DIM, Y)), 'b2': nrm((Y,))})
    params['cornet'] = cornet
    return params


def pack_params(params):
    """Repack params into two kernel slabs (off the hot path):
       bf16 conv-weight slab with taps stacked on the contraction axis (base conv
       branch-stacked on cout, dilated convs block-diagonal, BN scale folded in),
       and one f32 slab holding GCN / projection / CorNet weights and all
       biases / BN shifts."""
    f32 = jnp.float32
    convs = params['convs']

    # ---- conv weight slab (bf16) ----
    base_w = jnp.concatenate([c['base_w'] for c in convs], axis=2)     # (K, E, NF2)
    base_stack = base_w.reshape(KERNEL_SIZE * EMBED_SIZE, NF2)         # (96, NF2)

    dil_stacks, shifts = [], []
    for j in range(len(DILATION_RATES)):
        W = jnp.zeros((MAXK, NF2, NF2), f32)
        sh = []
        for br, (c, fs) in enumerate(zip(convs, FILTER_SIZES)):
            scale = c[f'bn{j}_gamma'] / jnp.sqrt(c[f'bn{j}_var'] + BN_EPS)
            shift = c[f'bn{j}_beta'] - c[f'bn{j}_mean'] * scale
            w = c[f'w{j}'] * scale[None, None, :]                      # fold BN scale
            k0 = (MAXK - fs) // 2                                      # centre fs taps
            lo = br * NUM_FILTER_MAPS
            W = W.at[k0:k0 + fs, lo:lo + NUM_FILTER_MAPS, lo:lo + NUM_FILTER_MAPS].set(w)
            sh.append(shift)
        dil_stacks.append(W.reshape(MAXK * NF2, NF2))                  # (320, NF2)
        shifts.append(jnp.concatenate(sh, axis=0))                     # (NF2,)
    conv_slab = jnp.concatenate([base_stack] + dil_stacks, axis=0).astype(jnp.bfloat16)
    assert conv_slab.shape == (WSLAB_ROWS, NF2)

    # ---- parameter slab (f32) ----
    P = jnp.zeros((PSLAB_ROWS, NF2), f32)
    P = P.at[ROW_PROJ_W:ROW_PROJ_W + NF2, :E2].set(params['proj_w'])
    P = P.at[ROW_G1W:ROW_G1W + EMB_LABEL, :EMB_LABEL].set(params['gcn1_w'])
    P = P.at[ROW_G2W:ROW_G2W + EMB_LABEL, :EMB_LABEL].set(params['gcn2_w'])
    for i in range(N_CORNET_BLOCKS):
        P = P.at[ROW_CW1 + Y * i:ROW_CW1 + Y * (i + 1), :CORNET_DIM].set(
            params['cornet'][i]['w1'])
        P = P.at[ROW_CW2 + CORNET_DIM * i:ROW_CW2 + CORNET_DIM * (i + 1), :Y].set(
            params['cornet'][i]['w2'])
        P = P.at[ROW_CB1 + i, :CORNET_DIM].set(params['cornet'][i]['b1'])
        P = P.at[ROW_CB2 + i, :Y].set(params['cornet'][i]['b2'])
    P = P.at[ROW_PROJ_B, :E2].set(params['proj_b'])
    P = P.at[ROW_G1B, :EMB_LABEL].set(params['gcn1_b'])
    P = P.at[ROW_G2B, :EMB_LABEL].set(params['gcn2_b'])
    P = P.at[ROW_BASE_B, :].set(jnp.concatenate([c['base_b'] for c in convs], axis=0))
    for j in range(len(DILATION_RATES)):
        P = P.at[ROW_DSH + j, :].set(shifts[j])

    return {'embed': params['embed'], 'conv_slab': conv_slab, 'pslab': P}


# -------------------------------- forward --------------------------------
@jax.jit
def forward(pk, x_ids, target, mask, adj, g_node_feature):
    y, loss = _fused_call(
        x_ids.reshape(B * T).astype(jnp.int32),
        pk['embed'], pk['conv_slab'], pk['pslab'],
        adj, g_node_feature, mask, target)
    return y, loss[0, 0]


# ---------------------------------- main ----------------------------------
if __name__ == "__main__":
    key = jax.random.PRNGKey(0)
    kp, kx, kt, km, ka, kg = jax.random.split(key, 6)

    params = init_params(kp)
    pk = pack_params(params)

    x_ids = jax.random.randint(kx, (B, T), 1, VOCAB, dtype=jnp.int32)
    target = jax.random.bernoulli(kt, 0.3, (B, Y)).astype(jnp.float32)
    mask = jax.random.bernoulli(km, 0.7, (B, Y)).astype(jnp.float32)
    # TODO(synk): DGL graph object replaced by a dense 0/1 adjacency matrix
    #             (copy_src + sum == adj @ node_features).
    adj = jax.random.bernoulli(ka, 0.4, (Y, Y)).astype(jnp.float32)
    g_node_feature = (0.1 * jax.random.normal(kg, (Y, EMB_LABEL))).astype(jnp.float32)

    y, loss = forward(pk, x_ids, target, mask, adj, g_node_feature)
    jax.block_until_ready((y, loss))
    assert y.shape == (B, Y) and loss.shape == ()
    print("KERNEL_OK")
</pallas_src>

<mosaic_0001>
module attributes {stable_mosaic.version = 11 : i64} {
  func.func @_fused_kernel(%arg0: i32, %arg1: memref<32xi32, #tpu.memory_space<smem>>, %arg2: memref<50x32xf32, #tpu.memory_space<vmem>>, %arg3: memref<1056x64xbf16, #tpu.memory_space<vmem>>, %arg4: memref<160x64xf32, #tpu.memory_space<vmem>>, %arg5: memref<8x8xf32, #tpu.memory_space<vmem>>, %arg6: memref<8x16xf32, #tpu.memory_space<vmem>>, %arg7: memref<2x8xf32, #tpu.memory_space<vmem>>, %arg8: memref<2x8xf32, #tpu.memory_space<vmem>>, %arg9: memref<2x8xf32, #tpu.memory_space<vmem>>, %arg10: memref<1x1xf32, #tpu.memory_space<vmem>>, %arg11: memref<64x32xf32, #tpu.memory_space<vmem>>) attributes {dimension_semantics = [#tpu.dimension_semantics<arbitrary>], iteration_bounds = array<i64: 1>, scalar_prefetch = 1 : i64, scratch_operands = 1 : i64, tpu.core_type = #tpu.core_type<tc>, window_params = [{pipeline_mode = #tpu.pipeline_mode<synchronous>, transform_indices = @transform_0, window_bounds = array<i64: 50, 32>}, {pipeline_mode = #tpu.pipeline_mode<synchronous>, transform_indices = @transform_1, window_bounds = array<i64: 1056, 64>}, {pipeline_mode = #tpu.pipeline_mode<synchronous>, transform_indices = @transform_2, window_bounds = array<i64: 160, 64>}, {pipeline_mode = #tpu.pipeline_mode<synchronous>, transform_indices = @transform_3, window_bounds = array<i64: 8, 8>}, {pipeline_mode = #tpu.pipeline_mode<synchronous>, transform_indices = @transform_4, window_bounds = array<i64: 8, 16>}, {pipeline_mode = #tpu.pipeline_mode<synchronous>, transform_indices = @transform_5, window_bounds = array<i64: 2, 8>}, {pipeline_mode = #tpu.pipeline_mode<synchronous>, transform_indices = @transform_6, window_bounds = array<i64: 2, 8>}, {pipeline_mode = #tpu.pipeline_mode<synchronous>, transform_indices = @transform_7, window_bounds = array<i64: 2, 8>}, {pipeline_mode = #tpu.pipeline_mode<synchronous>, transform_indices = @transform_8, window_bounds = array<i64: 1, 1>}]} {
    %c0 = arith.constant 0 : index
    %0 = memref.load %arg1[%c0] : memref<32xi32, #tpu.memory_space<smem>>
    %1 = arith.index_cast %0 : i32 to index
    %c0_0 = arith.constant 0 : index
    %2 = vector.load %arg2[%1, %c0_0] : memref<50x32xf32, #tpu.memory_space<vmem>>, vector<1x32xf32>
    %c8 = arith.constant 8 : index
    %c0_1 = arith.constant 0 : index
    %3 = vector.load %arg11[%c8, %c0_1] : memref<64x32xf32, #tpu.memory_space<vmem>>, vector<1x32xf32>
    tpu.vector_store %arg11[%c8, %c0_1], %2 {strides = array<i32>} : memref<64x32xf32, #tpu.memory_space<vmem>>, vector<1x32xf32>,
    %c1 = arith.constant 1 : index
    %4 = memref.load %arg1[%c1] : memref<32xi32, #tpu.memory_space<smem>>
    %5 = arith.index_cast %4 : i32 to index
    %c0_2 = arith.constant 0 : index
    %6 = vector.load %arg2[%5, %c0_2] : memref<50x32xf32, #tpu.memory_space<vmem>>, vector<1x32xf32>
    %c9 = arith.constant 9 : index
    %c0_3 = arith.constant 0 : index
    %7 = vector.load %arg11[%c9, %c0_3] : memref<64x32xf32, #tpu.memory_space<vmem>>, vector<1x32xf32>
    tpu.vector_store %arg11[%c9, %c0_3], %6 {strides = array<i32>} : memref<64x32xf32, #tpu.memory_space<vmem>>, vector<1x32xf32>,
    %c2 = arith.constant 2 : index
    %8 = memref.load %arg1[%c2] : memref<32xi32, #tpu.memory_space<smem>>
    %9 = arith.index_cast %8 : i32 to index
    %c0_4 = arith.constant 0 : index
    %10 = vector.load %arg2[%9, %c0_4] : memref<50x32xf32, #tpu.memory_space<vmem>>, vector<1x32xf32>
    %c10 = arith.constant 10 : index
    %c0_5 = arith.constant 0 : index
    %11 = vector.load %arg11[%c10, %c0_5] : memref<64x32xf32, #tpu.memory_space<vmem>>, vector<1x32xf32>
    tpu.vector_store %arg11[%c10, %c0_5], %10 {strides = array<i32>} : memref<64x32xf32, #tpu.memory_space<vmem>>, vector<1x32xf32>,
    %c3 = arith.constant 3 : index
    %12 = memref.load %arg1[%c3] : memref<32xi32, #tpu.memory_space<smem>>
    %13 = arith.index_cast %12 : i32 to index
    %c0_6 = arith.constant 0 : index
    %14 = vector.load %arg2[%13, %c0_6] : memref<50x32xf32, #tpu.memory_space<vmem>>, vector<1x32xf32>
    %c11 = arith.constant 11 : index
    %c0_7 = arith.constant 0 : index
    %15 = vector.load %arg11[%c11, %c0_7] : memref<64x32xf32, #tpu.memory_space<vmem>>, vector<1x32xf32>
    tpu.vector_store %arg11[%c11, %c0_7], %14 {strides = array<i32>} : memref<64x32xf32, #tpu.memory_space<vmem>>, vector<1x32xf32>,
    %c4 = arith.constant 4 : index
    %16 = memref.load %arg1[%c4] : memref<32xi32, #tpu.memory_space<smem>>
    %17 = arith.index_cast %16 : i32 to index
    %c0_8 = arith.constant 0 : index
    %18 = vector.load %arg2[%17, %c0_8] : memref<50x32xf32, #tpu.memory_space<vmem>>, vector<1x32xf32>
    %c12 = arith.constant 12 : index
    %c0_9 = arith.constant 0 : index
    %19 = vector.load %arg11[%c12, %c0_9] : memref<64x32xf32, #tpu.memory_space<vmem>>, vector<1x32xf32>
    tpu.vector_store %arg11[%c12, %c0_9], %18 {strides = array<i32>} : memref<64x32xf32, #tpu.memory_space<vmem>>, vector<1x32xf32>,
    %c5 = arith.constant 5 : index
    %20 = memref.load %arg1[%c5] : memref<32xi32, #tpu.memory_space<smem>>
    %21 = arith.index_cast %20 : i32 to index
    %c0_10 = arith.constant 0 : index
    %22 = vector.load %arg2[%21, %c0_10] : memref<50x32xf32, #tpu.memory_space<vmem>>, vector<1x32xf32>
    %c13 = arith.constant 13 : index
    %c0_11 = arith.constant 0 : index
    %23 = vector.load %arg11[%c13, %c0_11] : memref<64x32xf32, #tpu.memory_space<vmem>>, vector<1x32xf32>
    tpu.vector_store %arg11[%c13, %c0_11], %22 {strides = array<i32>} : memref<64x32xf32, #tpu.memory_space<vmem>>, vector<1x32xf32>,
    %c6 = arith.constant 6 : index
    %24 = memref.load %arg1[%c6] : memref<32xi32, #tpu.memory_space<smem>>
    %25 = arith.index_cast %24 : i32 to index
    %c0_12 = arith.constant 0 : index
    %26 = vector.load %arg2[%25, %c0_12] : memref<50x32xf32, #tpu.memory_space<vmem>>, vector<1x32xf32>
    %c14 = arith.constant 14 : index
    %c0_13 = arith.constant 0 : index
    %27 = vector.load %arg11[%c14, %c0_13] : memref<64x32xf32, #tpu.memory_space<vmem>>, vector<1x32xf32>
    tpu.vector_store %arg11[%c14, %c0_13], %26 {strides = array<i32>} : memref<64x32xf32, #tpu.memory_space<vmem>>, vector<1x32xf32>,
    %c7 = arith.constant 7 : index
    %28 = memref.load %arg1[%c7] : memref<32xi32, #tpu.memory_space<smem>>
    %29 = arith.index_cast %28 : i32 to index
    %c0_14 = arith.constant 0 : index
    %30 = vector.load %arg2[%29, %c0_14] : memref<50x32xf32, #tpu.memory_space<vmem>>, vector<1x32xf32>
    %c15 = arith.constant 15 : index
    %c0_15 = arith.constant 0 : index
    %31 = vector.load %arg11[%c15, %c0_15] : memref<64x32xf32, #tpu.memory_space<vmem>>, vector<1x32xf32>
    tpu.vector_store %arg11[%c15, %c0_15], %30 {strides = array<i32>} : memref<64x32xf32, #tpu.memory_space<vmem>>, vector<1x32xf32>,
    %c8_16 = arith.constant 8 : index
    %32 = memref.load %arg1[%c8_16] : memref<32xi32, #tpu.memory_space<smem>>
    %33 = arith.index_cast %32 : i32 to index
    %c0_17 = arith.constant 0 : index
    %34 = vector.load %arg2[%33, %c0_17] : memref<50x32xf32, #tpu.memory_space<vmem>>, vector<1x32xf32>
    %c16 = arith.constant 16 : index
    %c0_18 = arith.constant 0 : index
    %35 = vector.load %arg11[%c16, %c0_18] : memref<64x32xf32, #tpu.memory_space<vmem>>, vector<1x32xf32>
    tpu.vector_store %arg11[%c16, %c0_18], %34 {strides = array<i32>} : memref<64x32xf32, #tpu.memory_space<vmem>>, vector<1x32xf32>,
    %c9_19 = arith.constant 9 : index
    %36 = memref.load %arg1[%c9_19] : memref<32xi32, #tpu.memory_space<smem>>
    %37 = arith.index_cast %36 : i32 to index
    %c0_20 = arith.constant 0 : index
    %38 = vector.load %arg2[%37, %c0_20] : memref<50x32xf32, #tpu.memory_space<vmem>>, vector<1x32xf32>
    %c17 = arith.constant 17 : index
    %c0_21 = arith.constant 0 : index
    %39 = vector.load %arg11[%c17, %c0_21] : memref<64x32xf32, #tpu.memory_space<vmem>>, vector<1x32xf32>
    tpu.vector_store %arg11[%c17, %c0_21], %38 {strides = array<i32>} : memref<64x32xf32, #tpu.memory_space<vmem>>, vector<1x32xf32>,
    %c10_22 = arith.constant 10 : index
    %40 = memref.load %arg1[%c10_22] : memref<32xi32, #tpu.memory_space<smem>>
    %41 = arith.index_cast %40 : i32 to index
    %c0_23 = arith.constant 0 : index
    %42 = vector.load %arg2[%41, %c0_23] : memref<50x32xf32, #tpu.memory_space<vmem>>, vector<1x32xf32>
    %c18 = arith.constant 18 : index
    %c0_24 = arith.constant 0 : index
    %43 = vector.load %arg11[%c18, %c0_24] : memref<64x32xf32, #tpu.memory_space<vmem>>, vector<1x32xf32>
    tpu.vector_store %arg11[%c18, %c0_24], %42 {strides = array<i32>} : memref<64x32xf32, #tpu.memory_space<vmem>>, vector<1x32xf32>,
    %c11_25 = arith.constant 11 : index
    %44 = memref.load %arg1[%c11_25] : memref<32xi32, #tpu.memory_space<smem>>
    %45 = arith.index_cast %44 : i32 to index
    %c0_26 = arith.constant 0 : index
    %46 = vector.load %arg2[%45, %c0_26] : memref<50x32xf32, #tpu.memory_space<vmem>>, vector<1x32xf32>
    %c19 = arith.constant 19 : index
    %c0_27 = arith.constant 0 : index
    %47 = vector.load %arg11[%c19, %c0_27] : memref<64x32xf32, #tpu.memory_space<vmem>>, vector<1x32xf32>
    tpu.vector_store %arg11[%c19, %c0_27], %46 {strides = array<i32>} : memref<64x32xf32, #tpu.memory_space<vmem>>, vector<1x32xf32>,
    %c12_28 = arith.constant 12 : index
    %48 = memref.load %arg1[%c12_28] : memref<32xi32, #tpu.memory_space<smem>>
    %49 = arith.index_cast %48 : i32 to index
    %c0_29 = arith.constant 0 : index
    %50 = vector.load %arg2[%49, %c0_29] : memref<50x32xf32, #tpu.memory_space<vmem>>, vector<1x32xf32>
    %c20 = arith.constant 20 : index
    %c0_30 = arith.constant 0 : index
    %51 = vector.load %arg11[%c20, %c0_30] : memref<64x32xf32, #tpu.memory_space<vmem>>, vector<1x32xf32>
    tpu.vector_store %arg11[%c20, %c0_30], %50 {strides = array<i32>} : memref<64x32xf32, #tpu.memory_space<vmem>>, vector<1x32xf32>,
    %c13_31 = arith.constant 13 : index
    %52 = memref.load %arg1[%c13_31] : memref<32xi32, #tpu.memory_space<smem>>
    %53 = arith.index_cast %52 : i32 to index
    %c0_32 = arith.constant 0 : index
    %54 = vector.load %arg2[%53, %c0_32] : memref<50x32xf32, #tpu.memory_space<vmem>>, vector<1x32xf32>
    %c21 = arith.constant 21 : index
    %c0_33 = arith.constant 0 : index
    %55 = vector.load %arg11[%c21, %c0_33] : memref<64x32xf32, #tpu.memory_space<vmem>>, vector<1x32xf32>
    tpu.vector_store %arg11[%c21, %c0_33], %54 {strides = array<i32>} : memref<64x32xf32, #tpu.memory_space<vmem>>, vector<1x32xf32>,
    %c14_34 = arith.constant 14 : index
    %56 = memref.load %arg1[%c14_34] : memref<32xi32, #tpu.memory_space<smem>>
    %57 = arith.index_cast %56 : i32 to index
    %c0_35 = arith.constant 0 : index
    %58 = vector.load %arg2[%57, %c0_35] : memref<50x32xf32, #tpu.memory_space<vmem>>, vector<1x32xf32>
    %c22 = arith.constant 22 : index
    %c0_36 = arith.constant 0 : index
    %59 = vector.load %arg11[%c22, %c0_36] : memref<64x32xf32, #tpu.memory_space<vmem>>, vector<1x32xf32>
    tpu.vector_store %arg11[%c22, %c0_36], %58 {strides = array<i32>} : memref<64x32xf32, #tpu.memory_space<vmem>>, vector<1x32xf32>,
    %c15_37 = arith.constant 15 : index
    %60 = memref.load %arg1[%c15_37] : memref<32xi32, #tpu.memory_space<smem>>
    %61 = arith.index_cast %60 : i32 to index
    %c0_38 = arith.constant 0 : index
    %62 = vector.load %arg2[%61, %c0_38] : memref<50x32xf32, #tpu.memory_space<vmem>>, vector<1x32xf32>
    %c23 = arith.constant 23 : index
    %c0_39 = arith.constant 0 : index
    %63 = vector.load %arg11[%c23, %c0_39] : memref<64x32xf32, #tpu.memory_space<vmem>>, vector<1x32xf32>
    tpu.vector_store %arg11[%c23, %c0_39], %62 {strides = array<i32>} : memref<64x32xf32, #tpu.memory_space<vmem>>, vector<1x32xf32>,
    %c16_40 = arith.constant 16 : index
    %64 = memref.load %arg1[%c16_40] : memref<32xi32, #tpu.memory_space<smem>>
    %65 = arith.index_cast %64 : i32 to index
    %c0_41 = arith.constant 0 : index
    %66 = vector.load %arg2[%65, %c0_41] : memref<50x32xf32, #tpu.memory_space<vmem>>, vector<1x32xf32>
    %c40 = arith.constant 40 : index
    %c0_42 = arith.constant 0 : index
    %67 = vector.load %arg11[%c40, %c0_42] : memref<64x32xf32, #tpu.memory_space<vmem>>, vector<1x32xf32>
    tpu.vector_store %arg11[%c40, %c0_42], %66 {strides = array<i32>} : memref<64x32xf32, #tpu.memory_space<vmem>>, vector<1x32xf32>,
    %c17_43 = arith.constant 17 : index
    %68 = memref.load %arg1[%c17_43] : memref<32xi32, #tpu.memory_space<smem>>
    %69 = arith.index_cast %68 : i32 to index
    %c0_44 = arith.constant 0 : index
    %70 = vector.load %arg2[%69, %c0_44] : memref<50x32xf32, #tpu.memory_space<vmem>>, vector<1x32xf32>
    %c41 = arith.constant 41 : index
    %c0_45 = arith.constant 0 : index
    %71 = vector.load %arg11[%c41, %c0_45] : memref<64x32xf32, #tpu.memory_space<vmem>>, vector<1x32xf32>
    tpu.vector_store %arg11[%c41, %c0_45], %70 {strides = array<i32>} : memref<64x32xf32, #tpu.memory_space<vmem>>, vector<1x32xf32>,
    %c18_46 = arith.constant 18 : index
    %72 = memref.load %arg1[%c18_46] : memref<32xi32, #tpu.memory_space<smem>>
    %73 = arith.index_cast %72 : i32 to index
    %c0_47 = arith.constant 0 : index
    %74 = vector.load %arg2[%73, %c0_47] : memref<50x32xf32, #tpu.memory_space<vmem>>, vector<1x32xf32>
    %c42 = arith.constant 42 : index
    %c0_48 = arith.constant 0 : index
    %75 = vector.load %arg11[%c42, %c0_48] : memref<64x32xf32, #tpu.memory_space<vmem>>, vector<1x32xf32>
    tpu.vector_store %arg11[%c42, %c0_48], %74 {strides = array<i32>} : memref<64x32xf32, #tpu.memory_space<vmem>>, vector<1x32xf32>,
    %c19_49 = arith.constant 19 : index
    %76 = memref.load %arg1[%c19_49] : memref<32xi32, #tpu.memory_space<smem>>
    %77 = arith.index_cast %76 : i32 to index
    %c0_50 = arith.constant 0 : index
    %78 = vector.load %arg2[%77, %c0_50] : memref<50x32xf32, #tpu.memory_space<vmem>>, vector<1x32xf32>
    %c43 = arith.constant 43 : index
    %c0_51 = arith.constant 0 : index
    %79 = vector.load %arg11[%c43, %c0_51] : memref<64x32xf32, #tpu.memory_space<vmem>>, vector<1x32xf32>
    tpu.vector_store %arg11[%c43, %c0_51], %78 {strides = array<i32>} : memref<64x32xf32, #tpu.memory_space<vmem>>, vector<1x32xf32>,
    %c20_52 = arith.constant 20 : index
    %80 = memref.load %arg1[%c20_52] : memref<32xi32, #tpu.memory_space<smem>>
    %81 = arith.index_cast %80 : i32 to index
    %c0_53 = arith.constant 0 : index
    %82 = vector.load %arg2[%81, %c0_53] : memref<50x32xf32, #tpu.memory_space<vmem>>, vector<1x32xf32>
    %c44 = arith.constant 44 : index
    %c0_54 = arith.constant 0 : index
    %83 = vector.load %arg11[%c44, %c0_54] : memref<64x32xf32, #tpu.memory_space<vmem>>, vector<1x32xf32>
    tpu.vector_store %arg11[%c44, %c0_54], %82 {strides = array<i32>} : memref<64x32xf32, #tpu.memory_space<vmem>>, vector<1x32xf32>,
    %c21_55 = arith.constant 21 : index
    %84 = memref.load %arg1[%c21_55] : memref<32xi32, #tpu.memory_space<smem>>
    %85 = arith.index_cast %84 : i32 to index
    %c0_56 = arith.constant 0 : index
    %86 = vector.load %arg2[%85, %c0_56] : memref<50x32xf32, #tpu.memory_space<vmem>>, vector<1x32xf32>
    %c45 = arith.constant 45 : index
    %c0_57 = arith.constant 0 : index
    %87 = vector.load %arg11[%c45, %c0_57] : memref<64x32xf32, #tpu.memory_space<vmem>>, vector<1x32xf32>
    tpu.vector_store %arg11[%c45, %c0_57], %86 {strides = array<i32>} : memref<64x32xf32, #tpu.memory_space<vmem>>, vector<1x32xf32>,
    %c22_58 = arith.constant 22 : index
    %88 = memref.load %arg1[%c22_58] : memref<32xi32, #tpu.memory_space<smem>>
    %89 = arith.index_cast %88 : i32 to index
    %c0_59 = arith.constant 0 : index
    %90 = vector.load %arg2[%89, %c0_59] : memref<50x32xf32, #tpu.memory_space<vmem>>, vector<1x32xf32>
    %c46 = arith.constant 46 : index
    %c0_60 = arith.constant 0 : index
    %91 = vector.load %arg11[%c46, %c0_60] : memref<64x32xf32, #tpu.memory_space<vmem>>, vector<1x32xf32>
    tpu.vector_store %arg11[%c46, %c0_60], %90 {strides = array<i32>} : memref<64x32xf32, #tpu.memory_space<vmem>>, vector<1x32xf32>,
    %c23_61 = arith.constant 23 : index
    %92 = memref.load %arg1[%c23_61] : memref<32xi32, #tpu.memory_space<smem>>
    %93 = arith.index_cast %92 : i32 to index
    %c0_62 = arith.constant 0 : index
    %94 = vector.load %arg2[%93, %c0_62] : memref<50x32xf32, #tpu.memory_space<vmem>>, vector<1x32xf32>
    %c47 = arith.constant 47 : index
    %c0_63 = arith.constant 0 : index
    %95 = vector.load %arg11[%c47, %c0_63] : memref<64x32xf32, #tpu.memory_space<vmem>>, vector<1x32xf32>
    tpu.vector_store %arg11[%c47, %c0_63], %94 {strides = array<i32>} : memref<64x32xf32, #tpu.memory_space<vmem>>, vector<1x32xf32>,
    %c24 = arith.constant 24 : index
    %96 = memref.load %arg1[%c24] : memref<32xi32, #tpu.memory_space<smem>>
    %97 = arith.index_cast %96 : i32 to index
    %c0_64 = arith.constant 0 : index
    %98 = vector.load %arg2[%97, %c0_64] : memref<50x32xf32, #tpu.memory_space<vmem>>, vector<1x32xf32>
    %c48 = arith.constant 48 : index
    %c0_65 = arith.constant 0 : index
    %99 = vector.load %arg11[%c48, %c0_65] : memref<64x32xf32, #tpu.memory_space<vmem>>, vector<1x32xf32>
    tpu.vector_store %arg11[%c48, %c0_65], %98 {strides = array<i32>} : memref<64x32xf32, #tpu.memory_space<vmem>>, vector<1x32xf32>,
    %c25 = arith.constant 25 : index
    %100 = memref.load %arg1[%c25] : memref<32xi32, #tpu.memory_space<smem>>
    %101 = arith.index_cast %100 : i32 to index
    %c0_66 = arith.constant 0 : index
    %102 = vector.load %arg2[%101, %c0_66] : memref<50x32xf32, #tpu.memory_space<vmem>>, vector<1x32xf32>
    %c49 = arith.constant 49 : index
    %c0_67 = arith.constant 0 : index
    %103 = vector.load %arg11[%c49, %c0_67] : memref<64x32xf32, #tpu.memory_space<vmem>>, vector<1x32xf32>
    tpu.vector_store %arg11[%c49, %c0_67], %102 {strides = array<i32>} : memref<64x32xf32, #tpu.memory_space<vmem>>, vector<1x32xf32>,
    %c26 = arith.constant 26 : index
    %104 = memref.load %arg1[%c26] : memref<32xi32, #tpu.memory_space<smem>>
    %105 = arith.index_cast %104 : i32 to index
    %c0_68 = arith.constant 0 : index
    %106 = vector.load %arg2[%105, %c0_68] : memref<50x32xf32, #tpu.memory_space<vmem>>, vector<1x32xf32>
    %c50 = arith.constant 50 : index
    %c0_69 = arith.constant 0 : index
    %107 = vector.load %arg11[%c50, %c0_69] : memref<64x32xf32, #tpu.memory_space<vmem>>, vector<1x32xf32>
    tpu.vector_store %arg11[%c50, %c0_69], %106 {strides = array<i32>} : memref<64x32xf32, #tpu.memory_space<vmem>>, vector<1x32xf32>,
    %c27 = arith.constant 27 : index
    %108 = memref.load %arg1[%c27] : memref<32xi32, #tpu.memory_space<smem>>
    %109 = arith.index_cast %108 : i32 to index
    %c0_70 = arith.constant 0 : index
    %110 = vector.load %arg2[%109, %c0_70] : memref<50x32xf32, #tpu.memory_space<vmem>>, vector<1x32xf32>
    %c51 = arith.constant 51 : index
    %c0_71 = arith.constant 0 : index
    %111 = vector.load %arg11[%c51, %c0_71] : memref<64x32xf32, #tpu.memory_space<vmem>>, vector<1x32xf32>
    tpu.vector_store %arg11[%c51, %c0_71], %110 {strides = array<i32>} : memref<64x32xf32, #tpu.memory_space<vmem>>, vector<1x32xf32>,
    %c28 = arith.constant 28 : index
    %112 = memref.load %arg1[%c28] : memref<32xi32, #tpu.memory_space<smem>>
    %113 = arith.index_cast %112 : i32 to index
    %c0_72 = arith.constant 0 : index
    %114 = vector.load %arg2[%113, %c0_72] : memref<50x32xf32, #tpu.memory_space<vmem>>, vector<1x32xf32>
    %c52 = arith.constant 52 : index
    %c0_73 = arith.constant 0 : index
    %115 = vector.load %arg11[%c52, %c0_73] : memref<64x32xf32, #tpu.memory_space<vmem>>, vector<1x32xf32>
    tpu.vector_store %arg11[%c52, %c0_73], %114 {strides = array<i32>} : memref<64x32xf32, #tpu.memory_space<vmem>>, vector<1x32xf32>,
    %c29 = arith.constant 29 : index
    %116 = memref.load %arg1[%c29] : memref<32xi32, #tpu.memory_space<smem>>
    %117 = arith.index_cast %116 : i32 to index
    %c0_74 = arith.constant 0 : index
    %118 = vector.load %arg2[%117, %c0_74] : memref<50x32xf32, #tpu.memory_space<vmem>>, vector<1x32xf32>
    %c53 = arith.constant 53 : index
    %c0_75 = arith.constant 0 : index
    %119 = vector.load %arg11[%c53, %c0_75] : memref<64x32xf32, #tpu.memory_space<vmem>>, vector<1x32xf32>
    tpu.vector_store %arg11[%c53, %c0_75], %118 {strides = array<i32>} : memref<64x32xf32, #tpu.memory_space<vmem>>, vector<1x32xf32>,
    %c30 = arith.constant 30 : index
    %120 = memref.load %arg1[%c30] : memref<32xi32, #tpu.memory_space<smem>>
    %121 = arith.index_cast %120 : i32 to index
    %c0_76 = arith.constant 0 : index
    %122 = vector.load %arg2[%121, %c0_76] : memref<50x32xf32, #tpu.memory_space<vmem>>, vector<1x32xf32>
    %c54 = arith.constant 54 : index
    %c0_77 = arith.constant 0 : index
    %123 = vector.load %arg11[%c54, %c0_77] : memref<64x32xf32, #tpu.memory_space<vmem>>, vector<1x32xf32>
    tpu.vector_store %arg11[%c54, %c0_77], %122 {strides = array<i32>} : memref<64x32xf32, #tpu.memory_space<vmem>>, vector<1x32xf32>,
    %c31 = arith.constant 31 : index
    %124 = memref.load %arg1[%c31] : memref<32xi32, #tpu.memory_space<smem>>
    %125 = arith.index_cast %124 : i32 to index
    %c0_78 = arith.constant 0 : index
    %126 = vector.load %arg2[%125, %c0_78] : memref<50x32xf32, #tpu.memory_space<vmem>>, vector<1x32xf32>
    %c55 = arith.constant 55 : index
    %c0_79 = arith.constant 0 : index
    %127 = vector.load %arg11[%c55, %c0_79] : memref<64x32xf32, #tpu.memory_space<vmem>>, vector<1x32xf32>
    tpu.vector_store %arg11[%c55, %c0_79], %126 {strides = array<i32>} : memref<64x32xf32, #tpu.memory_space<vmem>>, vector<1x32xf32>,
    %128 = tpu.iota {dimensions = array<i32: 0>} : vector<64x1xi32>
    %c8_i32 = arith.constant 8 : i32
    %129 = vector.broadcast %c8_i32 : i32 to vector<64x1xi32>
    %130 = arith.cmpi sge, %128, %129 : vector<64x1xi32>
    %c24_i32 = arith.constant 24 : i32
    %131 = vector.broadcast %c24_i32 : i32 to vector<64x1xi32>
    %132 = arith.cmpi slt, %128, %131 : vector<64x1xi32>
    %133 = arith.andi %130, %132 : vector<64x1xi1>
    %c40_i32 = arith.constant 40 : i32
    %134 = vector.broadcast %c40_i32 : i32 to vector<64x1xi32>
    %135 = arith.cmpi sge, %128, %134 : vector<64x1xi32>
    %c56_i32 = arith.constant 56 : i32
    %136 = vector.broadcast %c56_i32 : i32 to vector<64x1xi32>
    %137 = arith.cmpi slt, %128, %136 : vector<64x1xi32>
    %138 = arith.andi %135, %137 : vector<64x1xi1>
    %139 = arith.ori %133, %138 : vector<64x1xi1>
    %140 = arith.extui %139 : vector<64x1xi1> to vector<64x1xi32>
    %141 = arith.sitofp %140 : vector<64x1xi32> to vector<64x1xf32>
    %c0_80 = arith.constant 0 : index
    %c0_81 = arith.constant 0 : index
    %142 = vector.load %arg5[%c0_80, %c0_81] : memref<8x8xf32, #tpu.memory_space<vmem>>, vector<8x8xf32>
    %c0_82 = arith.constant 0 : index
    %c0_83 = arith.constant 0 : index
    %143 = vector.load %arg6[%c0_82, %c0_83] : memref<8x16xf32, #tpu.memory_space<vmem>>, vector<8x16xf32>
    %c64 = arith.constant 64 : index
    %c0_84 = arith.constant 0 : index
    %144 = vector.load %arg4[%c64, %c0_84] : memref<160x64xf32, #tpu.memory_space<vmem>>, vector<16x16xf32>
    %c145 = arith.constant 145 : index
    %c0_85 = arith.constant 0 : index
    %145 = vector.load %arg4[%c145, %c0_85] : memref<160x64xf32, #tpu.memory_space<vmem>>, vector<1x16xf32>
    %c80 = arith.constant 80 : index
    %c0_86 = arith.constant 0 : index
    %146 = vector.load %arg4[%c80, %c0_86] : memref<160x64xf32, #tpu.memory_space<vmem>>, vector<16x16xf32>
    %c146 = arith.constant 146 : index
    %c0_87 = arith.constant 0 : index
    %147 = vector.load %arg4[%c146, %c0_87] : memref<160x64xf32, #tpu.memory_space<vmem>>, vector<1x16xf32>
    %cst = arith.constant dense<0.000000e+00> : vector<8x16xf32>
    %148 = tpu.matmul %142, %143, %cst {dimension_numbers = #tpu.dot_dimension_numbers<[1], [0], [0], [1], [0, 0, 1, 1], [], []>} : vector<8x8xf32>, vector<8x16xf32>, vector<8x16xf32> -> vector<8x16xf32>
    %cst_88 = arith.constant dense<0.000000e+00> : vector<8x16xf32>
    %149 = tpu.matmul %148, %144, %cst_88 {dimension_numbers = #tpu.dot_dimension_numbers<[1], [0], [0], [1], [0, 0, 1, 1], [], []>} : vector<8x16xf32>, vector<16x16xf32>, vector<8x16xf32> -> vector<8x16xf32>
    %150 = vector.broadcast %145 : vector<1x16xf32> to vector<8x16xf32>
    %151 = arith.addf %149, %150 : vector<8x16xf32>
    %cst_89 = arith.constant 0.000000e+00 : f32
    %152 = vector.broadcast %cst_89 : f32 to vector<8x16xf32>
    %153 = arith.maximumf %151, %152 : vector<8x16xf32>
    %cst_90 = arith.constant dense<0.000000e+00> : vector<8x16xf32>
    %154 = tpu.matmul %142, %153, %cst_90 {dimension_numbers = #tpu.dot_dimension_numbers<[1], [0], [0], [1], [0, 0, 1, 1], [], []>} : vector<8x8xf32>, vector<8x16xf32>, vector<8x16xf32> -> vector<8x16xf32>
    %cst_91 = arith.constant dense<0.000000e+00> : vector<8x16xf32>
    %155 = tpu.matmul %154, %146, %cst_91 {dimension_numbers = #tpu.dot_dimension_numbers<[1], [0], [0], [1], [0, 0, 1, 1], [], []>} : vector<8x16xf32>, vector<16x16xf32>, vector<8x16xf32> -> vector<8x16xf32>
    %156 = vector.broadcast %147 : vector<1x16xf32> to vector<8x16xf32>
    %157 = arith.addf %155, %156 : vector<8x16xf32>
    %158 = tpu.concatenate %157, %143 in 1 : vector<8x16xf32>, vector<8x16xf32> -> vector<8x32xf32>
    %c0_92 = arith.constant 0 : index
    %c0_93 = arith.constant 0 : index
    %159 = vector.load %arg4[%c0_92, %c0_93] : memref<160x64xf32, #tpu.memory_space<vmem>>, vector<64x32xf32>
    %c144 = arith.constant 144 : index
    %c0_94 = arith.constant 0 : index
    %160 = vector.load %arg4[%c144, %c0_94] : memref<160x64xf32, #tpu.memory_space<vmem>>, vector<1x32xf32>
    %cst_95 = arith.constant dense<0.000000e+00> : vector<64x8xf32>
    %161 = tpu.matmul %159, %158, %cst_95 {dimension_numbers = #tpu.dot_dimension_numbers<[1], [1], [0], [0], [0, 0, 1, 0], [], []>} : vector<64x32xf32>, vector<8x32xf32>, vector<64x8xf32> -> vector<64x8xf32>
    %cst_96 = arith.constant dense<0.000000e+00> : vector<1x8xf32>
    %162 = tpu.matmul %160, %158, %cst_96 {dimension_numbers = #tpu.dot_dimension_numbers<[1], [1], [0], [0], [0, 0, 1, 0], [], []>} : vector<1x32xf32>, vector<8x32xf32>, vector<1x8xf32> -> vector<1x8xf32>
    %c0_97 = arith.constant 0 : index
    %c0_98 = arith.constant 0 : index
    %163 = vector.load %arg11[%c0_97, %c0_98] : memref<64x32xf32, #tpu.memory_space<vmem>>, vector<64x32xf32>
    %164 = vector.broadcast %141 : vector<64x1xf32> to vector<64x32xf32>
    %165 = arith.mulf %163, %164 : vector<64x32xf32>
    %c1_i32 = arith.constant 1 : i32
    %166 = tpu.dynamic_rotate %165 by %c1_i32 dim 0 : vector<64x32xf32>, i32 -> vector<64x32xf32>
    %167 = arith.truncf %166 : vector<64x32xf32> to vector<64x32xbf16>
    %168 = arith.truncf %165 : vector<64x32xf32> to vector<64x32xbf16>
    %c63_i32 = arith.constant 63 : i32
    %169 = tpu.dynamic_rotate %165 by %c63_i32 dim 0 : vector<64x32xf32>, i32 -> vector<64x32xf32>
    %170 = arith.truncf %169 : vector<64x32xf32> to vector<64x32xbf16>
    %171 = tpu.concatenate %167, %168, %170 in 1 : vector<64x32xbf16>, vector<64x32xbf16>, vector<64x32xbf16> -> vector<64x96xbf16>
    %c0_99 = arith.constant 0 : index
    %c0_100 = arith.constant 0 : index
    %172 = vector.load %arg3[%c0_99, %c0_100] : memref<1056x64xbf16, #tpu.memory_space<vmem>>, vector<96x64xbf16>
    %cst_101 = arith.constant dense<0.000000e+00> : vector<64x64xf32>
    %173 = tpu.matmul %171, %172, %cst_101 {dimension_numbers = #tpu.dot_dimension_numbers<[1], [0], [0], [1], [0, 0, 1, 1], [], []>} : vector<64x96xbf16>, vector<96x64xbf16>, vector<64x64xf32> -> vector<64x64xf32>
    %c151 = arith.constant 151 : index
    %c0_102 = arith.constant 0 : index
    %174 = vector.load %arg4[%c151, %c0_102] : memref<160x64xf32, #tpu.memory_space<vmem>>, vector<1x64xf32>
    %175 = vector.broadcast %174 : vector<1x64xf32> to vector<64x64xf32>
    %176 = arith.addf %173, %175 : vector<64x64xf32>
    %177 = math.tanh %176 : vector<64x64xf32>
    %178 = vector.broadcast %141 : vector<64x1xf32> to vector<64x64xf32>
    %179 = arith.mulf %177, %178 : vector<64x64xf32>
    %c2_i32 = arith.constant 2 : i32
    %180 = tpu.dynamic_rotate %179 by %c2_i32 dim 0 : vector<64x64xf32>, i32 -> vector<64x64xf32>
    %181 = arith.truncf %180 : vector<64x64xf32> to vector<64x64xbf16>
    %c1_i32_103 = arith.constant 1 : i32
    %182 = tpu.dynamic_rotate %179 by %c1_i32_103 dim 0 : vector<64x64xf32>, i32 -> vector<64x64xf32>
    %183 = arith.truncf %182 : vector<64x64xf32> to vector<64x64xbf16>
    %184 = arith.truncf %179 : vector<64x64xf32> to vector<64x64xbf16>
    %c63_i32_104 = arith.constant 63 : i32
    %185 = tpu.dynamic_rotate %179 by %c63_i32_104 dim 0 : vector<64x64xf32>, i32 -> vector<64x64xf32>
    %186 = arith.truncf %185 : vector<64x64xf32> to vector<64x64xbf16>
    %c62_i32 = arith.constant 62 : i32
    %187 = tpu.dynamic_rotate %179 by %c62_i32 dim 0 : vector<64x64xf32>, i32 -> vector<64x64xf32>
    %188 = arith.truncf %187 : vector<64x64xf32> to vector<64x64xbf16>
    %189 = tpu.concatenate %181, %183, %184, %186, %188 in 1 : vector<64x64xbf16>, vector<64x64xbf16>, vector<64x64xbf16>, vector<64x64xbf16>, vector<64x64xbf16> -> vector<64x320xbf16>
    %c96 = arith.constant 96 : index
    %c0_105 = arith.constant 0 : index
    %190 = vector.load %arg3[%c96, %c0_105] : memref<1056x64xbf16, #tpu.memory_space<vmem>>, vector<320x64xbf16>
    %cst_106 = arith.constant dense<0.000000e+00> : vector<64x64xf32>
    %191 = tpu.matmul %189, %190, %cst_106 {dimension_numbers = #tpu.dot_dimension_numbers<[1], [0], [0], [1], [0, 0, 1, 1], [], []>} : vector<64x320xbf16>, vector<320x64xbf16>, vector<64x64xf32> -> vector<64x64xf32>
    %c152 = arith.constant 152 : index
    %c0_107 = arith.constant 0 : index
    %192 = vector.load %arg4[%c152, %c0_107] : memref<160x64xf32, #tpu.memory_space<vmem>>, vector<1x64xf32>
    %193 = vector.broadcast %192 : vector<1x64xf32> to vector<64x64xf32>
    %194 = arith.addf %191, %193 : vector<64x64xf32>
    %195 = math.tanh %194 : vector<64x64xf32>
    %196 = vector.broadcast %141 : vector<64x1xf32> to vector<64x64xf32>
    %197 = arith.mulf %195, %196 : vector<64x64xf32>
    %c4_i32 = arith.constant 4 : i32
    %198 = tpu.dynamic_rotate %197 by %c4_i32 dim 0 : vector<64x64xf32>, i32 -> vector<64x64xf32>
    %199 = arith.truncf %198 : vector<64x64xf32> to vector<64x64xbf16>
    %c2_i32_108 = arith.constant 2 : i32
    %200 = tpu.dynamic_rotate %197 by %c2_i32_108 dim 0 : vector<64x64xf32>, i32 -> vector<64x64xf32>
    %201 = arith.truncf %200 : vector<64x64xf32> to vector<64x64xbf16>
    %202 = arith.truncf %197 : vector<64x64xf32> to vector<64x64xbf16>
    %c62_i32_109 = arith.constant 62 : i32
    %203 = tpu.dynamic_rotate %197 by %c62_i32_109 dim 0 : vector<64x64xf32>, i32 -> vector<64x64xf32>
    %204 = arith.truncf %203 : vector<64x64xf32> to vector<64x64xbf16>
    %c60_i32 = arith.constant 60 : i32
    %205 = tpu.dynamic_rotate %197 by %c60_i32 dim 0 : vector<64x64xf32>, i32 -> vector<64x64xf32>
    %206 = arith.truncf %205 : vector<64x64xf32> to vector<64x64xbf16>
    %207 = tpu.concatenate %199, %201, %202, %204, %206 in 1 : vector<64x64xbf16>, vector<64x64xbf16>, vector<64x64xbf16>, vector<64x64xbf16>, vector<64x64xbf16> -> vector<64x320xbf16>
    %c416 = arith.constant 416 : index
    %c0_110 = arith.constant 0 : index
    %208 = vector.load %arg3[%c416, %c0_110] : memref<1056x64xbf16, #tpu.memory_space<vmem>>, vector<320x64xbf16>
    %cst_111 = arith.constant dense<0.000000e+00> : vector<64x64xf32>
    %209 = tpu.matmul %207, %208, %cst_111 {dimension_numbers = #tpu.dot_dimension_numbers<[1], [0], [0], [1], [0, 0, 1, 1], [], []>} : vector<64x320xbf16>, vector<320x64xbf16>, vector<64x64xf32> -> vector<64x64xf32>
    %c153 = arith.constant 153 : index
    %c0_112 = arith.constant 0 : index
    %210 = vector.load %arg4[%c153, %c0_112] : memref<160x64xf32, #tpu.memory_space<vmem>>, vector<1x64xf32>
    %211 = vector.broadcast %210 : vector<1x64xf32> to vector<64x64xf32>
    %212 = arith.addf %209, %211 : vector<64x64xf32>
    %213 = math.tanh %212 : vector<64x64xf32>
    %214 = vector.broadcast %141 : vector<64x1xf32> to vector<64x64xf32>
    %215 = arith.mulf %213, %214 : vector<64x64xf32>
    %c6_i32 = arith.constant 6 : i32
    %216 = tpu.dynamic_rotate %215 by %c6_i32 dim 0 : vector<64x64xf32>, i32 -> vector<64x64xf32>
    %217 = arith.truncf %216 : vector<64x64xf32> to vector<64x64xbf16>
    %c3_i32 = arith.constant 3 : i32
    %218 = tpu.dynamic_rotate %215 by %c3_i32 dim 0 : vector<64x64xf32>, i32 -> vector<64x64xf32>
    %219 = arith.truncf %218 : vector<64x64xf32> to vector<64x64xbf16>
    %220 = arith.truncf %215 : vector<64x64xf32> to vector<64x64xbf16>
    %c61_i32 = arith.constant 61 : i32
    %221 = tpu.dynamic_rotate %215 by %c61_i32 dim 0 : vector<64x64xf32>, i32 -> vector<64x64xf32>
    %222 = arith.truncf %221 : vector<64x64xf32> to vector<64x64xbf16>
    %c58_i32 = arith.constant 58 : i32
    %223 = tpu.dynamic_rotate %215 by %c58_i32 dim 0 : vector<64x64xf32>, i32 -> vector<64x64xf32>
    %224 = arith.truncf %223 : vector<64x64xf32> to vector<64x64xbf16>
    %225 = tpu.concatenate %217, %219, %220, %222, %224 in 1 : vector<64x64xbf16>, vector<64x64xbf16>, vector<64x64xbf16>, vector<64x64xbf16>, vector<64x64xbf16> -> vector<64x320xbf16>
    %c736 = arith.constant 736 : index
    %c0_113 = arith.constant 0 : index
    %226 = vector.load %arg3[%c736, %c0_113] : memref<1056x64xbf16, #tpu.memory_space<vmem>>, vector<320x64xbf16>
    %cst_114 = arith.constant dense<0.000000e+00> : vector<64x64xf32>
    %227 = tpu.matmul %225, %226, %cst_114 {dimension_numbers = #tpu.dot_dimension_numbers<[1], [0], [0], [1], [0, 0, 1, 1], [], []>} : vector<64x320xbf16>, vector<320x64xbf16>, vector<64x64xf32> -> vector<64x64xf32>
    %c154 = arith.constant 154 : index
    %c0_115 = arith.constant 0 : index
    %228 = vector.load %arg4[%c154, %c0_115] : memref<160x64xf32, #tpu.memory_space<vmem>>, vector<1x64xf32>
    %229 = vector.broadcast %228 : vector<1x64xf32> to vector<64x64xf32>
    %230 = arith.addf %227, %229 : vector<64x64xf32>
    %231 = arith.addf %230, %179 : vector<64x64xf32>
    %232 = math.tanh %231 : vector<64x64xf32>
    %cst_116 = arith.constant dense<0.000000e+00> : vector<64x8xf32>
    %233 = tpu.matmul %232, %161, %cst_116 {dimension_numbers = #tpu.dot_dimension_numbers<[1], [0], [0], [1], [0, 0, 1, 1], [], []>} : vector<64x64xf32>, vector<64x8xf32>, vector<64x8xf32> -> vector<64x8xf32>
    %234 = vector.broadcast %162 : vector<1x8xf32> to vector<64x8xf32>
    %235 = arith.addf %233, %234 : vector<64x8xf32>
    %c0_117 = arith.constant 0 : index
    %c0_118 = arith.constant 0 : index
    %236 = vector.load %arg7[%c0_117, %c0_118] : memref<2x8xf32, #tpu.memory_space<vmem>>, vector<2x8xf32>
    %237 = vector.extract_strided_slice %235 {offsets = [8, 0], sizes = [16, 8], strides = [1, 1]} : vector<64x8xf32> to vector<16x8xf32>
    %238 = vector.extract_strided_slice %236 {offsets = [0, 0], sizes = [1, 8], strides = [1, 1]} : vector<2x8xf32> to vector<1x8xf32>
    %239 = vector.broadcast %238 : vector<1x8xf32> to vector<16x8xf32>
    %240 = arith.mulf %237, %239 : vector<16x8xf32>
    %cst_119 = arith.constant dense<0xFF800000> : vector<8xf32>
    %241 = vector.multi_reduction <maximumf>, %240, %cst_119 [0] : vector<16x8xf32> to vector<8xf32>
    %242 = vector.shape_cast %241 : vector<8xf32> to vector<1x8xf32>
    %243 = vector.broadcast %242 : vector<1x8xf32> to vector<16x8xf32>
    %244 = arith.subf %240, %243 : vector<16x8xf32>
    %245 = math.exp %244 : vector<16x8xf32>
    %cst_120 = arith.constant dense<0.000000e+00> : vector<8xf32>
    %246 = vector.multi_reduction <add>, %245, %cst_120 [0] : vector<16x8xf32> to vector<8xf32>
    %247 = vector.shape_cast %246 : vector<8xf32> to vector<1x8xf32>
    %248 = vector.broadcast %247 : vector<1x8xf32> to vector<16x8xf32>
    %249 = arith.divf %245, %248 : vector<16x8xf32>
    %250 = arith.mulf %249, %237 : vector<16x8xf32>
    %cst_121 = arith.constant dense<0.000000e+00> : vector<8xf32>
    %251 = vector.multi_reduction <add>, %250, %cst_121 [0] : vector<16x8xf32> to vector<8xf32>
    %252 = vector.shape_cast %251 : vector<8xf32> to vector<1x8xf32>
    %253 = vector.extract_strided_slice %235 {offsets = [40, 0], sizes = [16, 8], strides = [1, 1]} : vector<64x8xf32> to vector<16x8xf32>
    %254 = vector.extract_strided_slice %236 {offsets = [1, 0], sizes = [1, 8], strides = [1, 1]} : vector<2x8xf32> to vector<1x8xf32>
    %255 = vector.broadcast %254 : vector<1x8xf32> to vector<16x8xf32>
    %256 = arith.mulf %253, %255 : vector<16x8xf32>
    %cst_122 = arith.constant dense<0xFF800000> : vector<8xf32>
    %257 = vector.multi_reduction <maximumf>, %256, %cst_122 [0] : vector<16x8xf32> to vector<8xf32>
    %258 = vector.shape_cast %257 : vector<8xf32> to vector<1x8xf32>
    %259 = vector.broadcast %258 : vector<1x8xf32> to vector<16x8xf32>
    %260 = arith.subf %256, %259 : vector<16x8xf32>
    %261 = math.exp %260 : vector<16x8xf32>
    %cst_123 = arith.constant dense<0.000000e+00> : vector<8xf32>
    %262 = vector.multi_reduction <add>, %261, %cst_123 [0] : vector<16x8xf32> to vector<8xf32>
    %263 = vector.shape_cast %262 : vector<8xf32> to vector<1x8xf32>
    %264 = vector.broadcast %263 : vector<1x8xf32> to vector<16x8xf32>
    %265 = arith.divf %261, %264 : vector<16x8xf32>
    %266 = arith.mulf %265, %253 : vector<16x8xf32>
    %cst_124 = arith.constant dense<0.000000e+00> : vector<8xf32>
    %267 = vector.multi_reduction <add>, %266, %cst_124 [0] : vector<16x8xf32> to vector<8xf32>
    %268 = vector.shape_cast %267 : vector<8xf32> to vector<1x8xf32>
    %269 = tpu.concatenate %252, %268 in 0 : vector<1x8xf32>, vector<1x8xf32> -> vector<2x8xf32>
    %cst_125 = arith.constant 0.000000e+00 : f32
    %270 = vector.broadcast %cst_125 : f32 to vector<2x8xf32>
    %271 = arith.subf %270, %269 : vector<2x8xf32>
    %272 = math.exp %271 : vector<2x8xf32>
    %cst_126 = arith.constant 1.000000e+00 : f32
    %273 = vector.broadcast %cst_126 : f32 to vector<2x8xf32>
    %274 = arith.addf %273, %272 : vector<2x8xf32>
    %cst_127 = arith.constant 1.000000e+00 : f32
    %275 = vector.broadcast %cst_127 : f32 to vector<2x8xf32>
    %276 = arith.divf %275, %274 : vector<2x8xf32>
    %c96_128 = arith.constant 96 : index
    %c0_129 = arith.constant 0 : index
    %277 = vector.load %arg4[%c96_128, %c0_129] : memref<160x64xf32, #tpu.memory_space<vmem>>, vector<8x16xf32>
    %c147 = arith.constant 147 : index
    %c0_130 = arith.constant 0 : index
    %278 = vector.load %arg4[%c147, %c0_130] : memref<160x64xf32, #tpu.memory_space<vmem>>, vector<1x16xf32>
    %cst_131 = arith.constant dense<0.000000e+00> : vector<2x16xf32>
    %279 = tpu.matmul %276, %277, %cst_131 {dimension_numbers = #tpu.dot_dimension_numbers<[1], [0], [0], [1], [0, 0, 1, 1], [], []>} : vector<2x8xf32>, vector<8x16xf32>, vector<2x16xf32> -> vector<2x16xf32>
    %280 = vector.broadcast %278 : vector<1x16xf32> to vector<2x16xf32>
    %281 = arith.addf %279, %280 : vector<2x16xf32>
    %cst_132 = arith.constant 0.000000e+00 : f32
    %282 = vector.broadcast %cst_132 : f32 to vector<2x16xf32>
    %283 = arith.cmpf ogt, %281, %282 : vector<2x16xf32>
    %cst_133 = arith.constant 0.000000e+00 : f32
    %284 = vector.broadcast %cst_133 : f32 to vector<2x16xf32>
    %285 = arith.minimumf %281, %284 : vector<2x16xf32>
    %286 = math.exp %285 : vector<2x16xf32>
    %cst_134 = arith.constant 1.000000e+00 : f32
    %287 = vector.broadcast %cst_134 : f32 to vector<2x16xf32>
    %288 = arith.subf %286, %287 : vector<2x16xf32>
    %289 = arith.select %283, %281, %288 : vector<2x16xi1>, vector<2x16xf32>
    %c112 = arith.constant 112 : index
    %c0_135 = arith.constant 0 : index
    %290 = vector.load %arg4[%c112, %c0_135] : memref<160x64xf32, #tpu.memory_space<vmem>>, vector<16x8xf32>
    %c149 = arith.constant 149 : index
    %c0_136 = arith.constant 0 : index
    %291 = vector.load %arg4[%c149, %c0_136] : memref<160x64xf32, #tpu.memory_space<vmem>>, vector<1x8xf32>
    %cst_137 = arith.constant dense<0.000000e+00> : vector<2x8xf32>
    %292 = tpu.matmul %289, %290, %cst_137 {dimension_numbers = #tpu.dot_dimension_numbers<[1], [0], [0], [1], [0, 0, 1, 1], [], []>} : vector<2x16xf32>, vector<16x8xf32>, vector<2x8xf32> -> vector<2x8xf32>
    %293 = vector.broadcast %291 : vector<1x8xf32> to vector<2x8xf32>
    %294 = arith.addf %292, %293 : vector<2x8xf32>
    %295 = arith.addf %294, %269 : vector<2x8xf32>
    %cst_138 = arith.constant 0.000000e+00 : f32
    %296 = vector.broadcast %cst_138 : f32 to vector<2x8xf32>
    %297 = arith.subf %296, %295 : vector<2x8xf32>
    %298 = math.exp %297 : vector<2x8xf32>
    %cst_139 = arith.constant 1.000000e+00 : f32
    %299 = vector.broadcast %cst_139 : f32 to vector<2x8xf32>
    %300 = arith.addf %299, %298 : vector<2x8xf32>
    %cst_140 = arith.constant 1.000000e+00 : f32
    %301 = vector.broadcast %cst_140 : f32 to vector<2x8xf32>
    %302 = arith.divf %301, %300 : vector<2x8xf32>
    %c104 = arith.constant 104 : index
    %c0_141 = arith.constant 0 : index
    %303 = vector.load %arg4[%c104, %c0_141] : memref<160x64xf32, #tpu.memory_space<vmem>>, vector<8x16xf32>
    %c148 = arith.constant 148 : index
    %c0_142 = arith.constant 0 : index
    %304 = vector.load %arg4[%c148, %c0_142] : memref<160x64xf32, #tpu.memory_space<vmem>>, vector<1x16xf32>
    %cst_143 = arith.constant dense<0.000000e+00> : vector<2x16xf32>
    %305 = tpu.matmul %302, %303, %cst_143 {dimension_numbers = #tpu.dot_dimension_numbers<[1], [0], [0], [1], [0, 0, 1, 1], [], []>} : vector<2x8xf32>, vector<8x16xf32>, vector<2x16xf32> -> vector<2x16xf32>
    %306 = vector.broadcast %304 : vector<1x16xf32> to vector<2x16xf32>
    %307 = arith.addf %305, %306 : vector<2x16xf32>
    %cst_144 = arith.constant 0.000000e+00 : f32
    %308 = vector.broadcast %cst_144 : f32 to vector<2x16xf32>
    %309 = arith.cmpf ogt, %307, %308 : vector<2x16xf32>
    %cst_145 = arith.constant 0.000000e+00 : f32
    %310 = vector.broadcast %cst_145 : f32 to vector<2x16xf32>
    %311 = arith.minimumf %307, %310 : vector<2x16xf32>
    %312 = math.exp %311 : vector<2x16xf32>
    %cst_146 = arith.constant 1.000000e+00 : f32
    %313 = vector.broadcast %cst_146 : f32 to vector<2x16xf32>
    %314 = arith.subf %312, %313 : vector<2x16xf32>
    %315 = arith.select %309, %307, %314 : vector<2x16xi1>, vector<2x16xf32>
    %c128 = arith.constant 128 : index
    %c0_147 = arith.constant 0 : index
    %316 = vector.load %arg4[%c128, %c0_147] : memref<160x64xf32, #tpu.memory_space<vmem>>, vector<16x8xf32>
    %c150 = arith.constant 150 : index
    %c0_148 = arith.constant 0 : index
    %317 = vector.load %arg4[%c150, %c0_148] : memref<160x64xf32, #tpu.memory_space<vmem>>, vector<1x8xf32>
    %cst_149 = arith.constant dense<0.000000e+00> : vector<2x8xf32>
    %318 = tpu.matmul %315, %316, %cst_149 {dimension_numbers = #tpu.dot_dimension_numbers<[1], [0], [0], [1], [0, 0, 1, 1], [], []>} : vector<2x16xf32>, vector<16x8xf32>, vector<2x8xf32> -> vector<2x8xf32>
    %319 = vector.broadcast %317 : vector<1x8xf32> to vector<2x8xf32>
    %320 = arith.addf %318, %319 : vector<2x8xf32>
    %321 = arith.addf %320, %295 : vector<2x8xf32>
    %c0_150 = arith.constant 0 : index
    %c0_151 = arith.constant 0 : index
    %322 = vector.load %arg9[%c0_150, %c0_151] : memref<2x8xf32, #tpu.memory_space<vmem>>, vector<2x8xf32>
    tpu.vector_store %arg9[%c0_150, %c0_151], %321 {strides = array<i32>} : memref<2x8xf32, #tpu.memory_space<vmem>>, vector<2x8xf32>,
    %c0_152 = arith.constant 0 : index
    %c0_153 = arith.constant 0 : index
    %323 = vector.load %arg8[%c0_152, %c0_153] : memref<2x8xf32, #tpu.memory_space<vmem>>, vector<2x8xf32>
    %cst_154 = arith.constant 0.000000e+00 : f32
    %324 = vector.broadcast %cst_154 : f32 to vector<2x8xf32>
    %325 = arith.maximumf %321, %324 : vector<2x8xf32>
    %326 = arith.mulf %321, %323 : vector<2x8xf32>
    %327 = arith.subf %325, %326 : vector<2x8xf32>
    %328 = math.absf %321 : vector<2x8xf32>
    %cst_155 = arith.constant 0.000000e+00 : f32
    %329 = vector.broadcast %cst_155 : f32 to vector<2x8xf32>
    %330 = arith.subf %329, %328 : vector<2x8xf32>
    %331 = math.exp %330 : vector<2x8xf32>
    %cst_156 = arith.constant 1.000000e+00 : f32
    %332 = vector.broadcast %cst_156 : f32 to vector<2x8xf32>
    %333 = arith.addf %332, %331 : vector<2x8xf32>
    %334 = math.log %333 : vector<2x8xf32>
    %335 = arith.addf %327, %334 : vector<2x8xf32>
    %336 = vector.shape_cast %335 : vector<2x8xf32> to vector<1x2x8xf32>
    %cst_157 = arith.constant dense<0.000000e+00> : vector<1xf32>
    %337 = vector.multi_reduction <add>, %336, %cst_157 [1, 2] : vector<1x2x8xf32> to vector<1xf32>
    %338 = vector.shape_cast %337 : vector<1xf32> to vector<1x1x1xf32>
    %339 = vector.extract %338[0, 0, 0] : f32 from vector<1x1x1xf32>
    %340 = vector.broadcast %339 : f32 to vector<1x1xf32>
    %cst_158 = arith.constant 1.600000e+01 : f32
    %341 = vector.broadcast %cst_158 : f32 to vector<1x1xf32>
    %342 = arith.divf %340, %341 : vector<1x1xf32>
    %c0_159 = arith.constant 0 : index
    %c0_160 = arith.constant 0 : index
    %343 = vector.load %arg10[%c0_159, %c0_160] : memref<1x1xf32, #tpu.memory_space<vmem>>, vector<1x1xf32>
    tpu.vector_store %arg10[%c0_159, %c0_160], %342 {strides = array<i32>} : memref<1x1xf32, #tpu.memory_space<vmem>>, vector<1x1xf32>,
    return
  }
  func.func @transform_0(%arg0: i32, %arg1: memref<32xi32, #tpu.memory_space<smem>>) -> (i32, i32) {
    %c0_i32 = arith.constant 0 : i32
    %c0_i32_0 = arith.constant 0 : i32
    %c0_i32_1 = arith.constant 0 : i32
    return %c0_i32, %c0_i32_0 : i32, i32
  }
  func.func @transform_1(%arg0: i32, %arg1: memref<32xi32, #tpu.memory_space<smem>>) -> (i32, i32) {
    %c0_i32 = arith.constant 0 : i32
    %c0_i32_0 = arith.constant 0 : i32
    %c0_i32_1 = arith.constant 0 : i32
    return %c0_i32, %c0_i32_0 : i32, i32
  }
  func.func @transform_2(%arg0: i32, %arg1: memref<32xi32, #tpu.memory_space<smem>>) -> (i32, i32) {
    %c0_i32 = arith.constant 0 : i32
    %c0_i32_0 = arith.constant 0 : i32
    %c0_i32_1 = arith.constant 0 : i32
    return %c0_i32, %c0_i32_0 : i32, i32
  }
  func.func @transform_3(%arg0: i32, %arg1: memref<32xi32, #tpu.memory_space<smem>>) -> (i32, i32) {
    %c0_i32 = arith.constant 0 : i32
    %c0_i32_0 = arith.constant 0 : i32
    %c0_i32_1 = arith.constant 0 : i32
    return %c0_i32, %c0_i32_0 : i32, i32
  }
  func.func @transform_4(%arg0: i32, %arg1: memref<32xi32, #tpu.memory_space<smem>>) -> (i32, i32) {
    %c0_i32 = arith.constant 0 : i32
    %c0_i32_0 = arith.constant 0 : i32
    %c0_i32_1 = arith.constant 0 : i32
    return %c0_i32, %c0_i32_0 : i32, i32
  }
  func.func @transform_5(%arg0: i32, %arg1: memref<32xi32, #tpu.memory_space<smem>>) -> (i32, i32) {
    %c0_i32 = arith.constant 0 : i32
    %c0_i32_0 = arith.constant 0 : i32
    %c0_i32_1 = arith.constant 0 : i32
    return %c0_i32, %c0_i32_0 : i32, i32
  }
  func.func @transform_6(%arg0: i32, %arg1: memref<32xi32, #tpu.memory_space<smem>>) -> (i32, i32) {
    %c0_i32 = arith.constant 0 : i32
    %c0_i32_0 = arith.constant 0 : i32
    %c0_i32_1 = arith.constant 0 : i32
    return %c0_i32, %c0_i32_0 : i32, i32
  }
  func.func @transform_7(%arg0: i32, %arg1: memref<32xi32, #tpu.memory_space<smem>>) -> (i32, i32) {
    %c0_i32 = arith.constant 0 : i32
    %c0_i32_0 = arith.constant 0 : i32
    %c0_i32_1 = arith.constant 0 : i32
    return %c0_i32, %c0_i32_0 : i32, i32
  }
  func.func @transform_8(%arg0: i32, %arg1: memref<32xi32, #tpu.memory_space<smem>>) -> (i32, i32) {
    %c0_i32 = arith.constant 0 : i32
    %c0_i32_0 = arith.constant 0 : i32
    %c0_i32_1 = arith.constant 0 : i32
    return %c0_i32, %c0_i32_0 : i32, i32
  }
}

</mosaic_0001>

<llo_original>
// kernel: forward.1
$region0: #{forward.1}
  #allocation0 [shape = 'u32[]', space=smem, size = 0x4, offset = 0x4, fixed_abs, tag = 'smem constant byte address 0x4 - core index']
  #allocation1 [shape = 'u32[144,128]{1,0:T(1,128)}', space=vmem, size = 0x12000, scoped, tag = 'internal scratch']
  #allocation2 [shape = 'f32[64,32]{1,0:T(8,128)}', space=vmem, size = 0x8000, scoped, tag = 'scratch operand']
  #allocation3 [shape = 's32[1]{0}', space=sflag, size = 0x4, scoped, tag = 'scoped memory for forward.1']
  #allocation4 [shape = 'u8[512]{0}', space=smem, size = 0x200, scoped, tag = 'prefetched SMEM operand 0']
  %s0 = inlined_call_operand.vmem [shape: s32[32], index: 0, kind: input, shape index: {}]
  %s1 = inlined_call_operand.vmem [shape: f32[50,32], index: 1, kind: input, shape index: {}]
  %s2 = inlined_call_operand.vmem [shape: bf16[1056,64], index: 2, kind: input, shape index: {}]
  %s3 = inlined_call_operand.vmem [shape: f32[160,64], index: 3, kind: input, shape index: {}]
  %s4 = inlined_call_operand.vmem [shape: f32[8,8], index: 4, kind: input, shape index: {}]
  %s5 = inlined_call_operand.vmem [shape: f32[8,16], index: 5, kind: input, shape index: {}]
  %s6 = inlined_call_operand.vmem [shape: f32[2,8], index: 6, kind: input, shape index: {}]
  %s7 = inlined_call_operand.vmem [shape: f32[2,8], index: 7, kind: input, shape index: {}]
  %s8 = inlined_call_operand.hbm [shape: f32[2,8], index: 8, kind: output, shape index: {0}]
  %s9 = inlined_call_operand.hbm [shape: f32[1,1], index: 9, kind: output, shape index: {1}]
  %10 = xla_tuple %s8, %s9
  %s11 = sld [smem:[#allocation0]]
  $region46: #{forward.1} parent=0
    _
  %s13 = ssub.s32 1, %s11
  %s14 = scalar_select 0, %s13, %s11
  %s15 = sshll.u32 %s0, 4
  %s16 = int_to_ptr.vmem [resolvable:$true] %s15
  %18 = dma.vmem_to_smem %s16, 16, [#allocation4], [#allocation3]
  %19 = dma.done [#allocation3], 16
  %20 = sfence
  $region1: #{forward.1} parent=0
    #allocation5 [shape = 'u8[1024]{0}', space=vmem, size = 0x400, scoped, tag = 'output window, operand 0, single buffered']
    #allocation6 [shape = 's32[1]{0}', space=sflag, size = 0x4, scoped, tag = 'scoped memory for forward.1']
    #allocation7 [shape = 'u8[512]{0}', space=vmem, size = 0x400, scoped, tag = 'output window, operand 1, single buffered']
    #allocation8 [shape = 's32[1]{0}', space=sflag, size = 0x4, scoped, tag = 'scoped memory for forward.1']
    %21 = vsyncpa [#allocation6], 0
    %22 = vsyncpa [#allocation8], 0
    // Predicated region
    $region2: #{forward.1} parent=1 // pred_check
      _
    $region3: #{forward.1} parent=1 // pred_check_branch
      %24 = sbr.rel (0) target = $region5
    $region4: #{forward.1} parent=1 // pred_region
      _
    $region5: #{forward.1} parent=1 // pred_fallthru
      _
    // Predicated region
    $region6: #{forward.1} parent=1 // pred_check
      _
    $region7: #{forward.1} parent=1 // pred_check_branch
      %26 = sbr.rel (0) target = $region9
    $region8: #{forward.1} parent=1 // pred_region
      _
    $region9: #{forward.1} parent=1 // pred_fallthru
      _
    // Predicated region
    $region10: #{forward.1} parent=1 // pred_check
      _
    $region11: #{forward.1} parent=1 // pred_check_branch
      %28 = sbr.rel (0) target = $region13
    $region12: #{forward.1} parent=1 // pred_region
      _
    $region13: #{forward.1} parent=1 // pred_fallthru
      _
    // Predicated region
    $region14: #{forward.1} parent=1 // pred_check
      _
    $region15: #{forward.1} parent=1 // pred_check_branch
      %30 = sbr.rel (0) target = $region17
    $region16: #{forward.1} parent=1 // pred_region
      _
    $region17: #{forward.1} parent=1 // pred_fallthru
      _
    // Predicated region
    $region18: #{forward.1} parent=1 // pred_check
      _
    $region19: #{forward.1} parent=1 // pred_check_branch
      %32 = sbr.rel (0) target = $region21
    $region20: #{forward.1} parent=1 // pred_region
      _
    $region21: #{forward.1} parent=1 // pred_fallthru
      _
    // Predicated region
    $region22: #{forward.1} parent=1 // pred_check
      _
    $region23: #{forward.1} parent=1 // pred_check_branch
      %34 = sbr.rel (0) target = $region25
    $region24: #{forward.1} parent=1 // pred_region
      _
    $region25: #{forward.1} parent=1 // pred_fallthru
      _
    // Predicated region
    $region26: #{forward.1} parent=1 // pred_check
      _
    $region27: #{forward.1} parent=1 // pred_check_branch
      %36 = sbr.rel (0) target = $region29
    $region28: #{forward.1} parent=1 // pred_region
      _
    $region29: #{forward.1} parent=1 // pred_fallthru
      _
    %s38 = sld [smem:[#allocation4]]
    %s39 = scalar_lea.vmem %s1, %s38
    %v40 = vld [vmem:[%s39] sm:$0x1]
    %vm41 = vcmask 253952
    %42 = vst.msk [vmem:[#allocation2 + $0x8] sm:$0x1] %vm41, %v40
    %s43 = sld [smem:[#allocation4 + $0x1]]
    %s44 = scalar_lea.vmem %s1, %s43
    %v45 = vld [vmem:[%s44] sm:$0x1]
    %46 = vst.msk [vmem:[#allocation2 + $0x9] sm:$0x1] %vm41, %v45
    %s47 = sld [smem:[#allocation4 + $0x2]]
    %s48 = scalar_lea.vmem %s1, %s47
    %v49 = vld [vmem:[%s48] sm:$0x1]
    %50 = vst.msk [vmem:[#allocation2 + $0xa] sm:$0x1] %vm41, %v49
    %s51 = sld [smem:[#allocation4 + $0x3]]
    %s52 = scalar_lea.vmem %s1, %s51
    %v53 = vld [vmem:[%s52] sm:$0x1]
    %54 = vst.msk [vmem:[#allocation2 + $0xb] sm:$0x1] %vm41, %v53
    %s55 = sld [smem:[#allocation4 + $0x4]]
    %s56 = scalar_lea.vmem %s1, %s55
    %v57 = vld [vmem:[%s56] sm:$0x1]
    %58 = vst.msk [vmem:[#allocation2 + $0xc] sm:$0x1] %vm41, %v57
    %s59 = sld [smem:[#allocation4 + $0x5]]
    %s60 = scalar_lea.vmem %s1, %s59
    %v61 = vld [vmem:[%s60] sm:$0x1]
    %62 = vst.msk [vmem:[#allocation2 + $0xd] sm:$0x1] %vm41, %v61
    %s63 = sld [smem:[#allocation4 + $0x6]]
    %s64 = scalar_lea.vmem %s1, %s63
    %v65 = vld [vmem:[%s64] sm:$0x1]
    %66 = vst.msk [vmem:[#allocation2 + $0xe] sm:$0x1] %vm41, %v65
    %s67 = sld [smem:[#allocation4 + $0x7]]
    %s68 = scalar_lea.vmem %s1, %s67
    %v69 = vld [vmem:[%s68] sm:$0x1]
    %70 = vst.msk [vmem:[#allocation2 + $0xf] sm:$0x1] %vm41, %v69
    %s71 = sld [smem:[#allocation4 + $0x8]]
    %s72 = scalar_lea.vmem %s1, %s71
    %v73 = vld [vmem:[%s72] sm:$0x1]
    %74 = vst.msk [vmem:[#allocation2 + $0x10] sm:$0x1] %vm41, %v73
    %s75 = sld [smem:[#allocation4 + $0x9]]
    %s76 = scalar_lea.vmem %s1, %s75
    %v77 = vld [vmem:[%s76] sm:$0x1]
    %78 = vst.msk [vmem:[#allocation2 + $0x11] sm:$0x1] %vm41, %v77
    %s79 = sld [smem:[#allocation4 + $0xa]]
    %s80 = scalar_lea.vmem %s1, %s79
    %v81 = vld [vmem:[%s80] sm:$0x1]
    %82 = vst.msk [vmem:[#allocation2 + $0x12] sm:$0x1] %vm41, %v81
    %s83 = sld [smem:[#allocation4 + $0xb]]
    %s84 = scalar_lea.vmem %s1, %s83
    %v85 = vld [vmem:[%s84] sm:$0x1]
    %86 = vst.msk [vmem:[#allocation2 + $0x13] sm:$0x1] %vm41, %v85
    %s87 = sld [smem:[#allocation4 + $0xc]]
    %s88 = scalar_lea.vmem %s1, %s87
    %v89 = vld [vmem:[%s88] sm:$0x1]
    %90 = vst.msk [vmem:[#allocation2 + $0x14] sm:$0x1] %vm41, %v89
    %s91 = sld [smem:[#allocation4 + $0xd]]
    %s92 = scalar_lea.vmem %s1, %s91
    %v93 = vld [vmem:[%s92] sm:$0x1]
    %94 = vst.msk [vmem:[#allocation2 + $0x15] sm:$0x1] %vm41, %v93
    %s95 = sld [smem:[#allocation4 + $0xe]]
    %s96 = scalar_lea.vmem %s1, %s95
    %v97 = vld [vmem:[%s96] sm:$0x1]
    %98 = vst.msk [vmem:[#allocation2 + $0x16] sm:$0x1] %vm41, %v97
    %s99 = sld [smem:[#allocation4 + $0xf]]
    %s100 = scalar_lea.vmem %s1, %s99
    %v101 = vld [vmem:[%s100] sm:$0x1]
    %102 = vst.msk [vmem:[#allocation2 + $0x17] sm:$0x1] %vm41, %v101
    %s103 = sld [smem:[#allocation4 + $0x10]]
    %s104 = scalar_lea.vmem %s1, %s103
    %v105 = vld [vmem:[%s104] sm:$0x1]
    %106 = vst.msk [vmem:[#allocation2 + $0x28] sm:$0x1] %vm41, %v105
    %s107 = sld [smem:[#allocation4 + $0x11]]
    %s108 = scalar_lea.vmem %s1, %s107
    %v109 = vld [vmem:[%s108] sm:$0x1]
    %110 = vst.msk [vmem:[#allocation2 + $0x29] sm:$0x1] %vm41, %v109
    %s111 = sld [smem:[#allocation4 + $0x12]]
    %s112 = scalar_lea.vmem %s1, %s111
    %v113 = vld [vmem:[%s112] sm:$0x1]
    %114 = vst.msk [vmem:[#allocation2 + $0x2a] sm:$0x1] %vm41, %v113
    %s115 = sld [smem:[#allocation4 + $0x13]]
    %s116 = scalar_lea.vmem %s1, %s115
    %v117 = vld [vmem:[%s116] sm:$0x1]
    %118 = vst.msk [vmem:[#allocation2 + $0x2b] sm:$0x1] %vm41, %v117
    %s119 = sld [smem:[#allocation4 + $0x14]]
    %s120 = scalar_lea.vmem %s1, %s119
    %v121 = vld [vmem:[%s120] sm:$0x1]
    %122 = vst.msk [vmem:[#allocation2 + $0x2c] sm:$0x1] %vm41, %v121
    %s123 = sld [smem:[#allocation4 + $0x15]]
    %s124 = scalar_lea.vmem %s1, %s123
    %v125 = vld [vmem:[%s124] sm:$0x1]
    %126 = vst.msk [vmem:[#allocation2 + $0x2d] sm:$0x1] %vm41, %v125
    %s127 = sld [smem:[#allocation4 + $0x16]]
    %s128 = scalar_lea.vmem %s1, %s127
    %v129 = vld [vmem:[%s128] sm:$0x1]
    %130 = vst.msk [vmem:[#allocation2 + $0x2e] sm:$0x1] %vm41, %v129
    %s131 = sld [smem:[#allocation4 + $0x17]]
    %s132 = scalar_lea.vmem %s1, %s131
    %v133 = vld [vmem:[%s132] sm:$0x1]
    %134 = vst.msk [vmem:[#allocation2 + $0x2f] sm:$0x1] %vm41, %v133
    %s135 = sld [smem:[#allocation4 + $0x18]]
    %s136 = scalar_lea.vmem %s1, %s135
    %v137 = vld [vmem:[%s136] sm:$0x1]
    %138 = vst.msk [vmem:[#allocation2 + $0x30] sm:$0x1] %vm41, %v137
    %s139 = sld [smem:[#allocation4 + $0x19]]
    %s140 = scalar_lea.vmem %s1, %s139
    %v141 = vld [vmem:[%s140] sm:$0x1]
    %142 = vst.msk [vmem:[#allocation2 + $0x31] sm:$0x1] %vm41, %v141
    %s143 = sld [smem:[#allocation4 + $0x1a]]
    %s144 = scalar_lea.vmem %s1, %s143
    %v145 = vld [vmem:[%s144] sm:$0x1]
    %146 = vst.msk [vmem:[#allocation2 + $0x32] sm:$0x1] %vm41, %v145
    %s147 = sld [smem:[#allocation4 + $0x1b]]
    %s148 = scalar_lea.vmem %s1, %s147
    %v149 = vld [vmem:[%s148] sm:$0x1]
    %150 = vst.msk [vmem:[#allocation2 + $0x33] sm:$0x1] %vm41, %v149
    %s151 = sld [smem:[#allocation4 + $0x1c]]
    %s152 = scalar_lea.vmem %s1, %s151
    %v153 = vld [vmem:[%s152] sm:$0x1]
    %154 = vst.msk [vmem:[#allocation2 + $0x34] sm:$0x1] %vm41, %v153
    %s155 = sld [smem:[#allocation4 + $0x1d]]
    %s156 = scalar_lea.vmem %s1, %s155
    %v157 = vld [vmem:[%s156] sm:$0x1]
    %158 = vst.msk [vmem:[#allocation2 + $0x35] sm:$0x1] %vm41, %v157
    %s159 = sld [smem:[#allocation4 + $0x1e]]
    %s160 = scalar_lea.vmem %s1, %s159
    %v161 = vld [vmem:[%s160] sm:$0x1]
    %162 = vst.msk [vmem:[#allocation2 + $0x36] sm:$0x1] %vm41, %v161
    %s163 = sld [smem:[#allocation4 + $0x1f]]
    %s164 = scalar_lea.vmem %s1, %s163
    %v165 = vld [vmem:[%s164] sm:$0x1]
    %166 = vst.msk [vmem:[#allocation2 + $0x37] sm:$0x1] %vm41, %v165
    %v167 = vlaneseq
    %v168 = vshrl.u32 %v167, 7
    %v169 = vadd.s32 %v168, 8
    %v170 = vadd.s32 %v168, 16
    %v171 = vadd.s32 %v168, 24
    %v172 = vadd.s32 %v168, 32
    %v173 = vadd.s32 %v168, 40
    %v174 = vadd.s32 %v168, 48
    %v175 = vadd.s32 %v168, 56
    %vm176 = vcmp.ge.s32.totalorder %v168, 8
    %vm177 = vcmp.ge.s32.totalorder %v169, 8
    %vm178 = vcmp.ge.s32.totalorder %v170, 8
    %vm179 = vcmp.ge.s32.totalorder %v171, 8
    %vm180 = vcmp.ge.s32.totalorder %v172, 8
    %vm181 = vcmp.ge.s32.totalorder %v173, 8
    %vm182 = vcmp.ge.s32.totalorder %v174, 8
    %vm183 = vcmp.ge.s32.totalorder %v175, 8
    %vm184 = vcmp.lt.s32.totalorder %v168, 24
    %vm185 = vcmp.lt.s32.totalorder %v169, 24
    %vm186 = vcmp.lt.s32.totalorder %v170, 24
    %vm187 = vcmp.lt.s32.totalorder %v171, 24
    %vm188 = vcmp.lt.s32.totalorder %v172, 24
    %vm189 = vcmp.lt.s32.totalorder %v173, 24
    %vm190 = vcmp.lt.s32.totalorder %v174, 24
    %vm191 = vcmp.lt.s32.totalorder %v175, 24
    %vm192 = vmand %vm176, %vm184
    %vm193 = vmand %vm177, %vm185
    %vm194 = vmand %vm178, %vm186
    %vm195 = vmand %vm179, %vm187
    %vm196 = vmand %vm180, %vm188
    %vm197 = vmand %vm181, %vm189
    %vm198 = vmand %vm182, %vm190
    %vm199 = vmand %vm183, %vm191
    %vm200 = vcmp.ge.s32.totalorder %v168, 40
    %vm201 = vcmp.ge.s32.totalorder %v169, 40
    %vm202 = vcmp.ge.s32.totalorder %v170, 40
    %vm203 = vcmp.ge.s32.totalorder %v171, 40
    %vm204 = vcmp.ge.s32.totalorder %v172, 40
    %vm205 = vcmp.ge.s32.totalorder %v173, 40
    %vm206 = vcmp.ge.s32.totalorder %v174, 40
    %vm207 = vcmp.ge.s32.totalorder %v175, 40
    %vm208 = vcmp.lt.s32.totalorder %v168, 56
    %vm209 = vcmp.lt.s32.totalorder %v169, 56
    %vm210 = vcmp.lt.s32.totalorder %v170, 56
    %vm211 = vcmp.lt.s32.totalorder %v171, 56
    %vm212 = vcmp.lt.s32.totalorder %v172, 56
    %vm213 = vcmp.lt.s32.totalorder %v173, 56
    %vm214 = vcmp.lt.s32.totalorder %v174, 56
    %vm215 = vcmp.lt.s32.totalorder %v175, 56
    %vm216 = vmand %vm200, %vm208
    %vm217 = vmand %vm201, %vm209
    %vm218 = vmand %vm202, %vm210
    %vm219 = vmand %vm203, %vm211
    %vm220 = vmand %vm204, %vm212
    %vm221 = vmand %vm205, %vm213
    %vm222 = vmand %vm206, %vm214
    %vm223 = vmand %vm207, %vm215
    %vm224 = vmor %vm192, %vm216
    %vm225 = vmor %vm193, %vm217
    %vm226 = vmor %vm194, %vm218
    %vm227 = vmor %vm195, %vm219
    %vm228 = vmor %vm196, %vm220
    %vm229 = vmor %vm197, %vm221
    %vm230 = vmor %vm198, %vm222
    %vm231 = vmor %vm199, %vm223
    %v232 = vsel %vm224, 1, 0
    %v233 = vsel %vm225, 1, 0
    %v234 = vsel %vm226, 1, 0
    %v235 = vsel %vm227, 1, 0
    %v236 = vsel %vm228, 1, 0
    %v237 = vsel %vm229, 1, 0
    %v238 = vsel %vm230, 1, 0
    %v239 = vsel %vm231, 1, 0
    %v240 = vcvt.s32.f32 %v232
    %v241 = vcvt.s32.f32 %v233
    %v242 = vcvt.s32.f32 %v234
    %v243 = vcvt.s32.f32 %v235
    %v244 = vcvt.s32.f32 %v236
    %v245 = vcvt.s32.f32 %v237
    %v246 = vcvt.s32.f32 %v238
    %v247 = vcvt.s32.f32 %v239
    %v248 = vld [vmem:[%s4] sm:$0xff]
    %v249 = vld [vmem:[%s5] sm:$0xff]
    %v250 = vld [vmem:[%s3 + $0x40] sm:$0xff]
    %v251 = vld [vmem:[%s3 + $0x48] sm:$0xff]
    %v252 = vld [vmem:[%s3 + $0x91] sm:$0x1]
    %v253 = vld [vmem:[%s3 + $0x50] sm:$0xff]
    %v254 = vld [vmem:[%s3 + $0x58] sm:$0xff]
    %v255 = vld [vmem:[%s3 + $0x92] sm:$0x1]
    %vm256 = vcmask 64512
    %v258 = vsel %vm256, %v248, 0
    %260 = vmatprep.subr.mxu0 0.0
    %261 = vmatpush1.msra.mxu0 %v249
    %262 = vmatprep.subr.mxu0 0.0
    %263 = vmatpush1.msra.mxu0 0.0
    %264 = vmatprep.subr.mxu0 0.0
    %265 = vmatpush1.msra.mxu0 0.0
    %266 = vmatprep.subr.mxu0 0.0
    %267 = vmatpush1.msra.mxu0 0.0
    %268 = vmatprep.subr.mxu0 0.0
    %269 = vmatpush1.msra.mxu0 0.0
    %270 = vmatprep.subr.mxu0 0.0
    %271 = vmatpush1.msra.mxu0 0.0
    %272 = vmatprep.subr.mxu0 0.0
    %273 = vmatpush1.msra.mxu0 0.0
    %274 = vmatprep.subr.mxu0 0.0
    %275 = vmatpush1.msra.mxu0 0.0
    %276 = vmatprep.subr.mxu0 0.0
    %277 = vmatpush1.msra.mxu0 0.0
    %278 = vmatprep.subr.mxu0 0.0
    %279 = vmatpush1.msra.mxu0 0.0
    %280 = vmatprep.subr.mxu0 0.0
    %281 = vmatpush1.msra.mxu0 0.0
    %282 = vmatprep.subr.mxu0 0.0
    %283 = vmatpush1.msra.mxu0 0.0
    %284 = vmatprep.subr.mxu0 0.0
    %285 = vmatpush1.msra.mxu0 0.0
    %286 = vmatprep.subr.mxu0 0.0
    %287 = vmatpush1.msra.mxu0 0.0
    %288 = vmatprep.subr.mxu0 0.0
    %289 = vmatpush1.msra.mxu0 0.0
    %290 = vmatprep.subr.mxu0 0.0
    %291 = vmatpush1.msra.mxu0 0.0
    %292 = vmatprep.subr.mxu0 0.0
    %293 = vmatpush1.msra.mxu0 0.0
    %294 = vmatprep.subr.mxu0 0.0
    %295 = vmatpush1.msra.mxu0 0.0
    %296 = vmatprep.subr.mxu0 0.0
    %297 = vmatpush1.msra.mxu0 0.0
    %298 = vmatprep.subr.mxu0 0.0
    %299 = vmatpush1.msra.mxu0 0.0
    %300 = vmatprep.subr.mxu0 0.0
    %301 = vmatpush1.msra.mxu0 0.0
    %302 = vmatprep.subr.mxu0 0.0
    %303 = vmatpush1.msra.mxu0 0.0
    %304 = vmatprep.subr.mxu0 0.0
    %305 = vmatpush1.msra.mxu0 0.0
    %306 = vmatprep.subr.mxu0 0.0
    %307 = vmatpush1.msra.mxu0 0.0
    %308 = vmatprep.subr.mxu0 0.0
    %309 = vmatpush1.msra.mxu0 0.0
    %310 = vmatprep.subr.mxu0 0.0
    %311 = vmatpush1.msra.mxu0 0.0
    %312 = vmatprep.subr.mxu0 0.0
    %313 = vmatpush1.msra.mxu0 0.0
    %314 = vmatprep.subr.mxu0 0.0
    %315 = vmatpush1.msra.mxu0 0.0
    %316 = vmatprep.subr.mxu0 0.0
    %317 = vmatpush1.msra.mxu0 0.0
    %318 = vmatprep.subr.mxu0 0.0
    %319 = vmatpush1.msra.mxu0 0.0
    %320 = vmatprep.subr.mxu0 0.0
    %321 = vmatpush1.msra.mxu0 0.0
    %322 = vmatprep.subr.mxu0 0.0
    %323 = vmatpush1.msra.mxu0 0.0
    %324 = vmatprep.mubr.f32.mxu0 0.0
    %325 = vmatmul.mubr.f32.gmra.mrb[0].mxu0 %v258
    %v326 = vpop.f32.mrb[0].mxu0
    %v327 = vadd.f32 0.0, %v326
    %v328 = vpop.f32.mrb[0].mxu0
    %329 = vdwg.mxu0
    %v330 = vlaneseq
    %v331 = vshrl.u32 %v330, 7
    %v332 = vsub.s32 0, %v331
    %v333 = vrot.slane %v252, %v332
    %vm334 = vcmask 130048
    %v336 = vsel %vm334, %v327, 0
    %338 = vmatprep.subr.mxu0 0.0
    %339 = vmatpush1.msra.mxu0 %v250
    %340 = vmatprep.subr.mxu0 0.0
    %341 = vmatpush1.msra.mxu0 %v251
    %342 = vmatprep.subr.mxu0 0.0
    %343 = vmatpush1.msra.mxu0 0.0
    %344 = vmatprep.subr.mxu0 0.0
    %345 = vmatpush1.msra.mxu0 0.0
    %346 = vmatprep.subr.mxu0 0.0
    %347 = vmatpush1.msra.mxu0 0.0
    %348 = vmatprep.subr.mxu0 0.0
    %349 = vmatpush1.msra.mxu0 0.0
    %350 = vmatprep.subr.mxu0 0.0
    %351 = vmatpush1.msra.mxu0 0.0
    %352 = vmatprep.subr.mxu0 0.0
    %353 = vmatpush1.msra.mxu0 0.0
    %354 = vmatprep.subr.mxu0 0.0
    %355 = vmatpush1.msra.mxu0 0.0
    %356 = vmatprep.subr.mxu0 0.0
    %357 = vmatpush1.msra.mxu0 0.0
    %358 = vmatprep.subr.mxu0 0.0
    %359 = vmatpush1.msra.mxu0 0.0
    %360 = vmatprep.subr.mxu0 0.0
    %361 = vmatpush1.msra.mxu0 0.0
    %362 = vmatprep.subr.mxu0 0.0
    %363 = vmatpush1.msra.mxu0 0.0
    %364 = vmatprep.subr.mxu0 0.0
    %365 = vmatpush1.msra.mxu0 0.0
    %366 = vmatprep.subr.mxu0 0.0
    %367 = vmatpush1.msra.mxu0 0.0
    %368 = vmatprep.subr.mxu0 0.0
    %369 = vmatpush1.msra.mxu0 0.0
    %370 = vmatprep.subr.mxu0 0.0
    %371 = vmatpush1.msra.mxu0 0.0
    %372 = vmatprep.subr.mxu0 0.0
    %373 = vmatpush1.msra.mxu0 0.0
    %374 = vmatprep.subr.mxu0 0.0
    %375 = vmatpush1.msra.mxu0 0.0
    %376 = vmatprep.subr.mxu0 0.0
    %377 = vmatpush1.msra.mxu0 0.0
    %378 = vmatprep.subr.mxu0 0.0
    %379 = vmatpush1.msra.mxu0 0.0
    %380 = vmatprep.subr.mxu0 0.0
    %381 = vmatpush1.msra.mxu0 0.0
    %382 = vmatprep.subr.mxu0 0.0
    %383 = vmatpush1.msra.mxu0 0.0
    %384 = vmatprep.subr.mxu0 0.0
    %385 = vmatpush1.msra.mxu0 0.0
    %386 = vmatprep.subr.mxu0 0.0
    %387 = vmatpush1.msra.mxu0 0.0
    %388 = vmatprep.subr.mxu0 0.0
    %389 = vmatpush1.msra.mxu0 0.0
    %390 = vmatprep.subr.mxu0 0.0
    %391 = vmatpush1.msra.mxu0 0.0
    %392 = vmatprep.subr.mxu0 0.0
    %393 = vmatpush1.msra.mxu0 0.0
    %394 = vmatprep.subr.mxu0 0.0
    %395 = vmatpush1.msra.mxu0 0.0
    %396 = vmatprep.subr.mxu0 0.0
    %397 = vmatpush1.msra.mxu0 0.0
    %398 = vmatprep.subr.mxu0 0.0
    %399 = vmatpush1.msra.mxu0 0.0
    %400 = vmatprep.subr.mxu0 0.0
    %401 = vmatpush1.msra.mxu0 0.0
    %402 = vmatprep.mubr.f32.mxu0 0.0
    %403 = vmatmul.mubr.f32.gmra.mrb[0].mxu0 %v336
    %v404 = vpop.f32.mrb[0].mxu0
    %v405 = vadd.f32 %v333, %v404
    %v406 = vpop.f32.mrb[0].mxu0
    %407 = vdwg.mxu0
    %v408 = vmax.f32 %v405, 0.0
    %409 = vmatprep.subr.mxu0 0.0
    %410 = vmatpush1.msra.mxu0 %v408
    %411 = vmatprep.subr.mxu0 0.0
    %412 = vmatpush1.msra.mxu0 0.0
    %413 = vmatprep.subr.mxu0 0.0
    %414 = vmatpush1.msra.mxu0 0.0
    %415 = vmatprep.subr.mxu0 0.0
    %416 = vmatpush1.msra.mxu0 0.0
    %417 = vmatprep.subr.mxu0 0.0
    %418 = vmatpush1.msra.mxu0 0.0
    %419 = vmatprep.subr.mxu0 0.0
    %420 = vmatpush1.msra.mxu0 0.0
    %421 = vmatprep.subr.mxu0 0.0
    %422 = vmatpush1.msra.mxu0 0.0
    %423 = vmatprep.subr.mxu0 0.0
    %424 = vmatpush1.msra.mxu0 0.0
    %425 = vmatprep.subr.mxu0 0.0
    %426 = vmatpush1.msra.mxu0 0.0
    %427 = vmatprep.subr.mxu0 0.0
    %428 = vmatpush1.msra.mxu0 0.0
    %429 = vmatprep.subr.mxu0 0.0
    %430 = vmatpush1.msra.mxu0 0.0
    %431 = vmatprep.subr.mxu0 0.0
    %432 = vmatpush1.msra.mxu0 0.0
    %433 = vmatprep.subr.mxu0 0.0
    %434 = vmatpush1.msra.mxu0 0.0
    %435 = vmatprep.subr.mxu0 0.0
    %436 = vmatpush1.msra.mxu0 0.0
    %437 = vmatprep.subr.mxu0 0.0
    %438 = vmatpush1.msra.mxu0 0.0
    %439 = vmatprep.subr.mxu0 0.0
    %440 = vmatpush1.msra.mxu0 0.0
    %441 = vmatprep.subr.mxu0 0.0
    %442 = vmatpush1.msra.mxu0 0.0
    %443 = vmatprep.subr.mxu0 0.0
    %444 = vmatpush1.msra.mxu0 0.0
    %445 = vmatprep.subr.mxu0 0.0
    %446 = vmatpush1.msra.mxu0 0.0
    %447 = vmatprep.subr.mxu0 0.0
    %448 = vmatpush1.msra.mxu0 0.0
    %449 = vmatprep.subr.mxu0 0.0
    %450 = vmatpush1.msra.mxu0 0.0
    %451 = vmatprep.subr.mxu0 0.0
    %452 = vmatpush1.msra.mxu0 0.0
    %453 = vmatprep.subr.mxu0 0.0
    %454 = vmatpush1.msra.mxu0 0.0
    %455 = vmatprep.subr.mxu0 0.0
    %456 = vmatpush1.msra.mxu0 0.0
    %457 = vmatprep.subr.mxu0 0.0
    %458 = vmatpush1.msra.mxu0 0.0
    %459 = vmatprep.subr.mxu0 0.0
    %460 = vmatpush1.msra.mxu0 0.0
    %461 = vmatprep.subr.mxu0 0.0
    %462 = vmatpush1.msra.mxu0 0.0
    %463 = vmatprep.subr.mxu0 0.0
    %464 = vmatpush1.msra.mxu0 0.0
    %465 = vmatprep.subr.mxu0 0.0
    %466 = vmatpush1.msra.mxu0 0.0
    %467 = vmatprep.subr.mxu0 0.0
    %468 = vmatpush1.msra.mxu0 0.0
    %469 = vmatprep.subr.mxu0 0.0
    %470 = vmatpush1.msra.mxu0 0.0
    %471 = vmatprep.subr.mxu0 0.0
    %472 = vmatpush1.msra.mxu0 0.0
    %473 = vmatprep.mubr.f32.mxu0 0.0
    %474 = vmatmul.mubr.f32.gmra.mrb[0].mxu0 %v258
    %v475 = vpop.f32.mrb[0].mxu0
    %v476 = vadd.f32 0.0, %v475
    %v477 = vpop.f32.mrb[0].mxu0
    %478 = vdwg.mxu0
    %v479 = vlaneseq
    %v480 = vshrl.u32 %v479, 7
    %v481 = vsub.s32 0, %v480
    %v482 = vrot.slane %v255, %v481
    %v484 = vsel %vm334, %v476, 0
    %486 = vmatprep.subr.mxu0 0.0
    %487 = vmatpush1.msra.mxu0 %v253
    %488 = vmatprep.subr.mxu0 0.0
    %489 = vmatpush1.msra.mxu0 %v254
    %490 = vmatprep.subr.mxu0 0.0
    %491 = vmatpush1.msra.mxu0 0.0
    %492 = vmatprep.subr.mxu0 0.0
    %493 = vmatpush1.msra.mxu0 0.0
    %494 = vmatprep.subr.mxu0 0.0
    %495 = vmatpush1.msra.mxu0 0.0
    %496 = vmatprep.subr.mxu0 0.0
    %497 = vmatpush1.msra.mxu0 0.0
    %498 = vmatprep.subr.mxu0 0.0
    %499 = vmatpush1.msra.mxu0 0.0
    %500 = vmatprep.subr.mxu0 0.0
    %501 = vmatpush1.msra.mxu0 0.0
    %502 = vmatprep.subr.mxu0 0.0
    %503 = vmatpush1.msra.mxu0 0.0
    %504 = vmatprep.subr.mxu0 0.0
    %505 = vmatpush1.msra.mxu0 0.0
    %506 = vmatprep.subr.mxu0 0.0
    %507 = vmatpush1.msra.mxu0 0.0
    %508 = vmatprep.subr.mxu0 0.0
    %509 = vmatpush1.msra.mxu0 0.0
    %510 = vmatprep.subr.mxu0 0.0
    %511 = vmatpush1.msra.mxu0 0.0
    %512 = vmatprep.subr.mxu0 0.0
    %513 = vmatpush1.msra.mxu0 0.0
    %514 = vmatprep.subr.mxu0 0.0
    %515 = vmatpush1.msra.mxu0 0.0
    %516 = vmatprep.subr.mxu0 0.0
    %517 = vmatpush1.msra.mxu0 0.0
    %518 = vmatprep.subr.mxu0 0.0
    %519 = vmatpush1.msra.mxu0 0.0
    %520 = vmatprep.subr.mxu0 0.0
    %521 = vmatpush1.msra.mxu0 0.0
    %522 = vmatprep.subr.mxu0 0.0
    %523 = vmatpush1.msra.mxu0 0.0
    %524 = vmatprep.subr.mxu0 0.0
    %525 = vmatpush1.msra.mxu0 0.0
    %526 = vmatprep.subr.mxu0 0.0
    %527 = vmatpush1.msra.mxu0 0.0
    %528 = vmatprep.subr.mxu0 0.0
    %529 = vmatpush1.msra.mxu0 0.0
    %530 = vmatprep.subr.mxu0 0.0
    %531 = vmatpush1.msra.mxu0 0.0
    %532 = vmatprep.subr.mxu0 0.0
    %533 = vmatpush1.msra.mxu0 0.0
    %534 = vmatprep.subr.mxu0 0.0
    %535 = vmatpush1.msra.mxu0 0.0
    %536 = vmatprep.subr.mxu0 0.0
    %537 = vmatpush1.msra.mxu0 0.0
    %538 = vmatprep.subr.mxu0 0.0
    %539 = vmatpush1.msra.mxu0 0.0
    %540 = vmatprep.subr.mxu0 0.0
    %541 = vmatpush1.msra.mxu0 0.0
    %542 = vmatprep.subr.mxu0 0.0
    %543 = vmatpush1.msra.mxu0 0.0
    %544 = vmatprep.subr.mxu0 0.0
    %545 = vmatpush1.msra.mxu0 0.0
    %546 = vmatprep.subr.mxu0 0.0
    %547 = vmatpush1.msra.mxu0 0.0
    %548 = vmatprep.subr.mxu0 0.0
    %549 = vmatpush1.msra.mxu0 0.0
    %550 = vmatprep.mubr.f32.mxu0 0.0
    %551 = vmatmul.mubr.f32.gmra.mrb[0].mxu0 %v484
    %v552 = vpop.f32.mrb[0].mxu0
    %v553 = vadd.f32 %v482, %v552
    %v554 = vpop.f32.mrb[0].mxu0
    %555 = vdwg.mxu0
    %557 = vrot.lane.b32.xlu0 %v249, 16
    %v558 = vpop.permute.xlu0 %557
    %v560 = vsel %vm334, %v553, %v558
    %v561 = vld [vmem:[%s3] sm:$0xff]
    %v562 = vld [vmem:[%s3 + $0x8] sm:$0xff]
    %v563 = vld [vmem:[%s3 + $0x10] sm:$0xff]
    %v564 = vld [vmem:[%s3 + $0x18] sm:$0xff]
    %v565 = vld [vmem:[%s3 + $0x20] sm:$0xff]
    %v566 = vld [vmem:[%s3 + $0x28] sm:$0xff]
    %v567 = vld [vmem:[%s3 + $0x30] sm:$0xff]
    %v568 = vld [vmem:[%s3 + $0x38] sm:$0xff]
    %v569 = vld [vmem:[%s3 + $0x90] sm:$0x1]
    %vm570 = vcmask 261120
    %v572 = vsel %vm570, %v561, 0
    %v575 = vsel %vm570, %v562, 0
    %v578 = vsel %vm570, %v563, 0
    %v581 = vsel %vm570, %v564, 0
    %v584 = vsel %vm570, %v565, 0
    %v587 = vsel %vm570, %v566, 0
    %v590 = vsel %vm570, %v567, 0
    %v593 = vsel %vm570, %v568, 0
    %v596 = vsel %vm570, %v560, 0
    %598 = vmatprep.subr.mxu0 0.0
    %599 = vmatpush1.xpose.msra.mxu0 %v596
    %600 = vmatprep.subr.mxu0 0.0
    %601 = vmatpush1.xpose.msra.mxu0 0.0
    %602 = vmatprep.subr.mxu0 0.0
    %603 = vmatpush1.xpose.msra.mxu0 0.0
    %604 = vmatprep.subr.mxu0 0.0
    %605 = vmatpush1.xpose.msra.mxu0 0.0
    %606 = vmatprep.subr.mxu0 0.0
    %607 = vmatpush1.xpose.msra.mxu0 0.0
    %608 = vmatprep.subr.mxu0 0.0
    %609 = vmatpush1.xpose.msra.mxu0 0.0
    %610 = vmatprep.subr.mxu0 0.0
    %611 = vmatpush1.xpose.msra.mxu0 0.0
    %612 = vmatprep.subr.mxu0 0.0
    %613 = vmatpush1.xpose.msra.mxu0 0.0
    %614 = vmatprep.subr.mxu0 0.0
    %615 = vmatpush1.xpose.msra.mxu0 0.0
    %616 = vmatprep.subr.mxu0 0.0
    %617 = vmatpush1.xpose.msra.mxu0 0.0
    %618 = vmatprep.subr.mxu0 0.0
    %619 = vmatpush1.xpose.msra.mxu0 0.0
    %620 = vmatprep.subr.mxu0 0.0
    %621 = vmatpush1.xpose.msra.mxu0 0.0
    %622 = vmatprep.subr.mxu0 0.0
    %623 = vmatpush1.xpose.msra.mxu0 0.0
    %624 = vmatprep.subr.mxu0 0.0
    %625 = vmatpush1.xpose.msra.mxu0 0.0
    %626 = vmatprep.subr.mxu0 0.0
    %627 = vmatpush1.xpose.msra.mxu0 0.0
    %628 = vmatprep.subr.mxu0 0.0
    %629 = vmatpush1.xpose.msra.mxu0 0.0
    %630 = vmatprep.subr.mxu0 0.0
    %631 = vmatpush1.xpose.msra.mxu0 0.0
    %632 = vmatprep.subr.mxu0 0.0
    %633 = vmatpush1.xpose.msra.mxu0 0.0
    %634 = vmatprep.subr.mxu0 0.0
    %635 = vmatpush1.xpose.msra.mxu0 0.0
    %636 = vmatprep.subr.mxu0 0.0
    %637 = vmatpush1.xpose.msra.mxu0 0.0
    %638 = vmatprep.subr.mxu0 0.0
    %639 = vmatpush1.xpose.msra.mxu0 0.0
    %640 = vmatprep.subr.mxu0 0.0
    %641 = vmatpush1.xpose.msra.mxu0 0.0
    %642 = vmatprep.subr.mxu0 0.0
    %643 = vmatpush1.xpose.msra.mxu0 0.0
    %644 = vmatprep.subr.mxu0 0.0
    %645 = vmatpush1.xpose.msra.mxu0 0.0
    %646 = vmatprep.subr.mxu0 0.0
    %647 = vmatpush1.xpose.msra.mxu0 0.0
    %648 = vmatprep.subr.mxu0 0.0
    %649 = vmatpush1.xpose.msra.mxu0 0.0
    %650 = vmatprep.subr.mxu0 0.0
    %651 = vmatpush1.xpose.msra.mxu0 0.0
    %652 = vmatprep.subr.mxu0 0.0
    %653 = vmatpush1.xpose.msra.mxu0 0.0
    %654 = vmatprep.subr.mxu0 0.0
    %655 = vmatpush1.xpose.msra.mxu0 0.0
    %656 = vmatprep.subr.mxu0 0.0
    %657 = vmatpush1.xpose.msra.mxu0 0.0
    %658 = vmatprep.subr.mxu0 0.0
    %659 = vmatpush1.xpose.msra.mxu0 0.0
    %660 = vmatprep.subr.mxu0 0.0
    %661 = vmatpush1.xpose.msra.mxu0 0.0
    %662 = vmatprep.mubr.f32.mxu0 0.0
    %663 = vmatmul.mubr.f32.gmra.mrb[0].mxu0 %v572
    %v664 = vpop.f32.mrb[0].mxu0
    %v665 = vadd.f32 0.0, %v664
    %v666 = vpop.f32.mrb[0].mxu0
    %667 = vmatprep.mubr.f32.mxu0 0.0
    %668 = vmatmul.mubr.f32.gmra.mrb[0].mxu0 %v575
    %v669 = vpop.f32.mrb[0].mxu0
    %v670 = vadd.f32 0.0, %v669
    %v671 = vpop.f32.mrb[0].mxu0
    %672 = vmatprep.mubr.f32.mxu0 0.0
    %673 = vmatmul.mubr.f32.gmra.mrb[0].mxu0 %v578
    %v674 = vpop.f32.mrb[0].mxu0
    %v675 = vadd.f32 0.0, %v674
    %v676 = vpop.f32.mrb[0].mxu0
    %677 = vmatprep.mubr.f32.mxu0 0.0
    %678 = vmatmul.mubr.f32.gmra.mrb[0].mxu0 %v581
    %v679 = vpop.f32.mrb[0].mxu0
    %v680 = vadd.f32 0.0, %v679
    %v681 = vpop.f32.mrb[0].mxu0
    %682 = vmatprep.mubr.f32.mxu0 0.0
    %683 = vmatmul.mubr.f32.gmra.mrb[0].mxu0 %v584
    %v684 = vpop.f32.mrb[0].mxu0
    %v685 = vadd.f32 0.0, %v684
    %v686 = vpop.f32.mrb[0].mxu0
    %687 = vmatprep.mubr.f32.mxu0 0.0
    %688 = vmatmul.mubr.f32.gmra.mrb[0].mxu0 %v587
    %v689 = vpop.f32.mrb[0].mxu0
    %v690 = vadd.f32 0.0, %v689
    %v691 = vpop.f32.mrb[0].mxu0
    %692 = vmatprep.mubr.f32.mxu0 0.0
    %693 = vmatmul.mubr.f32.gmra.mrb[0].mxu0 %v590
    %v694 = vpop.f32.mrb[0].mxu0
    %v695 = vadd.f32 0.0, %v694
    %v696 = vpop.f32.mrb[0].mxu0
    %697 = vmatprep.mubr.f32.mxu0 0.0
    %698 = vmatmul.mubr.f32.gmra.mrb[0].mxu0 %v593
    %v699 = vpop.f32.mrb[0].mxu0
    %v700 = vadd.f32 0.0, %v699
    %v701 = vpop.f32.mrb[0].mxu0
    %702 = vdwg.mxu0
    %v704 = vsel %vm570, %v569, 0
    %706 = vmatprep.subr.mxu0 0.0
    %707 = vmatpush1.xpose.msra.mxu0 %v596
    %708 = vmatprep.subr.mxu0 0.0
    %709 = vmatpush1.xpose.msra.mxu0 0.0
    %710 = vmatprep.subr.mxu0 0.0
    %711 = vmatpush1.xpose.msra.mxu0 0.0
    %712 = vmatprep.subr.mxu0 0.0
    %713 = vmatpush1.xpose.msra.mxu0 0.0
    %714 = vmatprep.subr.mxu0 0.0
    %715 = vmatpush1.xpose.msra.mxu0 0.0
    %716 = vmatprep.subr.mxu0 0.0
    %717 = vmatpush1.xpose.msra.mxu0 0.0
    %718 = vmatprep.subr.mxu0 0.0
    %719 = vmatpush1.xpose.msra.mxu0 0.0
    %720 = vmatprep.subr.mxu0 0.0
    %721 = vmatpush1.xpose.msra.mxu0 0.0
    %722 = vmatprep.subr.mxu0 0.0
    %723 = vmatpush1.xpose.msra.mxu0 0.0
    %724 = vmatprep.subr.mxu0 0.0
    %725 = vmatpush1.xpose.msra.mxu0 0.0
    %726 = vmatprep.subr.mxu0 0.0
    %727 = vmatpush1.xpose.msra.mxu0 0.0
    %728 = vmatprep.subr.mxu0 0.0
    %729 = vmatpush1.xpose.msra.mxu0 0.0
    %730 = vmatprep.subr.mxu0 0.0
    %731 = vmatpush1.xpose.msra.mxu0 0.0
    %732 = vmatprep.subr.mxu0 0.0
    %733 = vmatpush1.xpose.msra.mxu0 0.0
    %734 = vmatprep.subr.mxu0 0.0
    %735 = vmatpush1.xpose.msra.mxu0 0.0
    %736 = vmatprep.subr.mxu0 0.0
    %737 = vmatpush1.xpose.msra.mxu0 0.0
    %738 = vmatprep.subr.mxu0 0.0
    %739 = vmatpush1.xpose.msra.mxu0 0.0
    %740 = vmatprep.subr.mxu0 0.0
    %741 = vmatpush1.xpose.msra.mxu0 0.0
    %742 = vmatprep.subr.mxu0 0.0
    %743 = vmatpush1.xpose.msra.mxu0 0.0
    %744 = vmatprep.subr.mxu0 0.0
    %745 = vmatpush1.xpose.msra.mxu0 0.0
    %746 = vmatprep.subr.mxu0 0.0
    %747 = vmatpush1.xpose.msra.mxu0 0.0
    %748 = vmatprep.subr.mxu0 0.0
    %749 = vmatpush1.xpose.msra.mxu0 0.0
    %750 = vmatprep.subr.mxu0 0.0
    %751 = vmatpush1.xpose.msra.mxu0 0.0
    %752 = vmatprep.subr.mxu0 0.0
    %753 = vmatpush1.xpose.msra.mxu0 0.0
    %754 = vmatprep.subr.mxu0 0.0
    %755 = vmatpush1.xpose.msra.mxu0 0.0
    %756 = vmatprep.subr.mxu0 0.0
    %757 = vmatpush1.xpose.msra.mxu0 0.0
    %758 = vmatprep.subr.mxu0 0.0
    %759 = vmatpush1.xpose.msra.mxu0 0.0
    %760 = vmatprep.subr.mxu0 0.0
    %761 = vmatpush1.xpose.msra.mxu0 0.0
    %762 = vmatprep.subr.mxu0 0.0
    %763 = vmatpush1.xpose.msra.mxu0 0.0
    %764 = vmatprep.subr.mxu0 0.0
    %765 = vmatpush1.xpose.msra.mxu0 0.0
    %766 = vmatprep.subr.mxu0 0.0
    %767 = vmatpush1.xpose.msra.mxu0 0.0
    %768 = vmatprep.subr.mxu0 0.0
    %769 = vmatpush1.xpose.msra.mxu0 0.0
    %770 = vmatprep.mubr.f32.mxu0 0.0
    %771 = vmatmul.mubr.f32.gmra.mrb[0].mxu0 %v704
    %v772 = vpop.f32.mrb[0].mxu0
    %v773 = vadd.f32 0.0, %v772
    %v774 = vpop.f32.mrb[0].mxu0
    %775 = vdwg.mxu0
    %v776 = vld [vmem:[#allocation2] sm:$0xff]
    %v777 = vld [vmem:[#allocation2 + $0x8] sm:$0xff]
    %v778 = vld [vmem:[#allocation2 + $0x10] sm:$0xff]
    %v779 = vld [vmem:[#allocation2 + $0x18] sm:$0xff]
    %v780 = vld [vmem:[#allocation2 + $0x20] sm:$0xff]
    %v781 = vld [vmem:[#allocation2 + $0x28] sm:$0xff]
    %v782 = vld [vmem:[#allocation2 + $0x30] sm:$0xff]
    %v783 = vld [vmem:[#allocation2 + $0x38] sm:$0xff]
    %v784 = vmul.f32 %v776, %v240
    %v785 = vmul.f32 %v777, %v241
    %v786 = vmul.f32 %v778, %v242
    %v787 = vmul.f32 %v779, %v243
    %v788 = vmul.f32 %v780, %v244
    %v789 = vmul.f32 %v781, %v245
    %v790 = vmul.f32 %v782, %v246
    %v791 = vmul.f32 %v783, %v247
    %v792 = vrot.slane %v784, 7
    %v793 = vrot.slane %v785, 7
    %v794 = vrot.slane %v786, 7
    %v795 = vrot.slane %v787, 7
    %v796 = vrot.slane %v788, 7
    %v797 = vrot.slane %v789, 7
    %v798 = vrot.slane %v790, 7
    %v799 = vrot.slane %v791, 7
    %vm800 = vcmp.lt.s32.totalorder %v168, 1
    %v801 = vsel %vm800, %v798, %v799
    %v802 = vsel %vm800, %v797, %v798
    %v803 = vsel %vm800, %v796, %v797
    %v804 = vsel %vm800, %v795, %v796
    %v805 = vsel %vm800, %v794, %v795
    %v806 = vsel %vm800, %v793, %v794
    %v807 = vsel %vm800, %v792, %v793
    %v808 = vsel %vm800, %v799, %v792
    %v809 = vpack.c.bf16 %v807, %v808
    %v810 = vpack.c.bf16 %v805, %v806
    %v811 = vpack.c.bf16 %v803, %v804
    %v812 = vpack.c.bf16 %v801, %v802
    %v813 = vpack.c.bf16 %v785, %v784
    %v814 = vpack.c.bf16 %v787, %v786
    %v815 = vpack.c.bf16 %v789, %v788
    %v816 = vpack.c.bf16 %v791, %v790
    %v817 = vrot.slane %v784, 1
    %v818 = vrot.slane %v785, 1
    %v819 = vrot.slane %v786, 1
    %v820 = vrot.slane %v787, 1
    %v821 = vrot.slane %v788, 1
    %v822 = vrot.slane %v789, 1
    %v823 = vrot.slane %v790, 1
    %v824 = vrot.slane %v791, 1
    %vm825 = vcmp.lt.s32.totalorder %v168, 7
    %v826 = vsel %vm825, %v823, %v824
    %v827 = vsel %vm825, %v822, %v823
    %v828 = vsel %vm825, %v821, %v822
    %v829 = vsel %vm825, %v820, %v821
    %v830 = vsel %vm825, %v819, %v820
    %v831 = vsel %vm825, %v818, %v819
    %v832 = vsel %vm825, %v817, %v818
    %v833 = vsel %vm825, %v824, %v817
    %v834 = vpack.c.bf16 %v831, %v832
    %v835 = vpack.c.bf16 %v829, %v830
    %v836 = vpack.c.bf16 %v827, %v828
    %v837 = vpack.c.bf16 %v833, %v826
    %842 = vrot.lane.b32.xlu0 %v813, 32
    %v843 = vpop.permute.xlu0 %842
    %844 = vrot.lane.b32.xlu0 %v814, 32
    %v845 = vpop.permute.xlu0 %844
    %846 = vrot.lane.b32.xlu0 %v815, 32
    %v847 = vpop.permute.xlu0 %846
    %848 = vrot.lane.b32.xlu0 %v816, 32
    %v849 = vpop.permute.xlu0 %848
    %854 = vrot.lane.b32.xlu0 %v834, 64
    %v855 = vpop.permute.xlu0 %854
    %856 = vrot.lane.b32.xlu0 %v835, 64
    %v857 = vpop.permute.xlu0 %856
    %858 = vrot.lane.b32.xlu0 %v836, 64
    %v859 = vpop.permute.xlu0 %858
    %860 = vrot.lane.b32.xlu0 %v837, 64
    %v861 = vpop.permute.xlu0 %860
    %v864 = vsel %vm570, %v809, %v843
    %v867 = vsel %vm570, %v810, %v845
    %v870 = vsel %vm570, %v811, %v847
    %v873 = vsel %vm570, %v812, %v849
    %vm874 = vcmask 523264
    %v876 = vsel %vm874, %v864, %v855
    %v878 = vsel %vm874, %v867, %v857
    %v880 = vsel %vm874, %v870, %v859
    %v882 = vsel %vm874, %v873, %v861
    %v883 = vld [vmem:[%s2] sm:$0xf]
    %v884 = vld [vmem:[%s2 + $0x4] sm:$0xf]
    %v885 = vld [vmem:[%s2 + $0x8] sm:$0xf]
    %v886 = vld [vmem:[%s2 + $0xc] sm:$0xf]
    %v887 = vld [vmem:[%s2 + $0x10] sm:$0xf]
    %v888 = vld [vmem:[%s2 + $0x14] sm:$0xf]
    %v889 = vld [vmem:[%s2 + $0x18] sm:$0xf]
    %v890 = vld [vmem:[%s2 + $0x1c] sm:$0xf]
    %v891 = vld [vmem:[%s2 + $0x20] sm:$0xf]
    %v892 = vld [vmem:[%s2 + $0x24] sm:$0xf]
    %v893 = vld [vmem:[%s2 + $0x28] sm:$0xf]
    %v894 = vld [vmem:[%s2 + $0x2c] sm:$0xf]
    %v895 = vld [vmem:[%s3 + $0x97] sm:$0x1]
    %v896 = vlaneseq
    %v897 = vshrl.u32 %v896, 7
    %v898 = vsub.s32 0, %v897
    %v899 = vrot.slane %v895, %v898
    %v912 = vunpack.c.l.b16 %v883
    %v913 = vunpack.c.l.b16 %v884
    %v914 = vunpack.c.l.b16 %v885
    %v915 = vunpack.c.l.b16 %v886
    %v916 = vunpack.c.l.b16 %v887
    %v917 = vunpack.c.l.b16 %v888
    %v918 = vunpack.c.l.b16 %v889
    %v919 = vunpack.c.l.b16 %v890
    %v920 = vunpack.c.l.b16 %v891
    %v921 = vunpack.c.l.b16 %v892
    %v922 = vunpack.c.l.b16 %v893
    %v923 = vunpack.c.l.b16 %v894
    %v924 = vpack.c.b16 %v913, %v912
    %v925 = vpack.c.b16 %v915, %v914
    %v926 = vpack.c.b16 %v917, %v916
    %v927 = vpack.c.b16 %v919, %v918
    %v928 = vpack.c.b16 %v921, %v920
    %v929 = vpack.c.b16 %v923, %v922
    %vm936 = vcmask 785408
    %v937 = vsel %vm936, %v876, 0
    %v939 = vsel %vm936, %v878, 0
    %v941 = vsel %vm936, %v880, 0
    %v943 = vsel %vm936, %v882, 0
    %945 = vmatprep.subr.bf16.mxu0 0
    %946 = vmatpush1.bf16.msra.mxu0 %v924
    %947 = vmatprep.subr.bf16.mxu0 0
    %948 = vmatpush1.bf16.msra.mxu0 %v925
    %949 = vmatprep.subr.bf16.mxu0 0
    %950 = vmatpush1.bf16.msra.mxu0 %v926
    %951 = vmatprep.subr.bf16.mxu0 0
    %952 = vmatpush1.bf16.msra.mxu0 %v927
    %953 = vmatprep.subr.bf16.mxu0 0
    %954 = vmatpush1.bf16.msra.mxu0 %v928
    %955 = vmatprep.subr.bf16.mxu0 0
    %956 = vmatpush1.bf16.msra.mxu0 %v929
    %957 = vmatprep.subr.bf16.mxu0 0
    %958 = vmatpush1.bf16.msra.mxu0 0
    %959 = vmatprep.subr.bf16.mxu0 0
    %960 = vmatpush1.bf16.msra.mxu0 0
    %961 = vmatprep.subr.bf16.mxu0 0
    %962 = vmatpush1.bf16.msra.mxu0 0
    %963 = vmatprep.subr.bf16.mxu0 0
    %964 = vmatpush1.bf16.msra.mxu0 0
    %965 = vmatprep.subr.bf16.mxu0 0
    %966 = vmatpush1.bf16.msra.mxu0 0
    %967 = vmatprep.subr.bf16.mxu0 0
    %968 = vmatpush1.bf16.msra.mxu0 0
    %969 = vmatprep.subr.bf16.mxu0 0
    %970 = vmatpush1.bf16.msra.mxu0 0
    %971 = vmatprep.subr.bf16.mxu0 0
    %972 = vmatpush1.bf16.msra.mxu0 0
    %973 = vmatprep.subr.bf16.mxu0 0
    %974 = vmatpush1.bf16.msra.mxu0 0
    %975 = vmatprep.subr.bf16.mxu0 0
    %976 = vmatpush1.bf16.msra.mxu0 0
    %977 = vmatprep.mubr.bf16.mxu0 0
    %978 = vmatmul.mubr.bf16.gmra.mrb[0].mxu0 %v937
    %v979 = vpop.f32.mrb[0].mxu0
    %v980 = vadd.f32 %v899, %v979
    %v981 = vpop.f32.mrb[0].mxu0
    %v982 = vpop.f32.mrb[0].mxu0
    %v983 = vadd.f32 %v899, %v982
    %v984 = vpop.f32.mrb[0].mxu0
    %985 = vmatprep.mubr.bf16.mxu0 0
    %986 = vmatmul.mubr.bf16.gmra.mrb[0].mxu0 %v939
    %v987 = vpop.f32.mrb[0].mxu0
    %v988 = vadd.f32 %v899, %v987
    %v989 = vpop.f32.mrb[0].mxu0
    %v990 = vpop.f32.mrb[0].mxu0
    %v991 = vadd.f32 %v899, %v990
    %v992 = vpop.f32.mrb[0].mxu0
    %993 = vmatprep.mubr.bf16.mxu0 0
    %994 = vmatmul.mubr.bf16.gmra.mrb[0].mxu0 %v941
    %v995 = vpop.f32.mrb[0].mxu0
    %v996 = vadd.f32 %v899, %v995
    %v997 = vpop.f32.mrb[0].mxu0
    %v998 = vpop.f32.mrb[0].mxu0
    %v999 = vadd.f32 %v899, %v998
    %v1000 = vpop.f32.mrb[0].mxu0
    %1001 = vmatprep.mubr.bf16.mxu0 0
    %1002 = vmatmul.mubr.bf16.gmra.mrb[0].mxu0 %v943
    %v1003 = vpop.f32.mrb[0].mxu0
    %v1004 = vadd.f32 %v899, %v1003
    %v1005 = vpop.f32.mrb[0].mxu0
    %v1006 = vpop.f32.mrb[0].mxu0
    %v1007 = vadd.f32 %v899, %v1006
    %v1008 = vpop.f32.mrb[0].mxu0
    %1009 = vdwg.mxu0
    %v1010 = vtanh.pop %v980
    %v1011 = vtanh.pop %v983
    %v1012 = vtanh.pop %v988
    %v1013 = vtanh.pop %v991
    %v1014 = vtanh.pop %v996
    %v1015 = vtanh.pop %v999
    %v1016 = vtanh.pop %v1004
    %v1017 = vtanh.pop %v1007
    %v1018 = vmul.f32 %v1010, %v240
    %v1019 = vmul.f32 %v1011, %v241
    %v1020 = vmul.f32 %v1012, %v242
    %v1021 = vmul.f32 %v1013, %v243
    %v1022 = vmul.f32 %v1014, %v244
    %v1023 = vmul.f32 %v1015, %v245
    %v1024 = vmul.f32 %v1016, %v246
    %v1025 = vmul.f32 %v1017, %v247
    %v1026 = vrot.slane %v1018, 6
    %v1027 = vrot.slane %v1019, 6
    %v1028 = vrot.slane %v1020, 6
    %v1029 = vrot.slane %v1021, 6
    %v1030 = vrot.slane %v1022, 6
    %v1031 = vrot.slane %v1023, 6
    %v1032 = vrot.slane %v1024, 6
    %v1033 = vrot.slane %v1025, 6
    %vm1034 = vcmp.lt.s32.totalorder %v168, 2
    %v1035 = vsel %vm1034, %v1032, %v1033
    %v1036 = vsel %vm1034, %v1031, %v1032
    %v1037 = vsel %vm1034, %v1030, %v1031
    %v1038 = vsel %vm1034, %v1029, %v1030
    %v1039 = vsel %vm1034, %v1028, %v1029
    %v1040 = vsel %vm1034, %v1027, %v1028
    %v1041 = vsel %vm1034, %v1026, %v1027
    %v1042 = vsel %vm1034, %v1033, %v1026
    %v1043 = vpack.c.bf16 %v1041, %v1042
    %v1044 = vpack.c.bf16 %v1039, %v1040
    %v1045 = vpack.c.bf16 %v1037, %v1038
    %v1046 = vpack.c.bf16 %v1035, %v1036
    %v1047 = vrot.slane %v1018, 7
    %v1048 = vrot.slane %v1019, 7
    %v1049 = vrot.slane %v1020, 7
    %v1050 = vrot.slane %v1021, 7
    %v1051 = vrot.slane %v1022, 7
    %v1052 = vrot.slane %v1023, 7
    %v1053 = vrot.slane %v1024, 7
    %v1054 = vrot.slane %v1025, 7
    %v1055 = vsel %vm800, %v1053, %v1054
    %v1056 = vsel %vm800, %v1052, %v1053
    %v1057 = vsel %vm800, %v1051, %v1052
    %v1058 = vsel %vm800, %v1050, %v1051
    %v1059 = vsel %vm800, %v1049, %v1050
    %v1060 = vsel %vm800, %v1048, %v1049
    %v1061 = vsel %vm800, %v1047, %v1048
    %v1062 = vsel %vm800, %v1054, %v1047
    %v1063 = vpack.c.bf16 %v1061, %v1062
    %v1064 = vpack.c.bf16 %v1059, %v1060
    %v1065 = vpack.c.bf16 %v1057, %v1058
    %v1066 = vpack.c.bf16 %v1055, %v1056
    %v1067 = vpack.c.bf16 %v1019, %v1018
    %v1068 = vpack.c.bf16 %v1021, %v1020
    %v1069 = vpack.c.bf16 %v1023, %v1022
    %v1070 = vpack.c.bf16 %v1025, %v1024
    %v1071 = vrot.slane %v1018, 1
    %v1072 = vrot.slane %v1019, 1
    %v1073 = vrot.slane %v1020, 1
    %v1074 = vrot.slane %v1021, 1
    %v1075 = vrot.slane %v1022, 1
    %v1076 = vrot.slane %v1023, 1
    %v1077 = vrot.slane %v1024, 1
    %v1078 = vrot.slane %v1025, 1
    %v1079 = vsel %vm825, %v1077, %v1078
    %v1080 = vsel %vm825, %v1076, %v1077
    %v1081 = vsel %vm825, %v1075, %v1076
    %v1082 = vsel %vm825, %v1074, %v1075
    %v1083 = vsel %vm825, %v1073, %v1074
    %v1084 = vsel %vm825, %v1072, %v1073
    %v1085 = vsel %vm825, %v1071, %v1072
    %v1086 = vsel %vm825, %v1078, %v1071
    %v1087 = vpack.c.bf16 %v1084, %v1085
    %v1088 = vpack.c.bf16 %v1082, %v1083
    %v1089 = vpack.c.bf16 %v1080, %v1081
    %v1090 = vpack.c.bf16 %v1086, %v1079
    %v1091 = vrot.slane %v1018, 2
    %v1092 = vrot.slane %v1019, 2
    %v1093 = vrot.slane %v1020, 2
    %v1094 = vrot.slane %v1021, 2
    %v1095 = vrot.slane %v1022, 2
    %v1096 = vrot.slane %v1023, 2
    %v1097 = vrot.slane %v1024, 2
    %v1098 = vrot.slane %v1025, 2
    %vm1099 = vcmp.lt.s32.totalorder %v168, 6
    %v1100 = vsel %vm1099, %v1097, %v1098
    %v1101 = vsel %vm1099, %v1096, %v1097
    %v1102 = vsel %vm1099, %v1095, %v1096
    %v1103 = vsel %vm1099, %v1094, %v1095
    %v1104 = vsel %vm1099, %v1093, %v1094
    %v1105 = vsel %vm1099, %v1092, %v1093
    %v1106 = vsel %vm1099, %v1091, %v1092
    %v1107 = vsel %vm1099, %v1098, %v1091
    %v1108 = vpack.c.bf16 %v1105, %v1106
    %v1109 = vpack.c.bf16 %v1103, %v1104
    %v1110 = vpack.c.bf16 %v1101, %v1102
    %v1111 = vpack.c.bf16 %v1107, %v1100
    %1116 = vrot.lane.b32.xlu0 %v1063, 64
    %v1117 = vpop.permute.xlu0 %1116
    %1118 = vrot.lane.b32.xlu0 %v1064, 64
    %v1119 = vpop.permute.xlu0 %1118
    %1120 = vrot.lane.b32.xlu0 %v1065, 64
    %v1121 = vpop.permute.xlu0 %1120
    %1122 = vrot.lane.b32.xlu0 %v1066, 64
    %v1123 = vpop.permute.xlu0 %1122
    %1128 = vrot.lane.b32.xlu0 %v1087, 64
    %v1129 = vpop.permute.xlu0 %1128
    %1130 = vrot.lane.b32.xlu0 %v1088, 64
    %v1131 = vpop.permute.xlu0 %1130
    %1132 = vrot.lane.b32.xlu0 %v1089, 64
    %v1133 = vpop.permute.xlu0 %1132
    %1134 = vrot.lane.b32.xlu0 %v1090, 64
    %v1135 = vpop.permute.xlu0 %1134
    %v1138 = vsel %vm874, %v1043, %v1117
    %v1142 = vsel %vm874, %v1044, %v1119
    %v1146 = vsel %vm874, %v1045, %v1121
    %v1150 = vsel %vm874, %v1046, %v1123
    %v1154 = vsel %vm874, %v1067, %v1129
    %v1158 = vsel %vm874, %v1068, %v1131
    %v1162 = vsel %vm874, %v1069, %v1133
    %v1166 = vsel %vm874, %v1070, %v1135
    %v1168 = vld [vmem:[%s2 + $0x30] sm:$0xf]
    %v1169 = vld [vmem:[%s2 + $0x34] sm:$0xf]
    %v1170 = vld [vmem:[%s2 + $0x38] sm:$0xf]
    %v1171 = vld [vmem:[%s2 + $0x3c] sm:$0xf]
    %v1172 = vld [vmem:[%s2 + $0x40] sm:$0xf]
    %v1173 = vld [vmem:[%s2 + $0x44] sm:$0xf]
    %v1174 = vld [vmem:[%s2 + $0x48] sm:$0xf]
    %v1175 = vld [vmem:[%s2 + $0x4c] sm:$0xf]
    %v1176 = vld [vmem:[%s2 + $0x50] sm:$0xf]
    %v1177 = vld [vmem:[%s2 + $0x54] sm:$0xf]
    %v1178 = vld [vmem:[%s2 + $0x58] sm:$0xf]
    %v1179 = vld [vmem:[%s2 + $0x5c] sm:$0xf]
    %v1180 = vld [vmem:[%s2 + $0x60] sm:$0xf]
    %v1181 = vld [vmem:[%s2 + $0x64] sm:$0xf]
    %v1182 = vld [vmem:[%s2 + $0x68] sm:$0xf]
    %v1183 = vld [vmem:[%s2 + $0x6c] sm:$0xf]
    %v1184 = vld [vmem:[%s2 + $0x70] sm:$0xf]
    %v1185 = vld [vmem:[%s2 + $0x74] sm:$0xf]
    %v1186 = vld [vmem:[%s2 + $0x78] sm:$0xf]
    %v1187 = vld [vmem:[%s2 + $0x7c] sm:$0xf]
    %v1188 = vld [vmem:[%s2 + $0x80] sm:$0xf]
    %v1189 = vld [vmem:[%s2 + $0x84] sm:$0xf]
    %v1190 = vld [vmem:[%s2 + $0x88] sm:$0xf]
    %v1191 = vld [vmem:[%s2 + $0x8c] sm:$0xf]
    %v1192 = vld [vmem:[%s2 + $0x90] sm:$0xf]
    %v1193 = vld [vmem:[%s2 + $0x94] sm:$0xf]
    %v1194 = vld [vmem:[%s2 + $0x98] sm:$0xf]
    %v1195 = vld [vmem:[%s2 + $0x9c] sm:$0xf]
    %v1196 = vld [vmem:[%s2 + $0xa0] sm:$0xf]
    %v1197 = vld [vmem:[%s2 + $0xa4] sm:$0xf]
    %v1198 = vld [vmem:[%s2 + $0xa8] sm:$0xf]
    %v1199 = vld [vmem:[%s2 + $0xac] sm:$0xf]
    %v1200 = vld [vmem:[%s2 + $0xb0] sm:$0xf]
    %v1201 = vld [vmem:[%s2 + $0xb4] sm:$0xf]
    %v1202 = vld [vmem:[%s2 + $0xb8] sm:$0xf]
    %v1203 = vld [vmem:[%s2 + $0xbc] sm:$0xf]
    %v1204 = vld [vmem:[%s2 + $0xc0] sm:$0xf]
    %v1205 = vld [vmem:[%s2 + $0xc4] sm:$0xf]
    %v1206 = vld [vmem:[%s2 + $0xc8] sm:$0xf]
    %v1207 = vld [vmem:[%s2 + $0xcc] sm:$0xf]
    %v1208 = vld [vmem:[%s3 + $0x98] sm:$0x1]
    %v1209 = vlaneseq
    %v1210 = vshrl.u32 %v1209, 7
    %v1211 = vsub.s32 0, %v1210
    %v1212 = vrot.slane %v1208, %v1211
    %v1253 = vunpack.c.l.b16 %v1168
    %v1254 = vunpack.c.l.b16 %v1169
    %v1255 = vunpack.c.l.b16 %v1170
    %v1256 = vunpack.c.l.b16 %v1171
    %v1257 = vunpack.c.l.b16 %v1172
    %v1258 = vunpack.c.l.b16 %v1173
    %v1259 = vunpack.c.l.b16 %v1174
    %v1260 = vunpack.c.l.b16 %v1175
    %v1261 = vunpack.c.l.b16 %v1176
    %v1262 = vunpack.c.l.b16 %v1177
    %v1263 = vunpack.c.l.b16 %v1178
    %v1264 = vunpack.c.l.b16 %v1179
    %v1265 = vunpack.c.l.b16 %v1180
    %v1266 = vunpack.c.l.b16 %v1181
    %v1267 = vunpack.c.l.b16 %v1182
    %v1268 = vunpack.c.l.b16 %v1183
    %v1269 = vunpack.c.l.b16 %v1184
    %v1270 = vunpack.c.l.b16 %v1185
    %v1271 = vunpack.c.l.b16 %v1186
    %v1272 = vunpack.c.l.b16 %v1187
    %v1273 = vunpack.c.l.b16 %v1188
    %v1274 = vunpack.c.l.b16 %v1189
    %v1275 = vunpack.c.l.b16 %v1190
    %v1276 = vunpack.c.l.b16 %v1191
    %v1277 = vunpack.c.l.b16 %v1192
    %v1278 = vunpack.c.l.b16 %v1193
    %v1279 = vunpack.c.l.b16 %v1194
    %v1280 = vunpack.c.l.b16 %v1195
    %v1281 = vunpack.c.l.b16 %v1196
    %v1282 = vunpack.c.l.b16 %v1197
    %v1283 = vunpack.c.l.b16 %v1198
    %v1284 = vunpack.c.l.b16 %v1199
    %v1285 = vunpack.c.l.b16 %v1200
    %v1286 = vunpack.c.l.b16 %v1201
    %v1287 = vunpack.c.l.b16 %v1202
    %v1288 = vunpack.c.l.b16 %v1203
    %v1289 = vunpack.c.l.b16 %v1204
    %v1290 = vunpack.c.l.b16 %v1205
    %v1291 = vunpack.c.l.b16 %v1206
    %v1292 = vunpack.c.l.b16 %v1207
    %v1293 = vpack.c.b16 %v1254, %v1253
    %v1294 = vpack.c.b16 %v1256, %v1255
    %v1295 = vpack.c.b16 %v1258, %v1257
    %v1296 = vpack.c.b16 %v1260, %v1259
    %v1297 = vpack.c.b16 %v1262, %v1261
    %v1298 = vpack.c.b16 %v1264, %v1263
    %v1299 = vpack.c.b16 %v1266, %v1265
    %v1300 = vpack.c.b16 %v1268, %v1267
    %v1301 = vpack.c.b16 %v1270, %v1269
    %v1302 = vpack.c.b16 %v1272, %v1271
    %v1303 = vpack.c.b16 %v1274, %v1273
    %v1304 = vpack.c.b16 %v1276, %v1275
    %v1305 = vpack.c.b16 %v1278, %v1277
    %v1306 = vpack.c.b16 %v1280, %v1279
    %v1307 = vpack.c.b16 %v1282, %v1281
    %v1308 = vpack.c.b16 %v1284, %v1283
    %v1309 = vpack.c.b16 %v1286, %v1285
    %v1310 = vpack.c.b16 %v1288, %v1287
    %v1311 = vpack.c.b16 %v1290, %v1289
    %v1312 = vpack.c.b16 %v1292, %v1291
    %v1334 = vsel %vm874, %v1108, 0
    %v1337 = vsel %vm874, %v1109, 0
    %v1340 = vsel %vm874, %v1110, 0
    %v1343 = vsel %vm874, %v1111, 0
    %1345 = vmatprep.subr.bf16.mxu0 0
    %1346 = vmatpush1.bf16.msra.mxu0 %v1293
    %1347 = vmatprep.subr.bf16.mxu0 0
    %1348 = vmatpush1.bf16.msra.mxu0 %v1294
    %1349 = vmatprep.subr.bf16.mxu0 0
    %1350 = vmatpush1.bf16.msra.mxu0 %v1295
    %1351 = vmatprep.subr.bf16.mxu0 0
    %1352 = vmatpush1.bf16.msra.mxu0 %v1296
    %1353 = vmatprep.subr.bf16.mxu0 0
    %1354 = vmatpush1.bf16.msra.mxu0 %v1297
    %1355 = vmatprep.subr.bf16.mxu0 0
    %1356 = vmatpush1.bf16.msra.mxu0 %v1298
    %1357 = vmatprep.subr.bf16.mxu0 0
    %1358 = vmatpush1.bf16.msra.mxu0 %v1299
    %1359 = vmatprep.subr.bf16.mxu0 0
    %1360 = vmatpush1.bf16.msra.mxu0 %v1300
    %1361 = vmatprep.subr.bf16.mxu0 0
    %1362 = vmatpush1.bf16.msra.mxu0 %v1301
    %1363 = vmatprep.subr.bf16.mxu0 0
    %1364 = vmatpush1.bf16.msra.mxu0 %v1302
    %1365 = vmatprep.subr.bf16.mxu0 0
    %1366 = vmatpush1.bf16.msra.mxu0 %v1303
    %1367 = vmatprep.subr.bf16.mxu0 0
    %1368 = vmatpush1.bf16.msra.mxu0 %v1304
    %1369 = vmatprep.subr.bf16.mxu0 0
    %1370 = vmatpush1.bf16.msra.mxu0 %v1305
    %1371 = vmatprep.subr.bf16.mxu0 0
    %1372 = vmatpush1.bf16.msra.mxu0 %v1306
    %1373 = vmatprep.subr.bf16.mxu0 0
    %1374 = vmatpush1.bf16.msra.mxu0 %v1307
    %1375 = vmatprep.subr.bf16.mxu0 0
    %1376 = vmatpush1.bf16.msra.mxu0 %v1308
    %1377 = vmatprep.mubr.bf16.mxu0 %v1154
    %1378 = vmatmul.mubr.bf16.gmra.mrb[0].mxu0 %v1138
    %v1379 = vpop.f32.mrb[0].mxu0
    %v1380 = vadd.f32 %v1212, %v1379
    %v1381 = vpop.f32.mrb[0].mxu0
    %v1382 = vpop.f32.mrb[0].mxu0
    %v1383 = vadd.f32 %v1212, %v1382
    %v1384 = vpop.f32.mrb[0].mxu0
    %1385 = vmatprep.mubr.bf16.mxu0 %v1158
    %1386 = vmatmul.mubr.bf16.gmra.mrb[0].mxu0 %v1142
    %v1387 = vpop.f32.mrb[0].mxu0
    %v1388 = vadd.f32 %v1212, %v1387
    %v1389 = vpop.f32.mrb[0].mxu0
    %v1390 = vpop.f32.mrb[0].mxu0
    %v1391 = vadd.f32 %v1212, %v1390
    %v1392 = vpop.f32.mrb[0].mxu0
    %1393 = vmatprep.mubr.bf16.mxu0 %v1162
    %1394 = vmatmul.mubr.bf16.gmra.mrb[0].mxu0 %v1146
    %v1395 = vpop.f32.mrb[0].mxu0
    %v1396 = vadd.f32 %v1212, %v1395
    %v1397 = vpop.f32.mrb[0].mxu0
    %v1398 = vpop.f32.mrb[0].mxu0
    %v1399 = vadd.f32 %v1212, %v1398
    %v1400 = vpop.f32.mrb[0].mxu0
    %1401 = vmatprep.mubr.bf16.mxu0 %v1166
    %1402 = vmatmul.mubr.bf16.gmra.mrb[0].mxu0 %v1150
    %v1403 = vpop.f32.mrb[0].mxu0
    %v1404 = vadd.f32 %v1212, %v1403
    %v1405 = vpop.f32.mrb[0].mxu0
    %v1406 = vpop.f32.mrb[0].mxu0
    %v1407 = vadd.f32 %v1212, %v1406
    %v1408 = vpop.f32.mrb[0].mxu0
    %1409 = vdwg.mxu0
    %1410 = vmatprep.subr.bf16.mxu0 0
    %1411 = vmatpush1.bf16.msra.mxu0 %v1309
    %1412 = vmatprep.subr.bf16.mxu0 0
    %1413 = vmatpush1.bf16.msra.mxu0 %v1310
    %1414 = vmatprep.subr.bf16.mxu0 0
    %1415 = vmatpush1.bf16.msra.mxu0 %v1311
    %1416 = vmatprep.subr.bf16.mxu0 0
    %1417 = vmatpush1.bf16.msra.mxu0 %v1312
    %1418 = vmatprep.subr.bf16.mxu0 0
    %1419 = vmatpush1.bf16.msra.mxu0 0
    %1420 = vmatprep.subr.bf16.mxu0 0
    %1421 = vmatpush1.bf16.msra.mxu0 0
    %1422 = vmatprep.subr.bf16.mxu0 0
    %1423 = vmatpush1.bf16.msra.mxu0 0
    %1424 = vmatprep.subr.bf16.mxu0 0
    %1425 = vmatpush1.bf16.msra.mxu0 0
    %1426 = vmatprep.subr.bf16.mxu0 0
    %1427 = vmatpush1.bf16.msra.mxu0 0
    %1428 = vmatprep.subr.bf16.mxu0 0
    %1429 = vmatpush1.bf16.msra.mxu0 0
    %1430 = vmatprep.subr.bf16.mxu0 0
    %1431 = vmatpush1.bf16.msra.mxu0 0
    %1432 = vmatprep.subr.bf16.mxu0 0
    %1433 = vmatpush1.bf16.msra.mxu0 0
    %1434 = vmatprep.subr.bf16.mxu0 0
    %1435 = vmatpush1.bf16.msra.mxu0 0
    %1436 = vmatprep.subr.bf16.mxu0 0
    %1437 = vmatpush1.bf16.msra.mxu0 0
    %1438 = vmatprep.subr.bf16.mxu0 0
    %1439 = vmatpush1.bf16.msra.mxu0 0
    %1440 = vmatprep.subr.bf16.mxu0 0
    %1441 = vmatpush1.bf16.msra.mxu0 0
    %1442 = vmatprep.mubr.bf16.mxu0 0
    %1443 = vmatmul.mubr.bf16.gmra.mrb[0].mxu0 %v1334
    %v1444 = vpop.f32.mrb[0].mxu0
    %v1445 = vadd.f32 %v1380, %v1444
    %v1446 = vpop.f32.mrb[0].mxu0
    %v1447 = vpop.f32.mrb[0].mxu0
    %v1448 = vadd.f32 %v1383, %v1447
    %v1449 = vpop.f32.mrb[0].mxu0
    %1450 = vmatprep.mubr.bf16.mxu0 0
    %1451 = vmatmul.mubr.bf16.gmra.mrb[0].mxu0 %v1337
    %v1452 = vpop.f32.mrb[0].mxu0
    %v1453 = vadd.f32 %v1388, %v1452
    %v1454 = vpop.f32.mrb[0].mxu0
    %v1455 = vpop.f32.mrb[0].mxu0
    %v1456 = vadd.f32 %v1391, %v1455
    %v1457 = vpop.f32.mrb[0].mxu0
    %1458 = vmatprep.mubr.bf16.mxu0 0
    %1459 = vmatmul.mubr.bf16.gmra.mrb[0].mxu0 %v1340
    %v1460 = vpop.f32.mrb[0].mxu0
    %v1461 = vadd.f32 %v1396, %v1460
    %v1462 = vpop.f32.mrb[0].mxu0
    %v1463 = vpop.f32.mrb[0].mxu0
    %v1464 = vadd.f32 %v1399, %v1463
    %v1465 = vpop.f32.mrb[0].mxu0
    %1466 = vmatprep.mubr.bf16.mxu0 0
    %1467 = vmatmul.mubr.bf16.gmra.mrb[0].mxu0 %v1343
    %v1468 = vpop.f32.mrb[0].mxu0
    %v1469 = vadd.f32 %v1404, %v1468
    %v1470 = vpop.f32.mrb[0].mxu0
    %v1471 = vpop.f32.mrb[0].mxu0
    %v1472 = vadd.f32 %v1407, %v1471
    %v1473 = vpop.f32.mrb[0].mxu0
    %1474 = vdwg.mxu0
    %v1475 = vtanh.pop %v1445
    %v1476 = vtanh.pop %v1448
    %v1477 = vtanh.pop %v1453
    %v1478 = vtanh.pop %v1456
    %v1479 = vtanh.pop %v1461
    %v1480 = vtanh.pop %v1464
    %v1481 = vtanh.pop %v1469
    %v1482 = vtanh.pop %v1472
    %v1483 = vmul.f32 %v1475, %v240
    %v1484 = vmul.f32 %v1476, %v241
    %v1485 = vmul.f32 %v1477, %v242
    %v1486 = vmul.f32 %v1478, %v243
    %v1487 = vmul.f32 %v1479, %v244
    %v1488 = vmul.f32 %v1480, %v245
    %v1489 = vmul.f32 %v1481, %v246
    %v1490 = vmul.f32 %v1482, %v247
    %v1491 = vrot.slane %v1483, 4
    %v1492 = vrot.slane %v1484, 4
    %v1493 = vrot.slane %v1485, 4
    %v1494 = vrot.slane %v1486, 4
    %v1495 = vrot.slane %v1487, 4
    %v1496 = vrot.slane %v1488, 4
    %v1497 = vrot.slane %v1489, 4
    %v1498 = vrot.slane %v1490, 4
    %vm1499 = vcmp.lt.s32.totalorder %v168, 4
    %v1500 = vsel %vm1499, %v1497, %v1498
    %v1501 = vsel %vm1499, %v1496, %v1497
    %v1502 = vsel %vm1499, %v1495, %v1496
    %v1503 = vsel %vm1499, %v1494, %v1495
    %v1504 = vsel %vm1499, %v1493, %v1494
    %v1505 = vsel %vm1499, %v1492, %v1493
    %v1506 = vsel %vm1499, %v1491, %v1492
    %v1507 = vsel %vm1499, %v1498, %v1491
    %v1508 = vpack.c.bf16 %v1506, %v1507
    %v1509 = vpack.c.bf16 %v1504, %v1505
    %v1510 = vpack.c.bf16 %v1502, %v1503
    %v1511 = vpack.c.bf16 %v1500, %v1501
    %v1512 = vrot.slane %v1483, 6
    %v1513 = vrot.slane %v1484, 6
    %v1514 = vrot.slane %v1485, 6
    %v1515 = vrot.slane %v1486, 6
    %v1516 = vrot.slane %v1487, 6
    %v1517 = vrot.slane %v1488, 6
    %v1518 = vrot.slane %v1489, 6
    %v1519 = vrot.slane %v1490, 6
    %v1520 = vsel %vm1034, %v1518, %v1519
    %v1521 = vsel %vm1034, %v1517, %v1518
    %v1522 = vsel %vm1034, %v1516, %v1517
    %v1523 = vsel %vm1034, %v1515, %v1516
    %v1524 = vsel %vm1034, %v1514, %v1515
    %v1525 = vsel %vm1034, %v1513, %v1514
    %v1526 = vsel %vm1034, %v1512, %v1513
    %v1527 = vsel %vm1034, %v1519, %v1512
    %v1528 = vpack.c.bf16 %v1526, %v1527
    %v1529 = vpack.c.bf16 %v1524, %v1525
    %v1530 = vpack.c.bf16 %v1522, %v1523
    %v1531 = vpack.c.bf16 %v1520, %v1521
    %v1532 = vpack.c.bf16 %v1484, %v1483
    %v1533 = vpack.c.bf16 %v1486, %v1485
    %v1534 = vpack.c.bf16 %v1488, %v1487
    %v1535 = vpack.c.bf16 %v1490, %v1489
    %v1536 = vrot.slane %v1483, 2
    %v1537 = vrot.slane %v1484, 2
    %v1538 = vrot.slane %v1485, 2
    %v1539 = vrot.slane %v1486, 2
    %v1540 = vrot.slane %v1487, 2
    %v1541 = vrot.slane %v1488, 2
    %v1542 = vrot.slane %v1489, 2
    %v1543 = vrot.slane %v1490, 2
    %v1544 = vsel %vm1099, %v1542, %v1543
    %v1545 = vsel %vm1099, %v1541, %v1542
    %v1546 = vsel %vm1099, %v1540, %v1541
    %v1547 = vsel %vm1099, %v1539, %v1540
    %v1548 = vsel %vm1099, %v1538, %v1539
    %v1549 = vsel %vm1099, %v1537, %v1538
    %v1550 = vsel %vm1099, %v1536, %v1537
    %v1551 = vsel %vm1099, %v1543, %v1536
    %v1552 = vpack.c.bf16 %v1549, %v1550
    %v1553 = vpack.c.bf16 %v1547, %v1548
    %v1554 = vpack.c.bf16 %v1545, %v1546
    %v1555 = vpack.c.bf16 %v1551, %v1544
    %v1556 = vpack.c.bf16 %v1505, %v1506
    %v1557 = vpack.c.bf16 %v1503, %v1504
    %v1558 = vpack.c.bf16 %v1501, %v1502
    %v1559 = vpack.c.bf16 %v1507, %v1500
    %1564 = vrot.lane.b32.xlu0 %v1528, 64
    %v1565 = vpop.permute.xlu0 %1564
    %1566 = vrot.lane.b32.xlu0 %v1529, 64
    %v1567 = vpop.permute.xlu0 %1566
    %1568 = vrot.lane.b32.xlu0 %v1530, 64
    %v1569 = vpop.permute.xlu0 %1568
    %1570 = vrot.lane.b32.xlu0 %v1531, 64
    %v1571 = vpop.permute.xlu0 %1570
    %1576 = vrot.lane.b32.xlu0 %v1552, 64
    %v1577 = vpop.permute.xlu0 %1576
    %1578 = vrot.lane.b32.xlu0 %v1553, 64
    %v1579 = vpop.permute.xlu0 %1578
    %1580 = vrot.lane.b32.xlu0 %v1554, 64
    %v1581 = vpop.permute.xlu0 %1580
    %1582 = vrot.lane.b32.xlu0 %v1555, 64
    %v1583 = vpop.permute.xlu0 %1582
    %v1586 = vsel %vm874, %v1508, %v1565
    %v1590 = vsel %vm874, %v1509, %v1567
    %v1594 = vsel %vm874, %v1510, %v1569
    %v1598 = vsel %vm874, %v1511, %v1571
    %v1602 = vsel %vm874, %v1532, %v1577
    %v1606 = vsel %vm874, %v1533, %v1579
    %v1610 = vsel %vm874, %v1534, %v1581
    %v1614 = vsel %vm874, %v1535, %v1583
    %v1616 = vld [vmem:[%s2 + $0xd0] sm:$0xf]
    %v1617 = vld [vmem:[%s2 + $0xd4] sm:$0xf]
    %v1618 = vld [vmem:[%s2 + $0xd8] sm:$0xf]
    %v1619 = vld [vmem:[%s2 + $0xdc] sm:$0xf]
    %v1620 = vld [vmem:[%s2 + $0xe0] sm:$0xf]
    %v1621 = vld [vmem:[%s2 + $0xe4] sm:$0xf]
    %v1622 = vld [vmem:[%s2 + $0xe8] sm:$0xf]
    %v1623 = vld [vmem:[%s2 + $0xec] sm:$0xf]
    %v1624 = vld [vmem:[%s2 + $0xf0] sm:$0xf]
    %v1625 = vld [vmem:[%s2 + $0xf4] sm:$0xf]
    %v1626 = vld [vmem:[%s2 + $0xf8] sm:$0xf]
    %v1627 = vld [vmem:[%s2 + $0xfc] sm:$0xf]
    %v1628 = vld [vmem:[%s2 + $0x100] sm:$0xf]
    %v1629 = vld [vmem:[%s2 + $0x104] sm:$0xf]
    %v1630 = vld [vmem:[%s2 + $0x108] sm:$0xf]
    %v1631 = vld [vmem:[%s2 + $0x10c] sm:$0xf]
    %v1632 = vld [vmem:[%s2 + $0x110] sm:$0xf]
    %v1633 = vld [vmem:[%s2 + $0x114] sm:$0xf]
    %v1634 = vld [vmem:[%s2 + $0x118] sm:$0xf]
    %v1635 = vld [vmem:[%s2 + $0x11c] sm:$0xf]
    %v1636 = vld [vmem:[%s2 + $0x120] sm:$0xf]
    %v1637 = vld [vmem:[%s2 + $0x124] sm:$0xf]
    %v1638 = vld [vmem:[%s2 + $0x128] sm:$0xf]
    %v1639 = vld [vmem:[%s2 + $0x12c] sm:$0xf]
    %v1640 = vld [vmem:[%s2 + $0x130] sm:$0xf]
    %v1641 = vld [vmem:[%s2 + $0x134] sm:$0xf]
    %v1642 = vld [vmem:[%s2 + $0x138] sm:$0xf]
    %v1643 = vld [vmem:[%s2 + $0x13c] sm:$0xf]
    %v1644 = vld [vmem:[%s2 + $0x140] sm:$0xf]
    %v1645 = vld [vmem:[%s2 + $0x144] sm:$0xf]
    %v1646 = vld [vmem:[%s2 + $0x148] sm:$0xf]
    %v1647 = vld [vmem:[%s2 + $0x14c] sm:$0xf]
    %v1648 = vld [vmem:[%s2 + $0x150] sm:$0xf]
    %v1649 = vld [vmem:[%s2 + $0x154] sm:$0xf]
    %v1650 = vld [vmem:[%s2 + $0x158] sm:$0xf]
    %v1651 = vld [vmem:[%s2 + $0x15c] sm:$0xf]
    %v1652 = vld [vmem:[%s2 + $0x160] sm:$0xf]
    %v1653 = vld [vmem:[%s2 + $0x164] sm:$0xf]
    %v1654 = vld [vmem:[%s2 + $0x168] sm:$0xf]
    %v1655 = vld [vmem:[%s2 + $0x16c] sm:$0xf]
    %v1656 = vld [vmem:[%s3 + $0x99] sm:$0x1]
    %v1657 = vlaneseq
    %v1658 = vshrl.u32 %v1657, 7
    %v1659 = vsub.s32 0, %v1658
    %v1660 = vrot.slane %v1656, %v1659
    %v1701 = vunpack.c.l.b16 %v1616
    %v1702 = vunpack.c.l.b16 %v1617
    %v1703 = vunpack.c.l.b16 %v1618
    %v1704 = vunpack.c.l.b16 %v1619
    %v1705 = vunpack.c.l.b16 %v1620
    %v1706 = vunpack.c.l.b16 %v1621
    %v1707 = vunpack.c.l.b16 %v1622
    %v1708 = vunpack.c.l.b16 %v1623
    %v1709 = vunpack.c.l.b16 %v1624
    %v1710 = vunpack.c.l.b16 %v1625
    %v1711 = vunpack.c.l.b16 %v1626
    %v1712 = vunpack.c.l.b16 %v1627
    %v1713 = vunpack.c.l.b16 %v1628
    %v1714 = vunpack.c.l.b16 %v1629
    %v1715 = vunpack.c.l.b16 %v1630
    %v1716 = vunpack.c.l.b16 %v1631
    %v1717 = vunpack.c.l.b16 %v1632
    %v1718 = vunpack.c.l.b16 %v1633
    %v1719 = vunpack.c.l.b16 %v1634
    %v1720 = vunpack.c.l.b16 %v1635
    %v1721 = vunpack.c.l.b16 %v1636
    %v1722 = vunpack.c.l.b16 %v1637
    %v1723 = vunpack.c.l.b16 %v1638
    %v1724 = vunpack.c.l.b16 %v1639
    %v1725 = vunpack.c.l.b16 %v1640
    %v1726 = vunpack.c.l.b16 %v1641
    %v1727 = vunpack.c.l.b16 %v1642
    %v1728 = vunpack.c.l.b16 %v1643
    %v1729 = vunpack.c.l.b16 %v1644
    %v1730 = vunpack.c.l.b16 %v1645
    %v1731 = vunpack.c.l.b16 %v1646
    %v1732 = vunpack.c.l.b16 %v1647
    %v1733 = vunpack.c.l.b16 %v1648
    %v1734 = vunpack.c.l.b16 %v1649
    %v1735 = vunpack.c.l.b16 %v1650
    %v1736 = vunpack.c.l.b16 %v1651
    %v1737 = vunpack.c.l.b16 %v1652
    %v1738 = vunpack.c.l.b16 %v1653
    %v1739 = vunpack.c.l.b16 %v1654
    %v1740 = vunpack.c.l.b16 %v1655
    %v1741 = vpack.c.b16 %v1702, %v1701
    %v1742 = vpack.c.b16 %v1704, %v1703
    %v1743 = vpack.c.b16 %v1706, %v1705
    %v1744 = vpack.c.b16 %v1708, %v1707
    %v1745 = vpack.c.b16 %v1710, %v1709
    %v1746 = vpack.c.b16 %v1712, %v1711
    %v1747 = vpack.c.b16 %v1714, %v1713
    %v1748 = vpack.c.b16 %v1716, %v1715
    %v1749 = vpack.c.b16 %v1718, %v1717
    %v1750 = vpack.c.b16 %v1720, %v1719
    %v1751 = vpack.c.b16 %v1722, %v1721
    %v1752 = vpack.c.b16 %v1724, %v1723
    %v1753 = vpack.c.b16 %v1726, %v1725
    %v1754 = vpack.c.b16 %v1728, %v1727
    %v1755 = vpack.c.b16 %v1730, %v1729
    %v1756 = vpack.c.b16 %v1732, %v1731
    %v1757 = vpack.c.b16 %v1734, %v1733
    %v1758 = vpack.c.b16 %v1736, %v1735
    %v1759 = vpack.c.b16 %v1738, %v1737
    %v1760 = vpack.c.b16 %v1740, %v1739
    %v1782 = vsel %vm874, %v1556, 0
    %v1785 = vsel %vm874, %v1557, 0
    %v1788 = vsel %vm874, %v1558, 0
    %v1791 = vsel %vm874, %v1559, 0
    %1793 = vmatprep.subr.bf16.mxu0 0
    %1794 = vmatpush1.bf16.msra.mxu0 %v1741
    %1795 = vmatprep.subr.bf16.mxu0 0
    %1796 = vmatpush1.bf16.msra.mxu0 %v1742
    %1797 = vmatprep.subr.bf16.mxu0 0
    %1798 = vmatpush1.bf16.msra.mxu0 %v1743
    %1799 = vmatprep.subr.bf16.mxu0 0
    %1800 = vmatpush1.bf16.msra.mxu0 %v1744
    %1801 = vmatprep.subr.bf16.mxu0 0
    %1802 = vmatpush1.bf16.msra.mxu0 %v1745
    %1803 = vmatprep.subr.bf16.mxu0 0
    %1804 = vmatpush1.bf16.msra.mxu0 %v1746
    %1805 = vmatprep.subr.bf16.mxu0 0
    %1806 = vmatpush1.bf16.msra.mxu0 %v1747
    %1807 = vmatprep.subr.bf16.mxu0 0
    %1808 = vmatpush1.bf16.msra.mxu0 %v1748
    %1809 = vmatprep.subr.bf16.mxu0 0
    %1810 = vmatpush1.bf16.msra.mxu0 %v1749
    %1811 = vmatprep.subr.bf16.mxu0 0
    %1812 = vmatpush1.bf16.msra.mxu0 %v1750
    %1813 = vmatprep.subr.bf16.mxu0 0
    %1814 = vmatpush1.bf16.msra.mxu0 %v1751
    %1815 = vmatprep.subr.bf16.mxu0 0
    %1816 = vmatpush1.bf16.msra.mxu0 %v1752
    %1817 = vmatprep.subr.bf16.mxu0 0
    %1818 = vmatpush1.bf16.msra.mxu0 %v1753
    %1819 = vmatprep.subr.bf16.mxu0 0
    %1820 = vmatpush1.bf16.msra.mxu0 %v1754
    %1821 = vmatprep.subr.bf16.mxu0 0
    %1822 = vmatpush1.bf16.msra.mxu0 %v1755
    %1823 = vmatprep.subr.bf16.mxu0 0
    %1824 = vmatpush1.bf16.msra.mxu0 %v1756
    %1825 = vmatprep.mubr.bf16.mxu0 %v1602
    %1826 = vmatmul.mubr.bf16.gmra.mrb[0].mxu0 %v1586
    %v1827 = vpop.f32.mrb[0].mxu0
    %v1828 = vadd.f32 %v1660, %v1827
    %v1829 = vpop.f32.mrb[0].mxu0
    %v1830 = vpop.f32.mrb[0].mxu0
    %v1831 = vadd.f32 %v1660, %v1830
    %v1832 = vpop.f32.mrb[0].mxu0
    %1833 = vmatprep.mubr.bf16.mxu0 %v1606
    %1834 = vmatmul.mubr.bf16.gmra.mrb[0].mxu0 %v1590
    %v1835 = vpop.f32.mrb[0].mxu0
    %v1836 = vadd.f32 %v1660, %v1835
    %v1837 = vpop.f32.mrb[0].mxu0
    %v1838 = vpop.f32.mrb[0].mxu0
    %v1839 = vadd.f32 %v1660, %v1838
    %v1840 = vpop.f32.mrb[0].mxu0
    %1841 = vmatprep.mubr.bf16.mxu0 %v1610
    %1842 = vmatmul.mubr.bf16.gmra.mrb[0].mxu0 %v1594
    %v1843 = vpop.f32.mrb[0].mxu0
    %v1844 = vadd.f32 %v1660, %v1843
    %v1845 = vpop.f32.mrb[0].mxu0
    %v1846 = vpop.f32.mrb[0].mxu0
    %v1847 = vadd.f32 %v1660, %v1846
    %v1848 = vpop.f32.mrb[0].mxu0
    %1849 = vmatprep.mubr.bf16.mxu0 %v1614
    %1850 = vmatmul.mubr.bf16.gmra.mrb[0].mxu0 %v1598
    %v1851 = vpop.f32.mrb[0].mxu0
    %v1852 = vadd.f32 %v1660, %v1851
    %v1853 = vpop.f32.mrb[0].mxu0
    %v1854 = vpop.f32.mrb[0].mxu0
    %v1855 = vadd.f32 %v1660, %v1854
    %v1856 = vpop.f32.mrb[0].mxu0
    %1857 = vdwg.mxu0
    %1858 = vmatprep.subr.bf16.mxu0 0
    %1859 = vmatpush1.bf16.msra.mxu0 %v1757
    %1860 = vmatprep.subr.bf16.mxu0 0
    %1861 = vmatpush1.bf16.msra.mxu0 %v1758
    %1862 = vmatprep.subr.bf16.mxu0 0
    %1863 = vmatpush1.bf16.msra.mxu0 %v1759
    %1864 = vmatprep.subr.bf16.mxu0 0
    %1865 = vmatpush1.bf16.msra.mxu0 %v1760
    %1866 = vmatprep.subr.bf16.mxu0 0
    %1867 = vmatpush1.bf16.msra.mxu0 0
    %1868 = vmatprep.subr.bf16.mxu0 0
    %1869 = vmatpush1.bf16.msra.mxu0 0
    %1870 = vmatprep.subr.bf16.mxu0 0
    %1871 = vmatpush1.bf16.msra.mxu0 0
    %1872 = vmatprep.subr.bf16.mxu0 0
    %1873 = vmatpush1.bf16.msra.mxu0 0
    %1874 = vmatprep.subr.bf16.mxu0 0
    %1875 = vmatpush1.bf16.msra.mxu0 0
    %1876 = vmatprep.subr.bf16.mxu0 0
    %1877 = vmatpush1.bf16.msra.mxu0 0
    %1878 = vmatprep.subr.bf16.mxu0 0
    %1879 = vmatpush1.bf16.msra.mxu0 0
    %1880 = vmatprep.subr.bf16.mxu0 0
    %1881 = vmatpush1.bf16.msra.mxu0 0
    %1882 = vmatprep.subr.bf16.mxu0 0
    %1883 = vmatpush1.bf16.msra.mxu0 0
    %1884 = vmatprep.subr.bf16.mxu0 0
    %1885 = vmatpush1.bf16.msra.mxu0 0
    %1886 = vmatprep.subr.bf16.mxu0 0
    %1887 = vmatpush1.bf16.msra.mxu0 0
    %1888 = vmatprep.subr.bf16.mxu0 0
    %1889 = vmatpush1.bf16.msra.mxu0 0
    %1890 = vmatprep.mubr.bf16.mxu0 0
    %1891 = vmatmul.mubr.bf16.gmra.mrb[0].mxu0 %v1782
    %v1892 = vpop.f32.mrb[0].mxu0
    %v1893 = vadd.f32 %v1828, %v1892
    %v1894 = vpop.f32.mrb[0].mxu0
    %v1895 = vpop.f32.mrb[0].mxu0
    %v1896 = vadd.f32 %v1831, %v1895
    %v1897 = vpop.f32.mrb[0].mxu0
    %1898 = vmatprep.mubr.bf16.mxu0 0
    %1899 = vmatmul.mubr.bf16.gmra.mrb[0].mxu0 %v1785
    %v1900 = vpop.f32.mrb[0].mxu0
    %v1901 = vadd.f32 %v1836, %v1900
    %v1902 = vpop.f32.mrb[0].mxu0
    %v1903 = vpop.f32.mrb[0].mxu0
    %v1904 = vadd.f32 %v1839, %v1903
    %v1905 = vpop.f32.mrb[0].mxu0
    %1906 = vmatprep.mubr.bf16.mxu0 0
    %1907 = vmatmul.mubr.bf16.gmra.mrb[0].mxu0 %v1788
    %v1908 = vpop.f32.mrb[0].mxu0
    %v1909 = vadd.f32 %v1844, %v1908
    %v1910 = vpop.f32.mrb[0].mxu0
    %v1911 = vpop.f32.mrb[0].mxu0
    %v1912 = vadd.f32 %v1847, %v1911
    %v1913 = vpop.f32.mrb[0].mxu0
    %1914 = vmatprep.mubr.bf16.mxu0 0
    %1915 = vmatmul.mubr.bf16.gmra.mrb[0].mxu0 %v1791
    %v1916 = vpop.f32.mrb[0].mxu0
    %v1917 = vadd.f32 %v1852, %v1916
    %v1918 = vpop.f32.mrb[0].mxu0
    %v1919 = vpop.f32.mrb[0].mxu0
    %v1920 = vadd.f32 %v1855, %v1919
    %v1921 = vpop.f32.mrb[0].mxu0
    %1922 = vdwg.mxu0
    %v1923 = vtanh.pop %v1893
    %v1924 = vtanh.pop %v1896
    %v1925 = vtanh.pop %v1901
    %v1926 = vtanh.pop %v1904
    %v1927 = vtanh.pop %v1909
    %v1928 = vtanh.pop %v1912
    %v1929 = vtanh.pop %v1917
    %v1930 = vtanh.pop %v1920
    %v1931 = vmul.f32 %v1923, %v240
    %v1932 = vmul.f32 %v1924, %v241
    %v1933 = vmul.f32 %v1925, %v242
    %v1934 = vmul.f32 %v1926, %v243
    %v1935 = vmul.f32 %v1927, %v244
    %v1936 = vmul.f32 %v1928, %v245
    %v1937 = vmul.f32 %v1929, %v246
    %v1938 = vmul.f32 %v1930, %v247
    %v1939 = vrot.slane %v1931, 2
    %v1940 = vrot.slane %v1932, 2
    %v1941 = vrot.slane %v1933, 2
    %v1942 = vrot.slane %v1934, 2
    %v1943 = vrot.slane %v1935, 2
    %v1944 = vrot.slane %v1936, 2
    %v1945 = vrot.slane %v1937, 2
    %v1946 = vrot.slane %v1938, 2
    %v1947 = vsel %vm1099, %v1945, %v1946
    %v1948 = vsel %vm1099, %v1944, %v1945
    %v1949 = vsel %vm1099, %v1943, %v1944
    %v1950 = vsel %vm1099, %v1942, %v1943
    %v1951 = vsel %vm1099, %v1941, %v1942
    %v1952 = vsel %vm1099, %v1940, %v1941
    %v1953 = vsel %vm1099, %v1939, %v1940
    %v1954 = vsel %vm1099, %v1946, %v1939
    %v1955 = vpack.c.bf16 %v1953, %v1954
    %v1956 = vpack.c.bf16 %v1951, %v1952
    %v1957 = vpack.c.bf16 %v1949, %v1950
    %v1958 = vpack.c.bf16 %v1947, %v1948
    %v1959 = vrot.slane %v1931, 5
    %v1960 = vrot.slane %v1932, 5
    %v1961 = vrot.slane %v1933, 5
    %v1962 = vrot.slane %v1934, 5
    %v1963 = vrot.slane %v1935, 5
    %v1964 = vrot.slane %v1936, 5
    %v1965 = vrot.slane %v1937, 5
    %v1966 = vrot.slane %v1938, 5
    %vm1967 = vcmp.lt.s32.totalorder %v168, 3
    %v1968 = vsel %vm1967, %v1965, %v1966
    %v1969 = vsel %vm1967, %v1964, %v1965
    %v1970 = vsel %vm1967, %v1963, %v1964
    %v1971 = vsel %vm1967, %v1962, %v1963
    %v1972 = vsel %vm1967, %v1961, %v1962
    %v1973 = vsel %vm1967, %v1960, %v1961
    %v1974 = vsel %vm1967, %v1959, %v1960
    %v1975 = vsel %vm1967, %v1966, %v1959
    %v1976 = vpack.c.bf16 %v1974, %v1975
    %v1977 = vpack.c.bf16 %v1972, %v1973
    %v1978 = vpack.c.bf16 %v1970, %v1971
    %v1979 = vpack.c.bf16 %v1968, %v1969
    %v1980 = vpack.c.bf16 %v1932, %v1931
    %v1981 = vpack.c.bf16 %v1934, %v1933
    %v1982 = vpack.c.bf16 %v1936, %v1935
    %v1983 = vpack.c.bf16 %v1938, %v1937
    %v1984 = vrot.slane %v1931, 3
    %v1985 = vrot.slane %v1932, 3
    %v1986 = vrot.slane %v1933, 3
    %v1987 = vrot.slane %v1934, 3
    %v1988 = vrot.slane %v1935, 3
    %v1989 = vrot.slane %v1936, 3
    %v1990 = vrot.slane %v1937, 3
    %v1991 = vrot.slane %v1938, 3
    %vm1992 = vcmp.lt.s32.totalorder %v168, 5
    %v1993 = vsel %vm1992, %v1990, %v1991
    %v1994 = vsel %vm1992, %v1989, %v1990
    %v1995 = vsel %vm1992, %v1988, %v1989
    %v1996 = vsel %vm1992, %v1987, %v1988
    %v1997 = vsel %vm1992, %v1986, %v1987
    %v1998 = vsel %vm1992, %v1985, %v1986
    %v1999 = vsel %vm1992, %v1984, %v1985
    %v2000 = vsel %vm1992, %v1991, %v1984
    %v2001 = vpack.c.bf16 %v1998, %v1999
    %v2002 = vpack.c.bf16 %v1996, %v1997
    %v2003 = vpack.c.bf16 %v1994, %v1995
    %v2004 = vpack.c.bf16 %v2000, %v1993
    %v2005 = vrot.slane %v1931, 6
    %v2006 = vrot.slane %v1932, 6
    %v2007 = vrot.slane %v1933, 6
    %v2008 = vrot.slane %v1934, 6
    %v2009 = vrot.slane %v1935, 6
    %v2010 = vrot.slane %v1936, 6
    %v2011 = vrot.slane %v1937, 6
    %v2012 = vrot.slane %v1938, 6
    %v2013 = vsel %vm1034, %v2011, %v2012
    %v2014 = vsel %vm1034, %v2010, %v2011
    %v2015 = vsel %vm1034, %v2009, %v2010
    %v2016 = vsel %vm1034, %v2008, %v2009
    %v2017 = vsel %vm1034, %v2007, %v2008
    %v2018 = vsel %vm1034, %v2006, %v2007
    %v2019 = vsel %vm1034, %v2005, %v2006
    %v2020 = vsel %vm1034, %v2012, %v2005
    %v2021 = vpack.c.bf16 %v2018, %v2019
    %v2022 = vpack.c.bf16 %v2016, %v2017
    %v2023 = vpack.c.bf16 %v2014, %v2015
    %v2024 = vpack.c.bf16 %v2020, %v2013
    %2029 = vrot.lane.b32.xlu0 %v1976, 64
    %v2030 = vpop.permute.xlu0 %2029
    %2031 = vrot.lane.b32.xlu0 %v1977, 64
    %v2032 = vpop.permute.xlu0 %2031
    %2033 = vrot.lane.b32.xlu0 %v1978, 64
    %v2034 = vpop.permute.xlu0 %2033
    %2035 = vrot.lane.b32.xlu0 %v1979, 64
    %v2036 = vpop.permute.xlu0 %2035
    %2041 = vrot.lane.b32.xlu0 %v2001, 64
    %v2042 = vpop.permute.xlu0 %2041
    %2043 = vrot.lane.b32.xlu0 %v2002, 64
    %v2044 = vpop.permute.xlu0 %2043
    %2045 = vrot.lane.b32.xlu0 %v2003, 64
    %v2046 = vpop.permute.xlu0 %2045
    %2047 = vrot.lane.b32.xlu0 %v2004, 64
    %v2048 = vpop.permute.xlu0 %2047
    %v2051 = vsel %vm874, %v1955, %v2030
    %v2055 = vsel %vm874, %v1956, %v2032
    %v2059 = vsel %vm874, %v1957, %v2034
    %v2063 = vsel %vm874, %v1958, %v2036
    %v2067 = vsel %vm874, %v1980, %v2042
    %v2071 = vsel %vm874, %v1981, %v2044
    %v2075 = vsel %vm874, %v1982, %v2046
    %v2079 = vsel %vm874, %v1983, %v2048
    %v2081 = vld [vmem:[%s2 + $0x170] sm:$0xf]
    %v2082 = vld [vmem:[%s2 + $0x174] sm:$0xf]
    %v2083 = vld [vmem:[%s2 + $0x178] sm:$0xf]
    %v2084 = vld [vmem:[%s2 + $0x17c] sm:$0xf]
    %v2085 = vld [vmem:[%s2 + $0x180] sm:$0xf]
    %v2086 = vld [vmem:[%s2 + $0x184] sm:$0xf]
    %v2087 = vld [vmem:[%s2 + $0x188] sm:$0xf]
    %v2088 = vld [vmem:[%s2 + $0x18c] sm:$0xf]
    %v2089 = vld [vmem:[%s2 + $0x190] sm:$0xf]
    %v2090 = vld [vmem:[%s2 + $0x194] sm:$0xf]
    %v2091 = vld [vmem:[%s2 + $0x198] sm:$0xf]
    %v2092 = vld [vmem:[%s2 + $0x19c] sm:$0xf]
    %v2093 = vld [vmem:[%s2 + $0x1a0] sm:$0xf]
    %v2094 = vld [vmem:[%s2 + $0x1a4] sm:$0xf]
    %v2095 = vld [vmem:[%s2 + $0x1a8] sm:$0xf]
    %v2096 = vld [vmem:[%s2 + $0x1ac] sm:$0xf]
    %v2097 = vld [vmem:[%s2 + $0x1b0] sm:$0xf]
    %v2098 = vld [vmem:[%s2 + $0x1b4] sm:$0xf]
    %v2099 = vld [vmem:[%s2 + $0x1b8] sm:$0xf]
    %v2100 = vld [vmem:[%s2 + $0x1bc] sm:$0xf]
    %v2101 = vld [vmem:[%s2 + $0x1c0] sm:$0xf]
    %v2102 = vld [vmem:[%s2 + $0x1c4] sm:$0xf]
    %v2103 = vld [vmem:[%s2 + $0x1c8] sm:$0xf]
    %v2104 = vld [vmem:[%s2 + $0x1cc] sm:$0xf]
    %v2105 = vld [vmem:[%s2 + $0x1d0] sm:$0xf]
    %v2106 = vld [vmem:[%s2 + $0x1d4] sm:$0xf]
    %v2107 = vld [vmem:[%s2 + $0x1d8] sm:$0xf]
    %v2108 = vld [vmem:[%s2 + $0x1dc] sm:$0xf]
    %v2109 = vld [vmem:[%s2 + $0x1e0] sm:$0xf]
    %v2110 = vld [vmem:[%s2 + $0x1e4] sm:$0xf]
    %v2111 = vld [vmem:[%s2 + $0x1e8] sm:$0xf]
    %v2112 = vld [vmem:[%s2 + $0x1ec] sm:$0xf]
    %v2113 = vld [vmem:[%s2 + $0x1f0] sm:$0xf]
    %v2114 = vld [vmem:[%s2 + $0x1f4] sm:$0xf]
    %v2115 = vld [vmem:[%s2 + $0x1f8] sm:$0xf]
    %v2116 = vld [vmem:[%s2 + $0x1fc] sm:$0xf]
    %v2117 = vld [vmem:[%s2 + $0x200] sm:$0xf]
    %v2118 = vld [vmem:[%s2 + $0x204] sm:$0xf]
    %v2119 = vld [vmem:[%s2 + $0x208] sm:$0xf]
    %v2120 = vld [vmem:[%s2 + $0x20c] sm:$0xf]
    %v2121 = vld [vmem:[%s3 + $0x9a] sm:$0x1]
    %v2122 = vlaneseq
    %v2123 = vshrl.u32 %v2122, 7
    %v2124 = vsub.s32 0, %v2123
    %v2125 = vrot.slane %v2121, %v2124
    %v2166 = vunpack.c.l.b16 %v2081
    %v2167 = vunpack.c.l.b16 %v2082
    %v2168 = vunpack.c.l.b16 %v2083
    %v2169 = vunpack.c.l.b16 %v2084
    %v2170 = vunpack.c.l.b16 %v2085
    %v2171 = vunpack.c.l.b16 %v2086
    %v2172 = vunpack.c.l.b16 %v2087
    %v2173 = vunpack.c.l.b16 %v2088
    %v2174 = vunpack.c.l.b16 %v2089
    %v2175 = vunpack.c.l.b16 %v2090
    %v2176 = vunpack.c.l.b16 %v2091
    %v2177 = vunpack.c.l.b16 %v2092
    %v2178 = vunpack.c.l.b16 %v2093
    %v2179 = vunpack.c.l.b16 %v2094
    %v2180 = vunpack.c.l.b16 %v2095
    %v2181 = vunpack.c.l.b16 %v2096
    %v2182 = vunpack.c.l.b16 %v2097
    %v2183 = vunpack.c.l.b16 %v2098
    %v2184 = vunpack.c.l.b16 %v2099
    %v2185 = vunpack.c.l.b16 %v2100
    %v2186 = vunpack.c.l.b16 %v2101
    %v2187 = vunpack.c.l.b16 %v2102
    %v2188 = vunpack.c.l.b16 %v2103
    %v2189 = vunpack.c.l.b16 %v2104
    %v2190 = vunpack.c.l.b16 %v2105
    %v2191 = vunpack.c.l.b16 %v2106
    %v2192 = vunpack.c.l.b16 %v2107
    %v2193 = vunpack.c.l.b16 %v2108
    %v2194 = vunpack.c.l.b16 %v2109
    %v2195 = vunpack.c.l.b16 %v2110
    %v2196 = vunpack.c.l.b16 %v2111
    %v2197 = vunpack.c.l.b16 %v2112
    %v2198 = vunpack.c.l.b16 %v2113
    %v2199 = vunpack.c.l.b16 %v2114
    %v2200 = vunpack.c.l.b16 %v2115
    %v2201 = vunpack.c.l.b16 %v2116
    %v2202 = vunpack.c.l.b16 %v2117
    %v2203 = vunpack.c.l.b16 %v2118
    %v2204 = vunpack.c.l.b16 %v2119
    %v2205 = vunpack.c.l.b16 %v2120
    %v2206 = vpack.c.b16 %v2167, %v2166
    %v2207 = vpack.c.b16 %v2169, %v2168
    %v2208 = vpack.c.b16 %v2171, %v2170
    %v2209 = vpack.c.b16 %v2173, %v2172
    %v2210 = vpack.c.b16 %v2175, %v2174
    %v2211 = vpack.c.b16 %v2177, %v2176
    %v2212 = vpack.c.b16 %v2179, %v2178
    %v2213 = vpack.c.b16 %v2181, %v2180
    %v2214 = vpack.c.b16 %v2183, %v2182
    %v2215 = vpack.c.b16 %v2185, %v2184
    %v2216 = vpack.c.b16 %v2187, %v2186
    %v2217 = vpack.c.b16 %v2189, %v2188
    %v2218 = vpack.c.b16 %v2191, %v2190
    %v2219 = vpack.c.b16 %v2193, %v2192
    %v2220 = vpack.c.b16 %v2195, %v2194
    %v2221 = vpack.c.b16 %v2197, %v2196
    %v2222 = vpack.c.b16 %v2199, %v2198
    %v2223 = vpack.c.b16 %v2201, %v2200
    %v2224 = vpack.c.b16 %v2203, %v2202
    %v2225 = vpack.c.b16 %v2205, %v2204
    %v2247 = vsel %vm874, %v2021, 0
    %v2250 = vsel %vm874, %v2022, 0
    %v2253 = vsel %vm874, %v2023, 0
    %v2256 = vsel %vm874, %v2024, 0
    %2258 = vmatprep.subr.bf16.mxu0 0
    %2259 = vmatpush1.bf16.msra.mxu0 %v2206
    %2260 = vmatprep.subr.bf16.mxu0 0
    %2261 = vmatpush1.bf16.msra.mxu0 %v2207
    %2262 = vmatprep.subr.bf16.mxu0 0
    %2263 = vmatpush1.bf16.msra.mxu0 %v2208
    %2264 = vmatprep.subr.bf16.mxu0 0
    %2265 = vmatpush1.bf16.msra.mxu0 %v2209
    %2266 = vmatprep.subr.bf16.mxu0 0
    %2267 = vmatpush1.bf16.msra.mxu0 %v2210
    %2268 = vmatprep.subr.bf16.mxu0 0
    %2269 = vmatpush1.bf16.msra.mxu0 %v2211
    %2270 = vmatprep.subr.bf16.mxu0 0
    %2271 = vmatpush1.bf16.msra.mxu0 %v2212
    %2272 = vmatprep.subr.bf16.mxu0 0
    %2273 = vmatpush1.bf16.msra.mxu0 %v2213
    %2274 = vmatprep.subr.bf16.mxu0 0
    %2275 = vmatpush1.bf16.msra.mxu0 %v2214
    %2276 = vmatprep.subr.bf16.mxu0 0
    %2277 = vmatpush1.bf16.msra.mxu0 %v2215
    %2278 = vmatprep.subr.bf16.mxu0 0
    %2279 = vmatpush1.bf16.msra.mxu0 %v2216
    %2280 = vmatprep.subr.bf16.mxu0 0
    %2281 = vmatpush1.bf16.msra.mxu0 %v2217
    %2282 = vmatprep.subr.bf16.mxu0 0
    %2283 = vmatpush1.bf16.msra.mxu0 %v2218
    %2284 = vmatprep.subr.bf16.mxu0 0
    %2285 = vmatpush1.bf16.msra.mxu0 %v2219
    %2286 = vmatprep.subr.bf16.mxu0 0
    %2287 = vmatpush1.bf16.msra.mxu0 %v2220
    %2288 = vmatprep.subr.bf16.mxu0 0
    %2289 = vmatpush1.bf16.msra.mxu0 %v2221
    %2290 = vmatprep.mubr.bf16.mxu0 %v2067
    %2291 = vmatmul.mubr.bf16.gmra.mrb[0].mxu0 %v2051
    %v2292 = vpop.f32.mrb[0].mxu0
    %v2293 = vadd.f32 %v2125, %v2292
    %v2294 = vpop.f32.mrb[0].mxu0
    %v2295 = vpop.f32.mrb[0].mxu0
    %v2296 = vadd.f32 %v2125, %v2295
    %v2297 = vpop.f32.mrb[0].mxu0
    %2298 = vmatprep.mubr.bf16.mxu0 %v2071
    %2299 = vmatmul.mubr.bf16.gmra.mrb[0].mxu0 %v2055
    %v2300 = vpop.f32.mrb[0].mxu0
    %v2301 = vadd.f32 %v2125, %v2300
    %v2302 = vpop.f32.mrb[0].mxu0
    %v2303 = vpop.f32.mrb[0].mxu0
    %v2304 = vadd.f32 %v2125, %v2303
    %v2305 = vpop.f32.mrb[0].mxu0
    %2306 = vmatprep.mubr.bf16.mxu0 %v2075
    %2307 = vmatmul.mubr.bf16.gmra.mrb[0].mxu0 %v2059
    %v2308 = vpop.f32.mrb[0].mxu0
    %v2309 = vadd.f32 %v2125, %v2308
    %v2310 = vpop.f32.mrb[0].mxu0
    %v2311 = vpop.f32.mrb[0].mxu0
    %v2312 = vadd.f32 %v2125, %v2311
    %v2313 = vpop.f32.mrb[0].mxu0
    %2314 = vmatprep.mubr.bf16.mxu0 %v2079
    %2315 = vmatmul.mubr.bf16.gmra.mrb[0].mxu0 %v2063
    %v2316 = vpop.f32.mrb[0].mxu0
    %v2317 = vadd.f32 %v2125, %v2316
    %v2318 = vpop.f32.mrb[0].mxu0
    %v2319 = vpop.f32.mrb[0].mxu0
    %v2320 = vadd.f32 %v2125, %v2319
    %v2321 = vpop.f32.mrb[0].mxu0
    %2322 = vdwg.mxu0
    %2323 = vmatprep.subr.bf16.mxu0 0
    %2324 = vmatpush1.bf16.msra.mxu0 %v2222
    %2325 = vmatprep.subr.bf16.mxu0 0
    %2326 = vmatpush1.bf16.msra.mxu0 %v2223
    %2327 = vmatprep.subr.bf16.mxu0 0
    %2328 = vmatpush1.bf16.msra.mxu0 %v2224
    %2329 = vmatprep.subr.bf16.mxu0 0
    %2330 = vmatpush1.bf16.msra.mxu0 %v2225
    %2331 = vmatprep.subr.bf16.mxu0 0
    %2332 = vmatpush1.bf16.msra.mxu0 0
    %2333 = vmatprep.subr.bf16.mxu0 0
    %2334 = vmatpush1.bf16.msra.mxu0 0
    %2335 = vmatprep.subr.bf16.mxu0 0
    %2336 = vmatpush1.bf16.msra.mxu0 0
    %2337 = vmatprep.subr.bf16.mxu0 0
    %2338 = vmatpush1.bf16.msra.mxu0 0
    %2339 = vmatprep.subr.bf16.mxu0 0
    %2340 = vmatpush1.bf16.msra.mxu0 0
    %2341 = vmatprep.subr.bf16.mxu0 0
    %2342 = vmatpush1.bf16.msra.mxu0 0
    %2343 = vmatprep.subr.bf16.mxu0 0
    %2344 = vmatpush1.bf16.msra.mxu0 0
    %2345 = vmatprep.subr.bf16.mxu0 0
    %2346 = vmatpush1.bf16.msra.mxu0 0
    %2347 = vmatprep.subr.bf16.mxu0 0
    %2348 = vmatpush1.bf16.msra.mxu0 0
    %2349 = vmatprep.subr.bf16.mxu0 0
    %2350 = vmatpush1.bf16.msra.mxu0 0
    %2351 = vmatprep.subr.bf16.mxu0 0
    %2352 = vmatpush1.bf16.msra.mxu0 0
    %2353 = vmatprep.subr.bf16.mxu0 0
    %2354 = vmatpush1.bf16.msra.mxu0 0
    %2355 = vmatprep.mubr.bf16.mxu0 0
    %2356 = vmatmul.mubr.bf16.gmra.mrb[0].mxu0 %v2247
    %v2357 = vpop.f32.mrb[0].mxu0
    %v2358 = vadd.f32 %v2293, %v2357
    %v2359 = vpop.f32.mrb[0].mxu0
    %v2360 = vpop.f32.mrb[0].mxu0
    %v2361 = vadd.f32 %v2296, %v2360
    %v2362 = vpop.f32.mrb[0].mxu0
    %2363 = vmatprep.mubr.bf16.mxu0 0
    %2364 = vmatmul.mubr.bf16.gmra.mrb[0].mxu0 %v2250
    %v2365 = vpop.f32.mrb[0].mxu0
    %v2366 = vadd.f32 %v2301, %v2365
    %v2367 = vpop.f32.mrb[0].mxu0
    %v2368 = vpop.f32.mrb[0].mxu0
    %v2369 = vadd.f32 %v2304, %v2368
    %v2370 = vpop.f32.mrb[0].mxu0
    %2371 = vmatprep.mubr.bf16.mxu0 0
    %2372 = vmatmul.mubr.bf16.gmra.mrb[0].mxu0 %v2253
    %v2373 = vpop.f32.mrb[0].mxu0
    %v2374 = vadd.f32 %v2309, %v2373
    %v2375 = vpop.f32.mrb[0].mxu0
    %v2376 = vpop.f32.mrb[0].mxu0
    %v2377 = vadd.f32 %v2312, %v2376
    %v2378 = vpop.f32.mrb[0].mxu0
    %2379 = vmatprep.mubr.bf16.mxu0 0
    %2380 = vmatmul.mubr.bf16.gmra.mrb[0].mxu0 %v2256
    %v2381 = vpop.f32.mrb[0].mxu0
    %v2382 = vadd.f32 %v2317, %v2381
    %v2383 = vpop.f32.mrb[0].mxu0
    %v2384 = vpop.f32.mrb[0].mxu0
    %v2385 = vadd.f32 %v2320, %v2384
    %v2386 = vpop.f32.mrb[0].mxu0
    %2387 = vdwg.mxu0
    %v2388 = vadd.f32 %v2358, %v1018
    %v2389 = vadd.f32 %v2361, %v1019
    %v2390 = vadd.f32 %v2366, %v1020
    %v2391 = vadd.f32 %v2369, %v1021
    %v2392 = vadd.f32 %v2374, %v1022
    %v2393 = vadd.f32 %v2377, %v1023
    %v2394 = vadd.f32 %v2382, %v1024
    %v2395 = vadd.f32 %v2385, %v1025
    %v2396 = vtanh.pop %v2388
    %v2397 = vtanh.pop %v2389
    %v2398 = vtanh.pop %v2390
    %v2399 = vtanh.pop %v2391
    %v2400 = vtanh.pop %v2392
    %v2401 = vtanh.pop %v2393
    %v2402 = vtanh.pop %v2394
    %v2403 = vtanh.pop %v2395
    %v2404 = vlaneseq
    %v2405 = vshrl.u32 %v2404, 7
    %v2406 = vsub.s32 0, %v2405
    %v2407 = vrot.slane %v773, %v2406
    %v2409 = vsel %vm874, %v2396, 0
    %v2412 = vsel %vm874, %v2397, 0
    %v2415 = vsel %vm874, %v2398, 0
    %v2418 = vsel %vm874, %v2399, 0
    %v2421 = vsel %vm874, %v2400, 0
    %v2424 = vsel %vm874, %v2401, 0
    %v2427 = vsel %vm874, %v2402, 0
    %v2430 = vsel %vm874, %v2403, 0
    %2432 = vmatprep.subr.mxu0 0.0
    %2433 = vmatpush1.msra.mxu0 %v665
    %2434 = vmatprep.subr.mxu0 0.0
    %2435 = vmatpush1.msra.mxu0 %v670
    %2436 = vmatprep.subr.mxu0 0.0
    %2437 = vmatpush1.msra.mxu0 %v675
    %2438 = vmatprep.subr.mxu0 0.0
    %2439 = vmatpush1.msra.mxu0 %v680
    %2440 = vmatprep.subr.mxu0 0.0
    %2441 = vmatpush1.msra.mxu0 %v685
    %2442 = vmatprep.subr.mxu0 0.0
    %2443 = vmatpush1.msra.mxu0 %v690
    %2444 = vmatprep.subr.mxu0 0.0
    %2445 = vmatpush1.msra.mxu0 %v695
    %2446 = vmatprep.subr.mxu0 0.0
    %2447 = vmatpush1.msra.mxu0 %v700
    %2448 = vmatprep.subr.mxu0 0.0
    %2449 = vmatpush1.msra.mxu0 0.0
    %2450 = vmatprep.subr.mxu0 0.0
    %2451 = vmatpush1.msra.mxu0 0.0
    %2452 = vmatprep.subr.mxu0 0.0
    %2453 = vmatpush1.msra.mxu0 0.0
    %2454 = vmatprep.subr.mxu0 0.0
    %2455 = vmatpush1.msra.mxu0 0.0
    %2456 = vmatprep.subr.mxu0 0.0
    %2457 = vmatpush1.msra.mxu0 0.0
    %2458 = vmatprep.subr.mxu0 0.0
    %2459 = vmatpush1.msra.mxu0 0.0
    %2460 = vmatprep.subr.mxu0 0.0
    %2461 = vmatpush1.msra.mxu0 0.0
    %2462 = vmatprep.subr.mxu0 0.0
    %2463 = vmatpush1.msra.mxu0 0.0
    %2464 = vmatprep.subr.mxu0 0.0
    %2465 = vmatpush1.msra.mxu0 0.0
    %2466 = vmatprep.subr.mxu0 0.0
    %2467 = vmatpush1.msra.mxu0 0.0
    %2468 = vmatprep.subr.mxu0 0.0
    %2469 = vmatpush1.msra.mxu0 0.0
    %2470 = vmatprep.subr.mxu0 0.0
    %2471 = vmatpush1.msra.mxu0 0.0
    %2472 = vmatprep.subr.mxu0 0.0
    %2473 = vmatpush1.msra.mxu0 0.0
    %2474 = vmatprep.subr.mxu0 0.0
    %2475 = vmatpush1.msra.mxu0 0.0
    %2476 = vmatprep.subr.mxu0 0.0
    %2477 = vmatpush1.msra.mxu0 0.0
    %2478 = vmatprep.subr.mxu0 0.0
    %2479 = vmatpush1.msra.mxu0 0.0
    %2480 = vmatprep.subr.mxu0 0.0
    %2481 = vmatpush1.msra.mxu0 0.0
    %2482 = vmatprep.subr.mxu0 0.0
    %2483 = vmatpush1.msra.mxu0 0.0
    %2484 = vmatprep.subr.mxu0 0.0
    %2485 = vmatpush1.msra.mxu0 0.0
    %2486 = vmatprep.subr.mxu0 0.0
    %2487 = vmatpush1.msra.mxu0 0.0
    %2488 = vmatprep.subr.mxu0 0.0
    %2489 = vmatpush1.msra.mxu0 0.0
    %2490 = vmatprep.subr.mxu0 0.0
    %2491 = vmatpush1.msra.mxu0 0.0
    %2492 = vmatprep.subr.mxu0 0.0
    %2493 = vmatpush1.msra.mxu0 0.0
    %2494 = vmatprep.subr.mxu0 0.0
    %2495 = vmatpush1.msra.mxu0 0.0
    %2496 = vmatprep.mubr.f32.mxu0 0.0
    %2497 = vmatmul.mubr.f32.gmra.mrb[0].mxu0 %v2409
    %v2498 = vpop.f32.mrb[0].mxu0
    %v2499 = vpop.f32.mrb[0].mxu0
    %2500 = vmatprep.mubr.f32.mxu0 0.0
    %2501 = vmatmul.mubr.f32.gmra.mrb[0].mxu0 %v2412
    %v2502 = vpop.f32.mrb[0].mxu0
    %v2503 = vadd.f32 %v2407, %v2502
    %v2504 = vpop.f32.mrb[0].mxu0
    %2505 = vmatprep.mubr.f32.mxu0 0.0
    %2506 = vmatmul.mubr.f32.gmra.mrb[0].mxu0 %v2415
    %v2507 = vpop.f32.mrb[0].mxu0
    %v2508 = vadd.f32 %v2407, %v2507
    %v2509 = vpop.f32.mrb[0].mxu0
    %2510 = vmatprep.mubr.f32.mxu0 0.0
    %2511 = vmatmul.mubr.f32.gmra.mrb[0].mxu0 %v2418
    %v2512 = vpop.f32.mrb[0].mxu0
    %v2513 = vpop.f32.mrb[0].mxu0
    %2514 = vmatprep.mubr.f32.mxu0 0.0
    %2515 = vmatmul.mubr.f32.gmra.mrb[0].mxu0 %v2421
    %v2516 = vpop.f32.mrb[0].mxu0
    %v2517 = vpop.f32.mrb[0].mxu0
    %2518 = vmatprep.mubr.f32.mxu0 0.0
    %2519 = vmatmul.mubr.f32.gmra.mrb[0].mxu0 %v2424
    %v2520 = vpop.f32.mrb[0].mxu0
    %v2521 = vadd.f32 %v2407, %v2520
    %v2522 = vpop.f32.mrb[0].mxu0
    %2523 = vmatprep.mubr.f32.mxu0 0.0
    %2524 = vmatmul.mubr.f32.gmra.mrb[0].mxu0 %v2427
    %v2525 = vpop.f32.mrb[0].mxu0
    %v2526 = vadd.f32 %v2407, %v2525
    %v2527 = vpop.f32.mrb[0].mxu0
    %2528 = vmatprep.mubr.f32.mxu0 0.0
    %2529 = vmatmul.mubr.f32.gmra.mrb[0].mxu0 %v2430
    %v2530 = vpop.f32.mrb[0].mxu0
    %v2531 = vpop.f32.mrb[0].mxu0
    %2532 = vdwg.mxu0
    %v2533 = vld [vmem:[%s6] sm:$0x3]
    %v2534 = vlaneseq
    %v2535 = vshrl.u32 %v2534, 7
    %v2536 = vsub.s32 0, %v2535
    %v2537 = vrot.slane %v2533, %v2536
    %v2538 = vmul.f32 %v2503, %v2537
    %v2539 = vmul.f32 %v2508, %v2537
    %v2540 = vsel %vm256, %v2538, -inf
    %v2541 = vsel %vm256, %v2539, -inf
    %v2542 = vmax.f32 %v2540, %v2541
    %v2543 = vrot.slane %v2542, 4
    %v2544 = vmax.f32 %v2542, %v2543
    %v2545 = vrot.slane %v2544, 2
    %v2546 = vmax.f32 %v2544, %v2545
    %v2547 = vrot.slane %v2546, 1
    %v2548 = vmax.f32 %v2546, %v2547
    %v2549 = vsub.f32 %v2538, %v2548
    %v2550 = vsub.f32 %v2539, %v2548
    %v2551 = vmul.f32 %v2549, 1.442695
    %v2552 = vpow.pop %v2551
    %v2553 = vmul.f32 %v2550, 1.442695
    %v2554 = vpow.pop %v2553
    %v2555 = vsel %vm256, %v2552, 0.0
    %v2556 = vsel %vm256, %v2554, 0.0
    %v2557 = vadd.f32 %v2555, %v2556
    %v2558 = vrot.slane %v2557, 4
    %v2559 = vadd.f32 %v2557, %v2558
    %v2560 = vrot.slane %v2559, 2
    %v2561 = vadd.f32 %v2559, %v2560
    %v2562 = vrot.slane %v2561, 1
    %v2563 = vadd.f32 %v2561, %v2562
    %v2564 = vrcp.pop %v2563
    %v2565 = vmul.f32 %v2552, %v2564
    %v2566 = vmul.f32 %v2554, %v2564
    %v2567 = vmul.f32 %v2565, %v2503
    %v2568 = vmul.f32 %v2566, %v2508
    %v2569 = vsel %vm256, %v2567, 0.0
    %v2570 = vsel %vm256, %v2568, 0.0
    %v2571 = vadd.f32 %v2569, %v2570
    %v2572 = vrot.slane %v2571, 4
    %v2573 = vadd.f32 %v2571, %v2572
    %v2574 = vrot.slane %v2573, 2
    %v2575 = vadd.f32 %v2573, %v2574
    %v2576 = vrot.slane %v2575, 1
    %v2577 = vadd.f32 %v2575, %v2576
    %v2578 = vlaneseq
    %v2579 = vshrl.u32 %v2578, 7
    %v2580 = vsub.s32 1, %v2579
    %v2581 = vrot.slane %v2533, %v2580
    %v2582 = vmul.f32 %v2521, %v2581
    %v2583 = vmul.f32 %v2526, %v2581
    %v2584 = vsel %vm256, %v2582, -inf
    %v2585 = vsel %vm256, %v2583, -inf
    %v2586 = vmax.f32 %v2584, %v2585
    %v2587 = vrot.slane %v2586, 4
    %v2588 = vmax.f32 %v2586, %v2587
    %v2589 = vrot.slane %v2588, 2
    %v2590 = vmax.f32 %v2588, %v2589
    %v2591 = vrot.slane %v2590, 1
    %v2592 = vmax.f32 %v2590, %v2591
    %v2593 = vsub.f32 %v2582, %v2592
    %v2594 = vsub.f32 %v2583, %v2592
    %v2595 = vmul.f32 %v2593, 1.442695
    %v2596 = vpow.pop %v2595
    %v2597 = vmul.f32 %v2594, 1.442695
    %v2598 = vpow.pop %v2597
    %v2599 = vsel %vm256, %v2596, 0.0
    %v2600 = vsel %vm256, %v2598, 0.0
    %v2601 = vadd.f32 %v2599, %v2600
    %v2602 = vrot.slane %v2601, 4
    %v2603 = vadd.f32 %v2601, %v2602
    %v2604 = vrot.slane %v2603, 2
    %v2605 = vadd.f32 %v2603, %v2604
    %v2606 = vrot.slane %v2605, 1
    %v2607 = vadd.f32 %v2605, %v2606
    %v2608 = vrcp.pop %v2607
    %v2609 = vmul.f32 %v2596, %v2608
    %v2610 = vmul.f32 %v2598, %v2608
    %v2611 = vmul.f32 %v2609, %v2521
    %v2612 = vmul.f32 %v2610, %v2526
    %v2613 = vsel %vm256, %v2611, 0.0
    %v2614 = vsel %vm256, %v2612, 0.0
    %v2615 = vadd.f32 %v2613, %v2614
    %v2616 = vrot.slane %v2615, 4
    %v2617 = vadd.f32 %v2615, %v2616
    %v2618 = vrot.slane %v2617, 2
    %v2619 = vadd.f32 %v2617, %v2618
    %v2620 = vrot.slane %v2619, 1
    %v2621 = vadd.f32 %v2619, %v2620
    %vm2622 = vcmask 1040384
    %v2623 = vsel %vm2622, %v2577, %v2621
    %v2624 = vsub.f32 0.0, %v2623
    %v2625 = vmul.f32 %v2624, 1.442695
    %v2626 = vpow.pop %v2625
    %v2627 = vadd.f32 %v2626, 1.0
    %v2628 = vrcp.pop %v2627
    %v2629 = vmul.f32 1.0, %v2628
    %v2630 = vld [vmem:[%s3 + $0x60] sm:$0xff]
    %v2631 = vld [vmem:[%s3 + $0x93] sm:$0x1]
    %v2632 = vlaneseq
    %v2633 = vshrl.u32 %v2632, 7
    %v2634 = vsub.s32 0, %v2633
    %v2635 = vrot.slane %v2631, %v2634
    %v2637 = vsel %vm256, %v2629, 0
    %2639 = vmatprep.subr.mxu0 0.0
    %2640 = vmatpush1.msra.mxu0 %v2630
    %2641 = vmatprep.subr.mxu0 0.0
    %2642 = vmatpush1.msra.mxu0 0.0
    %2643 = vmatprep.subr.mxu0 0.0
    %2644 = vmatpush1.msra.mxu0 0.0
    %2645 = vmatprep.subr.mxu0 0.0
    %2646 = vmatpush1.msra.mxu0 0.0
    %2647 = vmatprep.subr.mxu0 0.0
    %2648 = vmatpush1.msra.mxu0 0.0
    %2649 = vmatprep.subr.mxu0 0.0
    %2650 = vmatpush1.msra.mxu0 0.0
    %2651 = vmatprep.subr.mxu0 0.0
    %2652 = vmatpush1.msra.mxu0 0.0
    %2653 = vmatprep.subr.mxu0 0.0
    %2654 = vmatpush1.msra.mxu0 0.0
    %2655 = vmatprep.subr.mxu0 0.0
    %2656 = vmatpush1.msra.mxu0 0.0
    %2657 = vmatprep.subr.mxu0 0.0
    %2658 = vmatpush1.msra.mxu0 0.0
    %2659 = vmatprep.subr.mxu0 0.0
    %2660 = vmatpush1.msra.mxu0 0.0
    %2661 = vmatprep.subr.mxu0 0.0
    %2662 = vmatpush1.msra.mxu0 0.0
    %2663 = vmatprep.subr.mxu0 0.0
    %2664 = vmatpush1.msra.mxu0 0.0
    %2665 = vmatprep.subr.mxu0 0.0
    %2666 = vmatpush1.msra.mxu0 0.0
    %2667 = vmatprep.subr.mxu0 0.0
    %2668 = vmatpush1.msra.mxu0 0.0
    %2669 = vmatprep.subr.mxu0 0.0
    %2670 = vmatpush1.msra.mxu0 0.0
    %2671 = vmatprep.subr.mxu0 0.0
    %2672 = vmatpush1.msra.mxu0 0.0
    %2673 = vmatprep.subr.mxu0 0.0
    %2674 = vmatpush1.msra.mxu0 0.0
    %2675 = vmatprep.subr.mxu0 0.0
    %2676 = vmatpush1.msra.mxu0 0.0
    %2677 = vmatprep.subr.mxu0 0.0
    %2678 = vmatpush1.msra.mxu0 0.0
    %2679 = vmatprep.subr.mxu0 0.0
    %2680 = vmatpush1.msra.mxu0 0.0
    %2681 = vmatprep.subr.mxu0 0.0
    %2682 = vmatpush1.msra.mxu0 0.0
    %2683 = vmatprep.subr.mxu0 0.0
    %2684 = vmatpush1.msra.mxu0 0.0
    %2685 = vmatprep.subr.mxu0 0.0
    %2686 = vmatpush1.msra.mxu0 0.0
    %2687 = vmatprep.subr.mxu0 0.0
    %2688 = vmatpush1.msra.mxu0 0.0
    %2689 = vmatprep.subr.mxu0 0.0
    %2690 = vmatpush1.msra.mxu0 0.0
    %2691 = vmatprep.subr.mxu0 0.0
    %2692 = vmatpush1.msra.mxu0 0.0
    %2693 = vmatprep.subr.mxu0 0.0
    %2694 = vmatpush1.msra.mxu0 0.0
    %2695 = vmatprep.subr.mxu0 0.0
    %2696 = vmatpush1.msra.mxu0 0.0
    %2697 = vmatprep.subr.mxu0 0.0
    %2698 = vmatpush1.msra.mxu0 0.0
    %2699 = vmatprep.subr.mxu0 0.0
    %2700 = vmatpush1.msra.mxu0 0.0
    %2701 = vmatprep.subr.mxu0 0.0
    %2702 = vmatpush1.msra.mxu0 0.0
    %2703 = vmatprep.mubr.f32.mxu0 0.0
    %2704 = vmatmul.mubr.f32.gmra.mrb[0].mxu0 %v2637
    %v2705 = vpop.f32.mrb[0].mxu0
    %v2706 = vadd.f32 %v2635, %v2705
    %v2707 = vpop.f32.mrb[0].mxu0
    %2708 = vdwg.mxu0
    %vm2709 = vcmp.gt.f32.partialorder %v2706, 0.0
    %v2710 = vmin.f32 %v2706, 0.0
    %v2711 = vmul.f32 %v2710, 1.442695
    %v2712 = vpow.pop %v2711
    %v2713 = vsub.f32 %v2712, 1.0
    %v2714 = vsel %vm2709, %v2706, %v2713
    %v2715 = vld [vmem:[%s3 + $0x70] sm:$0xff]
    %v2716 = vld [vmem:[%s3 + $0x78] sm:$0xff]
    %v2717 = vld [vmem:[%s3 + $0x95] sm:$0x1]
    %v2718 = vlaneseq
    %v2719 = vshrl.u32 %v2718, 7
    %v2720 = vsub.s32 0, %v2719
    %v2721 = vrot.slane %v2717, %v2720
    %v2723 = vsel %vm334, %v2714, 0
    %2725 = vmatprep.subr.mxu0 0.0
    %2726 = vmatpush1.msra.mxu0 %v2715
    %2727 = vmatprep.subr.mxu0 0.0
    %2728 = vmatpush1.msra.mxu0 %v2716
    %2729 = vmatprep.subr.mxu0 0.0
    %2730 = vmatpush1.msra.mxu0 0.0
    %2731 = vmatprep.subr.mxu0 0.0
    %2732 = vmatpush1.msra.mxu0 0.0
    %2733 = vmatprep.subr.mxu0 0.0
    %2734 = vmatpush1.msra.mxu0 0.0
    %2735 = vmatprep.subr.mxu0 0.0
    %2736 = vmatpush1.msra.mxu0 0.0
    %2737 = vmatprep.subr.mxu0 0.0
    %2738 = vmatpush1.msra.mxu0 0.0
    %2739 = vmatprep.subr.mxu0 0.0
    %2740 = vmatpush1.msra.mxu0 0.0
    %2741 = vmatprep.subr.mxu0 0.0
    %2742 = vmatpush1.msra.mxu0 0.0
    %2743 = vmatprep.subr.mxu0 0.0
    %2744 = vmatpush1.msra.mxu0 0.0
    %2745 = vmatprep.subr.mxu0 0.0
    %2746 = vmatpush1.msra.mxu0 0.0
    %2747 = vmatprep.subr.mxu0 0.0
    %2748 = vmatpush1.msra.mxu0 0.0
    %2749 = vmatprep.subr.mxu0 0.0
    %2750 = vmatpush1.msra.mxu0 0.0
    %2751 = vmatprep.subr.mxu0 0.0
    %2752 = vmatpush1.msra.mxu0 0.0
    %2753 = vmatprep.subr.mxu0 0.0
    %2754 = vmatpush1.msra.mxu0 0.0
    %2755 = vmatprep.subr.mxu0 0.0
    %2756 = vmatpush1.msra.mxu0 0.0
    %2757 = vmatprep.subr.mxu0 0.0
    %2758 = vmatpush1.msra.mxu0 0.0
    %2759 = vmatprep.subr.mxu0 0.0
    %2760 = vmatpush1.msra.mxu0 0.0
    %2761 = vmatprep.subr.mxu0 0.0
    %2762 = vmatpush1.msra.mxu0 0.0
    %2763 = vmatprep.subr.mxu0 0.0
    %2764 = vmatpush1.msra.mxu0 0.0
    %2765 = vmatprep.subr.mxu0 0.0
    %2766 = vmatpush1.msra.mxu0 0.0
    %2767 = vmatprep.subr.mxu0 0.0
    %2768 = vmatpush1.msra.mxu0 0.0
    %2769 = vmatprep.subr.mxu0 0.0
    %2770 = vmatpush1.msra.mxu0 0.0
    %2771 = vmatprep.subr.mxu0 0.0
    %2772 = vmatpush1.msra.mxu0 0.0
    %2773 = vmatprep.subr.mxu0 0.0
    %2774 = vmatpush1.msra.mxu0 0.0
    %2775 = vmatprep.subr.mxu0 0.0
    %2776 = vmatpush1.msra.mxu0 0.0
    %2777 = vmatprep.subr.mxu0 0.0
    %2778 = vmatpush1.msra.mxu0 0.0
    %2779 = vmatprep.subr.mxu0 0.0
    %2780 = vmatpush1.msra.mxu0 0.0
    %2781 = vmatprep.subr.mxu0 0.0
    %2782 = vmatpush1.msra.mxu0 0.0
    %2783 = vmatprep.subr.mxu0 0.0
    %2784 = vmatpush1.msra.mxu0 0.0
    %2785 = vmatprep.subr.mxu0 0.0
    %2786 = vmatpush1.msra.mxu0 0.0
    %2787 = vmatprep.subr.mxu0 0.0
    %2788 = vmatpush1.msra.mxu0 0.0
    %2789 = vmatprep.mubr.f32.mxu0 0.0
    %2790 = vmatmul.mubr.f32.gmra.mrb[0].mxu0 %v2723
    %v2791 = vpop.f32.mrb[0].mxu0
    %v2792 = vadd.f32 %v2721, %v2791
    %v2793 = vpop.f32.mrb[0].mxu0
    %2794 = vdwg.mxu0
    %v2795 = vadd.f32 %v2792, %v2623
    %v2796 = vsub.f32 0.0, %v2795
    %v2797 = vmul.f32 %v2796, 1.442695
    %v2798 = vpow.pop %v2797
    %v2799 = vadd.f32 %v2798, 1.0
    %v2800 = vrcp.pop %v2799
    %v2801 = vmul.f32 1.0, %v2800
    %v2802 = vld [vmem:[%s3 + $0x68] sm:$0xff]
    %v2803 = vld [vmem:[%s3 + $0x94] sm:$0x1]
    %v2804 = vlaneseq
    %v2805 = vshrl.u32 %v2804, 7
    %v2806 = vsub.s32 0, %v2805
    %v2807 = vrot.slane %v2803, %v2806
    %v2809 = vsel %vm256, %v2801, 0
    %2811 = vmatprep.subr.mxu0 0.0
    %2812 = vmatpush1.msra.mxu0 %v2802
    %2813 = vmatprep.subr.mxu0 0.0
    %2814 = vmatpush1.msra.mxu0 0.0
    %2815 = vmatprep.subr.mxu0 0.0
    %2816 = vmatpush1.msra.mxu0 0.0
    %2817 = vmatprep.subr.mxu0 0.0
    %2818 = vmatpush1.msra.mxu0 0.0
    %2819 = vmatprep.subr.mxu0 0.0
    %2820 = vmatpush1.msra.mxu0 0.0
    %2821 = vmatprep.subr.mxu0 0.0
    %2822 = vmatpush1.msra.mxu0 0.0
    %2823 = vmatprep.subr.mxu0 0.0
    %2824 = vmatpush1.msra.mxu0 0.0
    %2825 = vmatprep.subr.mxu0 0.0
    %2826 = vmatpush1.msra.mxu0 0.0
    %2827 = vmatprep.subr.mxu0 0.0
    %2828 = vmatpush1.msra.mxu0 0.0
    %2829 = vmatprep.subr.mxu0 0.0
    %2830 = vmatpush1.msra.mxu0 0.0
    %2831 = vmatprep.subr.mxu0 0.0
    %2832 = vmatpush1.msra.mxu0 0.0
    %2833 = vmatprep.subr.mxu0 0.0
    %2834 = vmatpush1.msra.mxu0 0.0
    %2835 = vmatprep.subr.mxu0 0.0
    %2836 = vmatpush1.msra.mxu0 0.0
    %2837 = vmatprep.subr.mxu0 0.0
    %2838 = vmatpush1.msra.mxu0 0.0
    %2839 = vmatprep.subr.mxu0 0.0
    %2840 = vmatpush1.msra.mxu0 0.0
    %2841 = vmatprep.subr.mxu0 0.0
    %2842 = vmatpush1.msra.mxu0 0.0
    %2843 = vmatprep.subr.mxu0 0.0
    %2844 = vmatpush1.msra.mxu0 0.0
    %2845 = vmatprep.subr.mxu0 0.0
    %2846 = vmatpush1.msra.mxu0 0.0
    %2847 = vmatprep.subr.mxu0 0.0
    %2848 = vmatpush1.msra.mxu0 0.0
    %2849 = vmatprep.subr.mxu0 0.0
    %2850 = vmatpush1.msra.mxu0 0.0
    %2851 = vmatprep.subr.mxu0 0.0
    %2852 = vmatpush1.msra.mxu0 0.0
    %2853 = vmatprep.subr.mxu0 0.0
    %2854 = vmatpush1.msra.mxu0 0.0
    %2855 = vmatprep.subr.mxu0 0.0
    %2856 = vmatpush1.msra.mxu0 0.0
    %2857 = vmatprep.subr.mxu0 0.0
    %2858 = vmatpush1.msra.mxu0 0.0
    %2859 = vmatprep.subr.mxu0 0.0
    %2860 = vmatpush1.msra.mxu0 0.0
    %2861 = vmatprep.subr.mxu0 0.0
    %2862 = vmatpush1.msra.mxu0 0.0
    %2863 = vmatprep.subr.mxu0 0.0
    %2864 = vmatpush1.msra.mxu0 0.0
    %2865 = vmatprep.subr.mxu0 0.0
    %2866 = vmatpush1.msra.mxu0 0.0
    %2867 = vmatprep.subr.mxu0 0.0
    %2868 = vmatpush1.msra.mxu0 0.0
    %2869 = vmatprep.subr.mxu0 0.0
    %2870 = vmatpush1.msra.mxu0 0.0
    %2871 = vmatprep.subr.mxu0 0.0
    %2872 = vmatpush1.msra.mxu0 0.0
    %2873 = vmatprep.subr.mxu0 0.0
    %2874 = vmatpush1.msra.mxu0 0.0
    %2875 = vmatprep.mubr.f32.mxu0 0.0
    %2876 = vmatmul.mubr.f32.gmra.mrb[0].mxu0 %v2809
    %v2877 = vpop.f32.mrb[0].mxu0
    %v2878 = vadd.f32 %v2807, %v2877
    %v2879 = vpop.f32.mrb[0].mxu0
    %2880 = vdwg.mxu0
    %vm2881 = vcmp.gt.f32.partialorder %v2878, 0.0
    %v2882 = vmin.f32 %v2878, 0.0
    %v2883 = vmul.f32 %v2882, 1.442695
    %v2884 = vpow.pop %v2883
    %v2885 = vsub.f32 %v2884, 1.0
    %v2886 = vsel %vm2881, %v2878, %v2885
    %v2887 = vld [vmem:[%s3 + $0x80] sm:$0xff]
    %v2888 = vld [vmem:[%s3 + $0x88] sm:$0xff]
    %v2889 = vld [vmem:[%s3 + $0x96] sm:$0x1]
    %v2890 = vlaneseq
    %v2891 = vshrl.u32 %v2890, 7
    %v2892 = vsub.s32 0, %v2891
    %v2893 = vrot.slane %v2889, %v2892
    %v2895 = vsel %vm334, %v2886, 0
    %2897 = vmatprep.subr.mxu0 0.0
    %2898 = vmatpush1.msra.mxu0 %v2887
    %2899 = vmatprep.subr.mxu0 0.0
    %2900 = vmatpush1.msra.mxu0 %v2888
    %2901 = vmatprep.subr.mxu0 0.0
    %2902 = vmatpush1.msra.mxu0 0.0
    %2903 = vmatprep.subr.mxu0 0.0
    %2904 = vmatpush1.msra.mxu0 0.0
    %2905 = vmatprep.subr.mxu0 0.0
    %2906 = vmatpush1.msra.mxu0 0.0
    %2907 = vmatprep.subr.mxu0 0.0
    %2908 = vmatpush1.msra.mxu0 0.0
    %2909 = vmatprep.subr.mxu0 0.0
    %2910 = vmatpush1.msra.mxu0 0.0
    %2911 = vmatprep.subr.mxu0 0.0
    %2912 = vmatpush1.msra.mxu0 0.0
    %2913 = vmatprep.subr.mxu0 0.0
    %2914 = vmatpush1.msra.mxu0 0.0
    %2915 = vmatprep.subr.mxu0 0.0
    %2916 = vmatpush1.msra.mxu0 0.0
    %2917 = vmatprep.subr.mxu0 0.0
    %2918 = vmatpush1.msra.mxu0 0.0
    %2919 = vmatprep.subr.mxu0 0.0
    %2920 = vmatpush1.msra.mxu0 0.0
    %2921 = vmatprep.subr.mxu0 0.0
    %2922 = vmatpush1.msra.mxu0 0.0
    %2923 = vmatprep.subr.mxu0 0.0
    %2924 = vmatpush1.msra.mxu0 0.0
    %2925 = vmatprep.subr.mxu0 0.0
    %2926 = vmatpush1.msra.mxu0 0.0
    %2927 = vmatprep.subr.mxu0 0.0
    %2928 = vmatpush1.msra.mxu0 0.0
    %2929 = vmatprep.subr.mxu0 0.0
    %2930 = vmatpush1.msra.mxu0 0.0
    %2931 = vmatprep.subr.mxu0 0.0
    %2932 = vmatpush1.msra.mxu0 0.0
    %2933 = vmatprep.subr.mxu0 0.0
    %2934 = vmatpush1.msra.mxu0 0.0
    %2935 = vmatprep.subr.mxu0 0.0
    %2936 = vmatpush1.msra.mxu0 0.0
    %2937 = vmatprep.subr.mxu0 0.0
    %2938 = vmatpush1.msra.mxu0 0.0
    %2939 = vmatprep.subr.mxu0 0.0
    %2940 = vmatpush1.msra.mxu0 0.0
    %2941 = vmatprep.subr.mxu0 0.0
    %2942 = vmatpush1.msra.mxu0 0.0
    %2943 = vmatprep.subr.mxu0 0.0
    %2944 = vmatpush1.msra.mxu0 0.0
    %2945 = vmatprep.subr.mxu0 0.0
    %2946 = vmatpush1.msra.mxu0 0.0
    %2947 = vmatprep.subr.mxu0 0.0
    %2948 = vmatpush1.msra.mxu0 0.0
    %2949 = vmatprep.subr.mxu0 0.0
    %2950 = vmatpush1.msra.mxu0 0.0
    %2951 = vmatprep.subr.mxu0 0.0
    %2952 = vmatpush1.msra.mxu0 0.0
    %2953 = vmatprep.subr.mxu0 0.0
    %2954 = vmatpush1.msra.mxu0 0.0
    %2955 = vmatprep.subr.mxu0 0.0
    %2956 = vmatpush1.msra.mxu0 0.0
    %2957 = vmatprep.subr.mxu0 0.0
    %2958 = vmatpush1.msra.mxu0 0.0
    %2959 = vmatprep.subr.mxu0 0.0
    %2960 = vmatpush1.msra.mxu0 0.0
    %2961 = vmatprep.mubr.f32.mxu0 0.0
    %2962 = vmatmul.mubr.f32.gmra.mrb[0].mxu0 %v2895
    %v2963 = vpop.f32.mrb[0].mxu0
    %v2964 = vadd.f32 %v2893, %v2963
    %v2965 = vpop.f32.mrb[0].mxu0
    %2966 = vdwg.mxu0
    %v2967 = vadd.f32 %v2964, %v2795
    %vm2968 = vcmask 58368
    %2969 = vst.msk [vmem:[#allocation5] sm:$0x3] %vm2968, %v2967
    %v2970 = vld [vmem:[%s7] sm:$0x3]
    %v2971 = vmax.f32 %v2967, 0.0
    %v2972 = vmul.f32 %v2967, %v2970
    %v2973 = vsub.f32 %v2971, %v2972
    %v2974 = vand.u32 2147483647, %v2967
    %v2975 = vsub.f32 0.0, %v2974
    %v2976 = vmul.f32 %v2975, 1.442695
    %v2977 = vpow.pop %v2976
    %v2978 = vadd.f32 %v2977, 1.0
    %v2979 = vlog2.pop %v2978
    %v2980 = vmul.f32 %v2979, 0.6931472
    %v2981 = vadd.f32 %v2973, %v2980
    %v2982 = vsel %vm2968, %v2981, 0.0
    %2983 = vadd.xlane.f32.xlu0 %v2982
    %v2984 = vpop.xlane.xlu0 %2983
    %v2985 = vrot.slane %v2984, 4
    %v2986 = vadd.f32 %v2984, %v2985
    %v2987 = vrot.slane %v2986, 2
    %v2988 = vadd.f32 %v2986, %v2987
    %v2989 = vrot.slane %v2988, 1
    %v2990 = vadd.f32 %v2988, %v2989
    %s2991 = vtos %v2990
    %v2992 = vstv %s2991
    %v2993 = vrcp.pop 16.0
    %v2994 = vmul.f32 %v2992, %v2993
    %vm2995 = vcmask 0
    %2996 = vst.msk [vmem:[#allocation7] sm:$0x1] %vm2995, %v2994
    // Predicated region
    $region30: #{forward.1} parent=1 // pred_check
      _
    $region31: #{forward.1} parent=1 // pred_check_branch
      %2998 = sbr.rel (0) target = $region33
    $region32: #{forward.1} parent=1 // pred_region
      %s3000 = ssub.s32 32, 32
      %3001 = vsyncadd [#allocation6], %s3000
      %s3003 = sshll.u32 [#allocation5], 4
      %s3004 = int_to_ptr.vmem [resolvable:$true] %s3003
      %3006 = dma.vmem_to_hbm [thread:$0]  %s3004, 32, %s8, [#allocation6]
    $region33: #{forward.1} parent=1 // pred_fallthru
      _
    // Predicated region
    $region34: #{forward.1} parent=1 // pred_check
      _
    $region35: #{forward.1} parent=1 // pred_check_branch
      %3008 = sbr.rel (0) target = $region37
    $region36: #{forward.1} parent=1 // pred_region
      %s3010 = ssub.s32 16, 16
      %3011 = vsyncadd [#allocation8], %s3010
      %s3013 = sshll.u32 [#allocation7], 4
      %s3014 = int_to_ptr.vmem [resolvable:$true] %s3013
      %3016 = dma.vmem_to_hbm [thread:$0]  %s3014, 16, %s9, [#allocation8]
    $region37: #{forward.1} parent=1 // pred_fallthru
      _
    // Predicated region
    $region38: #{forward.1} parent=1 // pred_check
      _
    $region39: #{forward.1} parent=1 // pred_check_branch
      %3018 = sbr.rel (0) target = $region41
    $region40: #{forward.1} parent=1 // pred_region
      %3019 = dma.done [#allocation6], 32
    $region41: #{forward.1} parent=1 // pred_fallthru
      _
    // Predicated region
    $region42: #{forward.1} parent=1 // pred_check
      _
    $region43: #{forward.1} parent=1 // pred_check_branch
      %3021 = sbr.rel (0) target = $region45
    $region44: #{forward.1} parent=1 // pred_region
      %3022 = dma.done [#allocation8], 16
    $region45: #{forward.1} parent=1 // pred_fallthru
      _
    %3023 = vsyncpa [#allocation6], 1
    %3024 = vsyncpa [#allocation8], 1

</llo_original>
